<compile_context>
chip_gen: v6e
topology: v6e:2x2x1
jax: 0.10.0
libtpu: 0.0.40
codegen_flags: <defaults>
</compile_context>

<pallas_src>
import jax
import jax.numpy as jnp
from jax.experimental import pallas as pl
from jax.experimental.pallas import tpu as pltpu


# Operand dtype fed to the MXU.  On v6e/v7x switch to jnp.bfloat16 for native
# bf16 MXU throughput (keep f32 accumulation; relax the test tolerance if so).
_MXU_OPERAND_DTYPE = jnp.float32

# Sublane-aligned column offset of the image inside the haloed VMEM scratch,
# so all in-kernel "pad" stores are unmasked full-sublane stores.
_SUBLANE = 8


# ---------------------------------------------------------------------------
# Fused kernel.  Grid = (N,), one image per grid step (full spatial extent).
# TODO(synk): for large H/W add a spatial row-tile grid axis with a 2-row halo
#             (grid=(N, cdiv(H, TH))) so scratch/accumulators stay small and
#             v7x's second TensorCore gets work at batch 1-2.
# TODO(synk): pad channels to 128 lanes for lane-dense stores when C << 128.
# ---------------------------------------------------------------------------

def _zero_halo(pad_ref, H, W):
    """Zero only the halo strips of a (H+2, Wp, C) padded scratch.

    The interior [1:H+1, S:S+W, :] is fully overwritten every grid step, so
    only the border columns/rows need clearing.  Column offsets/widths are all
    multiples of 8 -> full, unmasked sublane stores; much cheaper than zeroing
    the whole scratch (O(H+W) halo work instead of O(H*W))."""
    Wp, C = pad_ref.shape[1], pad_ref.shape[2]
    S = _SUBLANE
    col = jnp.zeros((H + 2, S, C), jnp.float32)
    pad_ref[:, 0:S, :] = col                        # left halo strip  (cols [0, 8))
    pad_ref[:, S + W:Wp, :] = col                   # right halo strip (cols [8+W, Wp))
    row = jnp.zeros((1, W, C), jnp.float32)
    pad_ref[0:1, S:S + W, :] = row                  # top halo row
    pad_ref[H + 1:H + 2, S:S + W, :] = row          # bottom halo row


def _im2col_3x3(xpad, H, W, col0):
    """xpad: (H+2, Wp, C) with the image at rows [1, H], cols [col0, col0+W).

    Returns (H, W, 9*C): the 9 shifted taps concatenated on the channel axis,
    tap order (kh, kw) with channels innermost (matches the weight reshape)."""
    taps = []
    for dh in range(3):
        for dw in range(3):
            c = col0 - 1 + dw
            taps.append(xpad[dh:dh + H, c:c + W, :])
    return jnp.concatenate(taps, axis=-1)


def fused_resblock_kernel(x_ref, w1_ref, b1_ref, w2_ref, b2_ref, o_ref,
                          xpad_ref, hpad_ref):
    H, W = o_ref.shape[1], o_ref.shape[2]

    # Read x once from the VMEM block; reused for conv1 input and the skip add.
    x32 = x_ref[0].astype(jnp.float32)

    # ---- pad=1 halo built on-chip (no HBM-side jnp.pad) ----------------------
    _zero_halo(xpad_ref, H, W)
    xpad_ref[1:H + 1, _SUBLANE:_SUBLANE + W, :] = x32

    # ---- conv1 (BN1 scale folded into w1) + bias + ReLU ----------------------
    # One MXU contraction over K = 9*Cin.
    cols1 = _im2col_3x3(xpad_ref[...], H, W, _SUBLANE)              # (H, W, 9*Cin)
    h = jax.lax.dot_general(
        cols1.astype(_MXU_OPERAND_DTYPE),
        w1_ref[...].astype(_MXU_OPERAND_DTYPE),
        dimension_numbers=(((2,), (0,)), ((), ())),
        preferred_element_type=jnp.float32)                         # (H, W, Cmid)
    h = jnp.maximum(h + b1_ref[0], 0.0)

    # ---- intermediate stays resident in VMEM; re-pad it ----------------------
    _zero_halo(hpad_ref, H, W)
    hpad_ref[1:H + 1, _SUBLANE:_SUBLANE + W, :] = h

    # ---- conv2 (BN2 scale folded into w2) + bias + residual + ReLU -----------
    cols2 = _im2col_3x3(hpad_ref[...], H, W, _SUBLANE)              # (H, W, 9*Cmid)
    y = jax.lax.dot_general(
        cols2.astype(_MXU_OPERAND_DTYPE),
        w2_ref[...].astype(_MXU_OPERAND_DTYPE),
        dimension_numbers=(((2,), (0,)), ((), ())),
        preferred_element_type=jnp.float32)                         # (H, W, Cout)
    y = y + b2_ref[0] + x32                                         # identity skip
    o_ref[0] = jnp.maximum(y, 0.0).astype(o_ref.dtype)


# ---------------------------------------------------------------------------
# Wrapper-side glue: BN folding, VMEM budget, pallas_call.
# ---------------------------------------------------------------------------

def _fold_bn_into_conv(w_oihw, gamma, beta, mean, var, eps=1e-5):
    """Fold inference-mode BN into the conv.

    Returns ((9*Cin, Cout) scale-folded weight, (1, Cout) bias)."""
    scale = gamma / jnp.sqrt(var + eps)                              # (Cout,)
    bias = beta - mean * scale                                       # (Cout,)
    cout, cin = w_oihw.shape[0], w_oihw.shape[1]
    # (Cout, Cin, kh, kw) -> (kh, kw, Cin, Cout) -> (9*Cin, Cout)
    w9 = jnp.transpose(w_oihw, (2, 3, 1, 0)).reshape(9 * cin, cout)
    return (w9 * scale[None, :]).astype(jnp.float32), bias[None, :].astype(jnp.float32)


def _round_up(x, m):
    return -(-x // m) * m


def _vmem_block_bytes(shape, dtype):
    """Approximate VMEM footprint of one buffer ((8,128)-tile padded)."""
    dims = list(shape)
    dims[-1] = _round_up(dims[-1], 128)
    if len(dims) >= 2:
        dims[-2] = _round_up(dims[-2], 8)
    n = jnp.dtype(dtype).itemsize
    for d in dims:
        n *= d
    return n


def resblock_forward(x_nchw, params):
    """ResBlock forward (stride=1, downsample=None). x: (N, C, H, W) -> (N, C, H, W)."""
    N, C, H, W = x_nchw.shape
    # TODO(synk): in a full network keep activations NHWC end-to-end and drop
    #             these two boundary transposes (they only exist to match the
    #             PyTorch NCHW interface).
    x = jnp.transpose(x_nchw, (0, 2, 3, 1))                          # NCHW -> NHWC

    w1, b1 = _fold_bn_into_conv(params["w1"], *params["bn1"])
    w2, b2 = _fold_bn_into_conv(params["w2"], *params["bn2"])
    Cmid, Cout = w1.shape[1], w2.shape[1]
    assert Cout == C, "identity skip requires in_plane == num_plane (downsample=None)"

    Wp = W + 2 * _SUBLANE                                            # haloed scratch width
    scratch_shapes = [
        pltpu.VMEM((H + 2, Wp, C), jnp.float32),                     # zero-haloed x
        pltpu.VMEM((H + 2, Wp, Cmid), jnp.float32),                  # zero-haloed conv1 out
    ]

    # Explicit scoped-VMEM budget: 2x (double buffer) per in/out block + scratch,
    # plus headroom.  Capped at 48 MiB so the same config is safe on v7x (64 MiB).
    per_step = 2 * (_vmem_block_bytes((1, H, W, C), x.dtype)
                    + _vmem_block_bytes(w1.shape, w1.dtype)
                    + _vmem_block_bytes(b1.shape, b1.dtype)
                    + _vmem_block_bytes(w2.shape, w2.dtype)
                    + _vmem_block_bytes(b2.shape, b2.dtype)
                    + _vmem_block_bytes((1, H, W, Cout), x.dtype))
    per_step += _vmem_block_bytes((H + 2, Wp, C), jnp.float32)
    per_step += _vmem_block_bytes((H + 2, Wp, Cmid), jnp.float32)
    vmem_limit = int(min(max(per_step + (4 << 20), 16 << 20), 48 << 20))

    out = pl.pallas_call(
        fused_resblock_kernel,
        out_shape=jax.ShapeDtypeStruct((N, H, W, Cout), x.dtype),
        grid_spec=pltpu.PrefetchScalarGridSpec(
            num_scalar_prefetch=0,
            grid=(N,),
            in_specs=[
                pl.BlockSpec((1, H, W, C), lambda n: (n, 0, 0, 0)),   # x (conv1 in + identity)
                pl.BlockSpec((9 * C, Cmid), lambda n: (0, 0)),        # w1 (BN1 scale folded)
                pl.BlockSpec((1, Cmid), lambda n: (0, 0)),            # b1
                pl.BlockSpec((9 * Cmid, Cout), lambda n: (0, 0)),     # w2 (BN2 scale folded)
                pl.BlockSpec((1, Cout), lambda n: (0, 0)),            # b2
            ],
            out_specs=pl.BlockSpec((1, H, W, Cout), lambda n: (n, 0, 0, 0)),
            scratch_shapes=scratch_shapes,
        ),
        compiler_params=pltpu.CompilerParams(
            dimension_semantics=("parallel",),
            vmem_limit_bytes=vmem_limit,
        ),
    )(x, w1, b1, w2, b2)

    return jnp.transpose(out, (0, 3, 1, 2))                          # NHWC -> NCHW


# ---------------------------------------------------------------------------
# Parameter init (PyTorch layouts) and pure-JAX reference for the sanity check.
# ---------------------------------------------------------------------------

def init_params(key, in_plane, num_plane):
    k = jax.random.split(key, 10)
    w1 = jax.random.normal(k[0], (num_plane, in_plane, 3, 3), jnp.float32) * 0.1
    w2 = jax.random.normal(k[1], (num_plane, num_plane, 3, 3), jnp.float32) * 0.1

    def bn_init(k0, k1, k2, k3, c):
        gamma = 1.0 + 0.1 * jax.random.normal(k0, (c,), jnp.float32)
        beta = 0.1 * jax.random.normal(k1, (c,), jnp.float32)
        mean = 0.1 * jax.random.normal(k2, (c,), jnp.float32)
        var = 0.5 + jax.random.uniform(k3, (c,), jnp.float32)        # running_var > 0
        return (gamma, beta, mean, var)

    return {
        "w1": w1,
        "w2": w2,
        "bn1": bn_init(k[2], k[3], k[4], k[5], num_plane),
        "bn2": bn_init(k[6], k[7], k[8], k[9], num_plane),
    }


def _ref_forward(x_nchw, params, eps=1e-5):
    def conv(x, w):  # w: (Cout, Cin, 3, 3), stride 1, pad 1, no bias
        return jax.lax.conv_general_dilated(
            x, w, window_strides=(1, 1), padding=((1, 1), (1, 1)),
            dimension_numbers=("NCHW", "OIHW", "NCHW"))

    def bn(x, p):
        gamma, beta, mean, var = p
        s = gamma / jnp.sqrt(var + eps)
        b = beta - mean * s
        return x * s[None, :, None, None] + b[None, :, None, None]

    h = jax.nn.relu(bn(conv(x_nchw, params["w1"]), params["bn1"]))
    y = bn(conv(h, params["w2"]), params["bn2"]) + x_nchw
    return jax.nn.relu(y)


if __name__ == "__main__":
    key = jax.random.PRNGKey(0)
    kx, kp = jax.random.split(key)

    N, C, H, W = 2, 4, 16, 16                 # in_plane == num_plane, stride=1
    x = jax.random.normal(kx, (N, C, H, W), jnp.float32)
    params = init_params(kp, in_plane=C, num_plane=C)

    fwd = jax.jit(resblock_forward)
    out = jax.block_until_ready(fwd(x, params))

    ref = jax.block_until_ready(_ref_forward(x, params))
    assert out.shape == (N, C, H, W)
    assert jnp.allclose(out, ref, rtol=1e-3, atol=1e-3), "mismatch vs reference"

    print("KERNEL_OK")
</pallas_src>

<mosaic_0001>
module attributes {stable_mosaic.version = 11 : i64} {
  func.func @fused_resblock_kernel(%arg0: i32, %arg1: memref<1x16x16x4xf32, #tpu.memory_space<vmem>>, %arg2: memref<36x4xf32, #tpu.memory_space<vmem>>, %arg3: memref<1x4xf32, #tpu.memory_space<vmem>>, %arg4: memref<36x4xf32, #tpu.memory_space<vmem>>, %arg5: memref<1x4xf32, #tpu.memory_space<vmem>>, %arg6: memref<1x16x16x4xf32, #tpu.memory_space<vmem>>, %arg7: memref<18x32x4xf32, #tpu.memory_space<vmem>>, %arg8: memref<18x32x4xf32, #tpu.memory_space<vmem>>) attributes {dimension_semantics = [#tpu.dimension_semantics<parallel>], iteration_bounds = array<i64: 2>, scalar_prefetch = 0 : i64, scratch_operands = 2 : i64, tpu.core_type = #tpu.core_type<tc>, window_params = [{transform_indices = @transform_0, window_bounds = array<i64: 1, 16, 16, 4>}, {pipeline_mode = #tpu.pipeline_mode<synchronous>, transform_indices = @transform_1, window_bounds = array<i64: 36, 4>}, {pipeline_mode = #tpu.pipeline_mode<synchronous>, transform_indices = @transform_2, window_bounds = array<i64: 1, 4>}, {pipeline_mode = #tpu.pipeline_mode<synchronous>, transform_indices = @transform_3, window_bounds = array<i64: 36, 4>}, {pipeline_mode = #tpu.pipeline_mode<synchronous>, transform_indices = @transform_4, window_bounds = array<i64: 1, 4>}, {transform_indices = @transform_5, window_bounds = array<i64: 1, 16, 16, 4>}]} {
    %c0 = arith.constant 0 : index
    %c0_0 = arith.constant 0 : index
    %c0_1 = arith.constant 0 : index
    %c0_2 = arith.constant 0 : index
    %0 = vector.load %arg1[%c0, %c0_0, %c0_1, %c0_2] : memref<1x16x16x4xf32, #tpu.memory_space<vmem>>, vector<1x16x16x4xf32>
    %1 = vector.shape_cast %0 : vector<1x16x16x4xf32> to vector<16x16x4xf32>
    %cst = arith.constant 0.000000e+00 : f32
    %2 = vector.broadcast %cst : f32 to vector<18x8x4xf32>
    %c0_3 = arith.constant 0 : index
    %c0_4 = arith.constant 0 : index
    %c0_5 = arith.constant 0 : index
    %3 = vector.load %arg7[%c0_3, %c0_4, %c0_5] : memref<18x32x4xf32, #tpu.memory_space<vmem>>, vector<18x8x4xf32>
    tpu.vector_store %arg7[%c0_3, %c0_4, %c0_5], %2 {strides = array<i32>} : memref<18x32x4xf32, #tpu.memory_space<vmem>>, vector<18x8x4xf32>,
    %c0_6 = arith.constant 0 : index
    %c24 = arith.constant 24 : index
    %c0_7 = arith.constant 0 : index
    %4 = vector.load %arg7[%c0_6, %c24, %c0_7] : memref<18x32x4xf32, #tpu.memory_space<vmem>>, vector<18x8x4xf32>
    tpu.vector_store %arg7[%c0_6, %c24, %c0_7], %2 {strides = array<i32>} : memref<18x32x4xf32, #tpu.memory_space<vmem>>, vector<18x8x4xf32>,
    %cst_8 = arith.constant 0.000000e+00 : f32
    %5 = vector.broadcast %cst_8 : f32 to vector<1x16x4xf32>
    %c0_9 = arith.constant 0 : index
    %c8 = arith.constant 8 : index
    %c0_10 = arith.constant 0 : index
    %6 = vector.load %arg7[%c0_9, %c8, %c0_10] : memref<18x32x4xf32, #tpu.memory_space<vmem>>, vector<1x16x4xf32>
    tpu.vector_store %arg7[%c0_9, %c8, %c0_10], %5 {strides = array<i32>} : memref<18x32x4xf32, #tpu.memory_space<vmem>>, vector<1x16x4xf32>,
    %c17 = arith.constant 17 : index
    %c8_11 = arith.constant 8 : index
    %c0_12 = arith.constant 0 : index
    %7 = vector.load %arg7[%c17, %c8_11, %c0_12] : memref<18x32x4xf32, #tpu.memory_space<vmem>>, vector<1x16x4xf32>
    tpu.vector_store %arg7[%c17, %c8_11, %c0_12], %5 {strides = array<i32>} : memref<18x32x4xf32, #tpu.memory_space<vmem>>, vector<1x16x4xf32>,
    %c1 = arith.constant 1 : index
    %c8_13 = arith.constant 8 : index
    %c0_14 = arith.constant 0 : index
    %8 = vector.load %arg7[%c1, %c8_13, %c0_14] : memref<18x32x4xf32, #tpu.memory_space<vmem>>, vector<16x16x4xf32>
    tpu.vector_store %arg7[%c1, %c8_13, %c0_14], %1 {strides = array<i32>} : memref<18x32x4xf32, #tpu.memory_space<vmem>>, vector<16x16x4xf32>,
    %c0_15 = arith.constant 0 : index
    %c0_16 = arith.constant 0 : index
    %c0_17 = arith.constant 0 : index
    %9 = vector.load %arg7[%c0_15, %c0_16, %c0_17] : memref<18x32x4xf32, #tpu.memory_space<vmem>>, vector<18x32x4xf32>
    %10 = vector.extract_strided_slice %9 {offsets = [0, 7, 0], sizes = [16, 16, 4], strides = [1, 1, 1]} : vector<18x32x4xf32> to vector<16x16x4xf32>
    %11 = vector.extract_strided_slice %9 {offsets = [0, 8, 0], sizes = [16, 16, 4], strides = [1, 1, 1]} : vector<18x32x4xf32> to vector<16x16x4xf32>
    %12 = vector.extract_strided_slice %9 {offsets = [0, 9, 0], sizes = [16, 16, 4], strides = [1, 1, 1]} : vector<18x32x4xf32> to vector<16x16x4xf32>
    %13 = vector.extract_strided_slice %9 {offsets = [1, 7, 0], sizes = [16, 16, 4], strides = [1, 1, 1]} : vector<18x32x4xf32> to vector<16x16x4xf32>
    %14 = vector.extract_strided_slice %9 {offsets = [1, 8, 0], sizes = [16, 16, 4], strides = [1, 1, 1]} : vector<18x32x4xf32> to vector<16x16x4xf32>
    %15 = vector.extract_strided_slice %9 {offsets = [1, 9, 0], sizes = [16, 16, 4], strides = [1, 1, 1]} : vector<18x32x4xf32> to vector<16x16x4xf32>
    %16 = vector.extract_strided_slice %9 {offsets = [2, 7, 0], sizes = [16, 16, 4], strides = [1, 1, 1]} : vector<18x32x4xf32> to vector<16x16x4xf32>
    %17 = vector.extract_strided_slice %9 {offsets = [2, 8, 0], sizes = [16, 16, 4], strides = [1, 1, 1]} : vector<18x32x4xf32> to vector<16x16x4xf32>
    %18 = vector.extract_strided_slice %9 {offsets = [2, 9, 0], sizes = [16, 16, 4], strides = [1, 1, 1]} : vector<18x32x4xf32> to vector<16x16x4xf32>
    %19 = tpu.concatenate %10, %11, %12, %13, %14, %15, %16, %17, %18 in 2 : vector<16x16x4xf32>, vector<16x16x4xf32>, vector<16x16x4xf32>, vector<16x16x4xf32>, vector<16x16x4xf32>, vector<16x16x4xf32>, vector<16x16x4xf32>, vector<16x16x4xf32>, vector<16x16x4xf32> -> vector<16x16x36xf32>
    %c0_18 = arith.constant 0 : index
    %c0_19 = arith.constant 0 : index
    %20 = vector.load %arg2[%c0_18, %c0_19] : memref<36x4xf32, #tpu.memory_space<vmem>>, vector<36x4xf32>
    %cst_20 = arith.constant dense<0.000000e+00> : vector<16x16x4xf32>
    %21 = tpu.matmul %19, %20, %cst_20 {dimension_numbers = #tpu.dot_dimension_numbers<[2], [0], [0, 1], [1], [0, 0, 0, 1, 1, 1], [], []>} : vector<16x16x36xf32>, vector<36x4xf32>, vector<16x16x4xf32> -> vector<16x16x4xf32>
    %c0_21 = arith.constant 0 : index
    %c0_22 = arith.constant 0 : index
    %22 = vector.load %arg3[%c0_21, %c0_22] : memref<1x4xf32, #tpu.memory_space<vmem>>, vector<1x4xf32>
    %23 = vector.shape_cast %22 : vector<1x4xf32> to vector<4xf32>
    %24 = vector.shape_cast %23 : vector<4xf32> to vector<1x1x4xf32>
    %25 = vector.broadcast %24 : vector<1x1x4xf32> to vector<16x16x4xf32>
    %26 = arith.addf %21, %25 : vector<16x16x4xf32>
    %cst_23 = arith.constant 0.000000e+00 : f32
    %27 = vector.broadcast %cst_23 : f32 to vector<16x16x4xf32>
    %28 = arith.maximumf %26, %27 : vector<16x16x4xf32>
    %cst_24 = arith.constant 0.000000e+00 : f32
    %29 = vector.broadcast %cst_24 : f32 to vector<18x8x4xf32>
    %c0_25 = arith.constant 0 : index
    %c0_26 = arith.constant 0 : index
    %c0_27 = arith.constant 0 : index
    %30 = vector.load %arg8[%c0_25, %c0_26, %c0_27] : memref<18x32x4xf32, #tpu.memory_space<vmem>>, vector<18x8x4xf32>
    tpu.vector_store %arg8[%c0_25, %c0_26, %c0_27], %29 {strides = array<i32>} : memref<18x32x4xf32, #tpu.memory_space<vmem>>, vector<18x8x4xf32>,
    %c0_28 = arith.constant 0 : index
    %c24_29 = arith.constant 24 : index
    %c0_30 = arith.constant 0 : index
    %31 = vector.load %arg8[%c0_28, %c24_29, %c0_30] : memref<18x32x4xf32, #tpu.memory_space<vmem>>, vector<18x8x4xf32>
    tpu.vector_store %arg8[%c0_28, %c24_29, %c0_30], %29 {strides = array<i32>} : memref<18x32x4xf32, #tpu.memory_space<vmem>>, vector<18x8x4xf32>,
    %cst_31 = arith.constant 0.000000e+00 : f32
    %32 = vector.broadcast %cst_31 : f32 to vector<1x16x4xf32>
    %c0_32 = arith.constant 0 : index
    %c8_33 = arith.constant 8 : index
    %c0_34 = arith.constant 0 : index
    %33 = vector.load %arg8[%c0_32, %c8_33, %c0_34] : memref<18x32x4xf32, #tpu.memory_space<vmem>>, vector<1x16x4xf32>
    tpu.vector_store %arg8[%c0_32, %c8_33, %c0_34], %32 {strides = array<i32>} : memref<18x32x4xf32, #tpu.memory_space<vmem>>, vector<1x16x4xf32>,
    %c17_35 = arith.constant 17 : index
    %c8_36 = arith.constant 8 : index
    %c0_37 = arith.constant 0 : index
    %34 = vector.load %arg8[%c17_35, %c8_36, %c0_37] : memref<18x32x4xf32, #tpu.memory_space<vmem>>, vector<1x16x4xf32>
    tpu.vector_store %arg8[%c17_35, %c8_36, %c0_37], %32 {strides = array<i32>} : memref<18x32x4xf32, #tpu.memory_space<vmem>>, vector<1x16x4xf32>,
    %c1_38 = arith.constant 1 : index
    %c8_39 = arith.constant 8 : index
    %c0_40 = arith.constant 0 : index
    %35 = vector.load %arg8[%c1_38, %c8_39, %c0_40] : memref<18x32x4xf32, #tpu.memory_space<vmem>>, vector<16x16x4xf32>
    tpu.vector_store %arg8[%c1_38, %c8_39, %c0_40], %28 {strides = array<i32>} : memref<18x32x4xf32, #tpu.memory_space<vmem>>, vector<16x16x4xf32>,
    %c0_41 = arith.constant 0 : index
    %c0_42 = arith.constant 0 : index
    %c0_43 = arith.constant 0 : index
    %36 = vector.load %arg8[%c0_41, %c0_42, %c0_43] : memref<18x32x4xf32, #tpu.memory_space<vmem>>, vector<18x32x4xf32>
    %37 = vector.extract_strided_slice %36 {offsets = [0, 7, 0], sizes = [16, 16, 4], strides = [1, 1, 1]} : vector<18x32x4xf32> to vector<16x16x4xf32>
    %38 = vector.extract_strided_slice %36 {offsets = [0, 8, 0], sizes = [16, 16, 4], strides = [1, 1, 1]} : vector<18x32x4xf32> to vector<16x16x4xf32>
    %39 = vector.extract_strided_slice %36 {offsets = [0, 9, 0], sizes = [16, 16, 4], strides = [1, 1, 1]} : vector<18x32x4xf32> to vector<16x16x4xf32>
    %40 = vector.extract_strided_slice %36 {offsets = [1, 7, 0], sizes = [16, 16, 4], strides = [1, 1, 1]} : vector<18x32x4xf32> to vector<16x16x4xf32>
    %41 = vector.extract_strided_slice %36 {offsets = [1, 8, 0], sizes = [16, 16, 4], strides = [1, 1, 1]} : vector<18x32x4xf32> to vector<16x16x4xf32>
    %42 = vector.extract_strided_slice %36 {offsets = [1, 9, 0], sizes = [16, 16, 4], strides = [1, 1, 1]} : vector<18x32x4xf32> to vector<16x16x4xf32>
    %43 = vector.extract_strided_slice %36 {offsets = [2, 7, 0], sizes = [16, 16, 4], strides = [1, 1, 1]} : vector<18x32x4xf32> to vector<16x16x4xf32>
    %44 = vector.extract_strided_slice %36 {offsets = [2, 8, 0], sizes = [16, 16, 4], strides = [1, 1, 1]} : vector<18x32x4xf32> to vector<16x16x4xf32>
    %45 = vector.extract_strided_slice %36 {offsets = [2, 9, 0], sizes = [16, 16, 4], strides = [1, 1, 1]} : vector<18x32x4xf32> to vector<16x16x4xf32>
    %46 = tpu.concatenate %37, %38, %39, %40, %41, %42, %43, %44, %45 in 2 : vector<16x16x4xf32>, vector<16x16x4xf32>, vector<16x16x4xf32>, vector<16x16x4xf32>, vector<16x16x4xf32>, vector<16x16x4xf32>, vector<16x16x4xf32>, vector<16x16x4xf32>, vector<16x16x4xf32> -> vector<16x16x36xf32>
    %c0_44 = arith.constant 0 : index
    %c0_45 = arith.constant 0 : index
    %47 = vector.load %arg4[%c0_44, %c0_45] : memref<36x4xf32, #tpu.memory_space<vmem>>, vector<36x4xf32>
    %cst_46 = arith.constant dense<0.000000e+00> : vector<16x16x4xf32>
    %48 = tpu.matmul %46, %47, %cst_46 {dimension_numbers = #tpu.dot_dimension_numbers<[2], [0], [0, 1], [1], [0, 0, 0, 1, 1, 1], [], []>} : vector<16x16x36xf32>, vector<36x4xf32>, vector<16x16x4xf32> -> vector<16x16x4xf32>
    %c0_47 = arith.constant 0 : index
    %c0_48 = arith.constant 0 : index
    %49 = vector.load %arg5[%c0_47, %c0_48] : memref<1x4xf32, #tpu.memory_space<vmem>>, vector<1x4xf32>
    %50 = vector.shape_cast %49 : vector<1x4xf32> to vector<4xf32>
    %51 = vector.shape_cast %50 : vector<4xf32> to vector<1x1x4xf32>
    %52 = vector.broadcast %51 : vector<1x1x4xf32> to vector<16x16x4xf32>
    %53 = arith.addf %48, %52 : vector<16x16x4xf32>
    %54 = arith.addf %53, %1 : vector<16x16x4xf32>
    %cst_49 = arith.constant 0.000000e+00 : f32
    %55 = vector.broadcast %cst_49 : f32 to vector<16x16x4xf32>
    %56 = arith.maximumf %54, %55 : vector<16x16x4xf32>
    %c0_50 = arith.constant 0 : index
    %c0_51 = arith.constant 0 : index
    %c0_52 = arith.constant 0 : index
    %c0_53 = arith.constant 0 : index
    %57 = vector.load %arg6[%c0_50, %c0_51, %c0_52, %c0_53] : memref<1x16x16x4xf32, #tpu.memory_space<vmem>>, vector<1x16x16x4xf32>
    %58 = vector.shape_cast %57 : vector<1x16x16x4xf32> to vector<16x16x4xf32>
    %59 = vector.shape_cast %56 : vector<16x16x4xf32> to vector<1x16x16x4xf32>
    tpu.vector_store %arg6[%c0_50, %c0_51, %c0_52, %c0_53], %59 {strides = array<i32>} : memref<1x16x16x4xf32, #tpu.memory_space<vmem>>, vector<1x16x16x4xf32>,
    return
  }
  func.func @transform_0(%arg0: i32) -> (i32, i32, i32, i32) {
    %c0_i32 = arith.constant 0 : i32
    %c0_i32_0 = arith.constant 0 : i32
    %c0_i32_1 = arith.constant 0 : i32
    %c0_i32_2 = arith.constant 0 : i32
    return %arg0, %c0_i32, %c0_i32_0, %c0_i32_1 : i32, i32, i32, i32
  }
  func.func @transform_1(%arg0: i32) -> (i32, i32) {
    %c0_i32 = arith.constant 0 : i32
    %c0_i32_0 = arith.constant 0 : i32
    %c0_i32_1 = arith.constant 0 : i32
    return %c0_i32, %c0_i32_0 : i32, i32
  }
  func.func @transform_2(%arg0: i32) -> (i32, i32) {
    %c0_i32 = arith.constant 0 : i32
    %c0_i32_0 = arith.constant 0 : i32
    %c0_i32_1 = arith.constant 0 : i32
    return %c0_i32, %c0_i32_0 : i32, i32
  }
  func.func @transform_3(%arg0: i32) -> (i32, i32) {
    %c0_i32 = arith.constant 0 : i32
    %c0_i32_0 = arith.constant 0 : i32
    %c0_i32_1 = arith.constant 0 : i32
    return %c0_i32, %c0_i32_0 : i32, i32
  }
  func.func @transform_4(%arg0: i32) -> (i32, i32) {
    %c0_i32 = arith.constant 0 : i32
    %c0_i32_0 = arith.constant 0 : i32
    %c0_i32_1 = arith.constant 0 : i32
    return %c0_i32, %c0_i32_0 : i32, i32
  }
  func.func @transform_5(%arg0: i32) -> (i32, i32, i32, i32) {
    %c0_i32 = arith.constant 0 : i32
    %c0_i32_0 = arith.constant 0 : i32
    %c0_i32_1 = arith.constant 0 : i32
    %c0_i32_2 = arith.constant 0 : i32
    return %arg0, %c0_i32, %c0_i32_0, %c0_i32_1 : i32, i32, i32, i32
  }
}

</mosaic_0001>

<llo_original>
// kernel: resblock_forward.1
$region0: #{resblock_forward.1}
  #allocation0 [shape = 'u32[]', space=smem, size = 0x4, offset = 0x4, fixed_abs, tag = 'smem constant byte address 0x4 - core index']
  #allocation1 [shape = 'u32[144,128]{1,0:T(1,128)}', space=vmem, size = 0x12000, scoped, tag = 'internal scratch']
  #allocation2 [shape = 'f32[18,32,4]{2,1,0:T(8,128)}', space=vmem, size = 0x48000, scoped, tag = 'scratch operand']
  #allocation3 [shape = 'f32[18,32,4]{2,1,0:T(8,128)}', space=vmem, size = 0x48000, scoped, tag = 'scratch operand']
  %s0 = inlined_call_operand.vmem [shape: f32[2,16,16,4], index: 0, kind: input, shape index: {}]
  %s1 = inlined_call_operand.vmem [shape: f32[36,4], index: 1, kind: input, shape index: {}]
  %s2 = inlined_call_operand.vmem [shape: f32[1,4], index: 2, kind: input, shape index: {}]
  %s3 = inlined_call_operand.vmem [shape: f32[36,4], index: 3, kind: input, shape index: {}]
  %s4 = inlined_call_operand.vmem [shape: f32[1,4], index: 4, kind: input, shape index: {}]
  %s5 = inlined_call_operand.vmem [shape: f32[2,16,16,4], index: 5, kind: output, shape index: {}]
  %s6 = sld [smem:[#allocation0]]
  $region53: #{resblock_forward.1} parent=0
    _
  %s8 = ssub.s32 1, %s6
  %s9 = scalar_select 0, %s8, %s6
  loop: start=0, step=1, limit=4
  $region2: #{resblock_forward.1} parent=0 // loop_pre_header
    _
  $region3: #{resblock_forward.1} parent=0 // loop_header
    %s11 = sphi 0, %s15
    %p12 = scmp.ge.s32.totalorder %s11, 4
    %s21 = sphi 0, %s23
    %s24 = sphi 0, %s21
    %s25 = sphi 0, %s24
    %s41 = sphi 0, %s25
    %s45 = sphi 0, %s45
    %s47 = sphi 0, %s45
    %s48 = sphi 0, %s47
    %s62 = sphi 0, %s48
    %s66 = sphi 0, %s66
    %s68 = sphi 0, %s66
    %s69 = sphi 0, %s68
    %s83 = sphi 0, %s69
    %s87 = sphi 0, %s87
    %s89 = sphi 0, %s87
    %s90 = sphi 0, %s89
    %s104 = sphi 0, %s90
    %s108 = sphi 0, %s108
    %s110 = sphi 0, %s108
    %s111 = sphi 0, %s110
    %s125 = sphi 0, %s111
    %s131 = sphi 0, %s133
    %s134 = sphi 0, %s131
    %s135 = sphi 0, %s134
    %s151 = sphi 0, %s135
  $region4: #{resblock_forward.1} parent=0 // loop_header_branch
    %14 = sbr.rel (%p12) target = $region8
  $region5: #{resblock_forward.1} parent=0 // loop_body
    %s16 = ssub.s32 %s11, 1
    %s17 = ssub.s32 %s11, 2
    %s18 = sadd.s32 %s11, 1
    %s19 = ssub.s32 %s11, %s18
    %p20 = scmp.eq.s32.totalorder %s19, 0
    %s22 = sadd.s32 %s21, 1
    %s23 = scalar_select %p20, %s21, %s22
    %p26 = pneg %p20
    %p27 = scmp.eq.s32.totalorder %s11, 1
    %p28 = por %p26, %p27
    %p29 = scmp.ne.s32.totalorder %s21, %s24
    %p30 = scmp.eq.s32.totalorder %s11, 0
    %p31 = por %p29, %p30
    %p32 = scmp.ne.s32.totalorder %s21, %s24
    %p33 = scmp.eq.s32.totalorder %s16, 1
    %p34 = por %p32, %p33
    %p35 = scmp.ne.s32.totalorder %s24, %s25
    %p36 = scmp.eq.s32.totalorder %s16, 0
    %p37 = por %p35, %p36
    %p38 = scmp.ne.s32.totalorder %s24, %s25
    %p39 = scmp.eq.s32.totalorder %s17, 1
    %p40 = por %p38, %p39
    %p42 = scmp.ne.s32.totalorder %s25, %s41
    %p43 = scmp.eq.s32.totalorder %s17, 0
    %p44 = por %p42, %p43
    %s46 = sadd.s32 %s45, 1
    %p49 = scmp.eq.s32.totalorder %s11, 1
    %p50 = scmp.ne.s32.totalorder %s45, %s47
    %p51 = scmp.eq.s32.totalorder %s11, 0
    %p52 = por %p50, %p51
    %p53 = scmp.ne.s32.totalorder %s45, %s47
    %p54 = scmp.eq.s32.totalorder %s16, 1
    %p55 = por %p53, %p54
    %p56 = scmp.ne.s32.totalorder %s47, %s48
    %p57 = scmp.eq.s32.totalorder %s16, 0
    %p58 = por %p56, %p57
    %p59 = scmp.ne.s32.totalorder %s47, %s48
    %p60 = scmp.eq.s32.totalorder %s17, 1
    %p61 = por %p59, %p60
    %p63 = scmp.ne.s32.totalorder %s48, %s62
    %p64 = scmp.eq.s32.totalorder %s17, 0
    %p65 = por %p63, %p64
    %s67 = sadd.s32 %s66, 1
    %p70 = scmp.eq.s32.totalorder %s11, 1
    %p71 = scmp.ne.s32.totalorder %s66, %s68
    %p72 = scmp.eq.s32.totalorder %s11, 0
    %p73 = por %p71, %p72
    %p74 = scmp.ne.s32.totalorder %s66, %s68
    %p75 = scmp.eq.s32.totalorder %s16, 1
    %p76 = por %p74, %p75
    %p77 = scmp.ne.s32.totalorder %s68, %s69
    %p78 = scmp.eq.s32.totalorder %s16, 0
    %p79 = por %p77, %p78
    %p80 = scmp.ne.s32.totalorder %s68, %s69
    %p81 = scmp.eq.s32.totalorder %s17, 1
    %p82 = por %p80, %p81
    %p84 = scmp.ne.s32.totalorder %s69, %s83
    %p85 = scmp.eq.s32.totalorder %s17, 0
    %p86 = por %p84, %p85
    %s88 = sadd.s32 %s87, 1
    %p91 = scmp.eq.s32.totalorder %s11, 1
    %p92 = scmp.ne.s32.totalorder %s87, %s89
    %p93 = scmp.eq.s32.totalorder %s11, 0
    %p94 = por %p92, %p93
    %p95 = scmp.ne.s32.totalorder %s87, %s89
    %p96 = scmp.eq.s32.totalorder %s16, 1
    %p97 = por %p95, %p96
    %p98 = scmp.ne.s32.totalorder %s89, %s90
    %p99 = scmp.eq.s32.totalorder %s16, 0
    %p100 = por %p98, %p99
    %p101 = scmp.ne.s32.totalorder %s89, %s90
    %p102 = scmp.eq.s32.totalorder %s17, 1
    %p103 = por %p101, %p102
    %p105 = scmp.ne.s32.totalorder %s90, %s104
    %p106 = scmp.eq.s32.totalorder %s17, 0
    %p107 = por %p105, %p106
    %s109 = sadd.s32 %s108, 1
    %p112 = scmp.eq.s32.totalorder %s11, 1
    %p113 = scmp.ne.s32.totalorder %s108, %s110
    %p114 = scmp.eq.s32.totalorder %s11, 0
    %p115 = por %p113, %p114
    %p116 = scmp.ne.s32.totalorder %s108, %s110
    %p117 = scmp.eq.s32.totalorder %s16, 1
    %p118 = por %p116, %p117
    %p119 = scmp.ne.s32.totalorder %s110, %s111
    %p120 = scmp.eq.s32.totalorder %s16, 0
    %p121 = por %p119, %p120
    %p122 = scmp.ne.s32.totalorder %s110, %s111
    %p123 = scmp.eq.s32.totalorder %s17, 1
    %p124 = por %p122, %p123
    %p126 = scmp.ne.s32.totalorder %s111, %s125
    %p127 = scmp.eq.s32.totalorder %s17, 0
    %p128 = por %p126, %p127
    %s129 = ssub.s32 %s11, %s18
    %p130 = scmp.eq.s32.totalorder %s129, 0
    %s132 = sadd.s32 %s131, 1
    %s133 = scalar_select %p130, %s131, %s132
    %p136 = pneg %p130
    %p137 = scmp.eq.s32.totalorder %s11, 1
    %p138 = por %p136, %p137
    %p139 = scmp.ne.s32.totalorder %s131, %s134
    %p140 = scmp.eq.s32.totalorder %s11, 0
    %p141 = por %p139, %p140
    %p142 = scmp.ne.s32.totalorder %s131, %s134
    %p143 = scmp.eq.s32.totalorder %s16, 1
    %p144 = por %p142, %p143
    %p145 = scmp.ne.s32.totalorder %s134, %s135
    %p146 = scmp.eq.s32.totalorder %s16, 0
    %p147 = por %p145, %p146
    %p148 = scmp.ne.s32.totalorder %s134, %s135
    %p149 = scmp.eq.s32.totalorder %s17, 1
    %p150 = por %p148, %p149
    %p152 = scmp.ne.s32.totalorder %s135, %s151
    %p153 = scmp.eq.s32.totalorder %s17, 0
    %p154 = por %p152, %p153
    %p155 = scmp.le.s32.totalorder 1, %s11
    %p156 = scmp.lt.s32.totalorder %s11, 3
    %p157 = pnand %p155, %p156
    %p158 = pneg %p157
    // Predicated region
    $region9: #{resblock_forward.1} parent=5 // pred_check
      _
    $region10: #{resblock_forward.1} parent=5 // pred_check_branch
      %160 = sbr.rel (%p157) target = $region12
    $region11: #{resblock_forward.1} parent=5 // pred_region
      %s161 = ssub.s32 %s11, 1
      // Predicated region
      $region13: #{resblock_forward.1} parent=11 // pred_check
        %p162 = pneg %p58
      $region14: #{resblock_forward.1} parent=11 // pred_check_branch
        %164 = sbr.rel (%p162) target = $region16
      $region15: #{resblock_forward.1} parent=11 // pred_region
        _
      $region16: #{resblock_forward.1} parent=11 // pred_fallthru
        _
      // Predicated region
      $region17: #{resblock_forward.1} parent=11 // pred_check
        %p165 = pneg %p79
      $region18: #{resblock_forward.1} parent=11 // pred_check_branch
        %167 = sbr.rel (%p165) target = $region20
      $region19: #{resblock_forward.1} parent=11 // pred_region
        _
      $region20: #{resblock_forward.1} parent=11 // pred_fallthru
        _
      // Predicated region
      $region21: #{resblock_forward.1} parent=11 // pred_check
        %p168 = pneg %p100
      $region22: #{resblock_forward.1} parent=11 // pred_check_branch
        %170 = sbr.rel (%p168) target = $region24
      $region23: #{resblock_forward.1} parent=11 // pred_region
        _
      $region24: #{resblock_forward.1} parent=11 // pred_fallthru
        _
      // Predicated region
      $region25: #{resblock_forward.1} parent=11 // pred_check
        %p171 = pneg %p121
      $region26: #{resblock_forward.1} parent=11 // pred_check_branch
        %173 = sbr.rel (%p171) target = $region28
      $region27: #{resblock_forward.1} parent=11 // pred_region
        _
      $region28: #{resblock_forward.1} parent=11 // pred_fallthru
        _
    $region12: #{resblock_forward.1} parent=5 // pred_fallthru
      _
    %p174 = scmp.lt.s32.totalorder %s11, 2
    // Predicated region
    $region29: #{resblock_forward.1} parent=5 // pred_check
      %p175 = pneg %p174
    $region30: #{resblock_forward.1} parent=5 // pred_check_branch
      %177 = sbr.rel (%p175) target = $region32
    $region31: #{resblock_forward.1} parent=5 // pred_region
      // Predicated region
      $region33: #{resblock_forward.1} parent=31 // pred_check
        %p178 = pneg %p31
      $region34: #{resblock_forward.1} parent=31 // pred_check_branch
        %180 = sbr.rel (%p178) target = $region36
      $region35: #{resblock_forward.1} parent=31 // pred_region
        %p181 = scmp.lt.s32.totalorder %s11, 1
        %s182 = scalar_select %p181, %s11, 1
        %s183 = smul.addr %s182, 32
        %s184 = smul.addr %s183, 8
        %s185 = scalar_lea.vmem %s0, %s184
      $region36: #{resblock_forward.1} parent=31 // pred_fallthru
        _
    $region32: #{resblock_forward.1} parent=5 // pred_fallthru
      _
    %p186 = scmp.le.s32.totalorder 1, %s11
    %p187 = scmp.lt.s32.totalorder %s11, 3
    %p188 = pnand %p186, %p187
    %p189 = pneg %p188
    // Predicated region
    $region37: #{resblock_forward.1} parent=5 // pred_check
      _
    $region38: #{resblock_forward.1} parent=5 // pred_check_branch
      %191 = sbr.rel (%p188) target = $region40
    $region39: #{resblock_forward.1} parent=5 // pred_region
      %s192 = ssub.s32 %s11, 1
      %p193 = scmp.lt.s32.totalorder %s16, 1
      %s194 = scalar_select %p193, %s16, 1
      %s195 = smul.addr %s194, 32
      %s196 = smul.addr %s195, 8
      %s197 = scalar_lea.vmem %s0, %s196
      %p198 = pneg %p37
      %p199 = pneg %p34
      %p200 = pneg %p58
      %p201 = pneg %p55
      %p202 = pneg %p79
      %p203 = pneg %p76
      %p204 = pneg %p100
      %p205 = pneg %p97
      %p206 = pneg %p121
      %p207 = pneg %p118
      %p208 = pneg %p147
      %p209 = pneg %p144
      %p210 = scmp.lt.s32.totalorder %s16, 1
      %s211 = scalar_select %p210, %s16, 1
      %s212 = smul.addr %s211, 32
      %s213 = smul.addr %s212, 8
      %s214 = scalar_lea.vmem %s5, %s213
      %p215 = scmp.lt.s32.totalorder %s16, 1
      %s216 = scalar_select %p215, %s16, 1
      %s217 = smul.addr %s216, 32
      %s218 = smul.addr %s217, 8
      %s219 = scalar_lea.vmem %s0, %s218
      %p220 = scmp.lt.s32.totalorder %s16, 1
      %s221 = scalar_select %p220, %s16, 1
      %s222 = smul.addr %s221, 32
      %s223 = smul.addr %s222, 8
      %s224 = scalar_lea.vmem %s5, %s223
      %v225 = vld [vmem:[%s219] sm:$0xff]
      %v226 = vld [vmem:[%s219 + $0x8] sm:$0xff]
      %v227 = vld [vmem:[%s219 + $0x10] sm:$0xff]
      %v228 = vld [vmem:[%s219 + $0x18] sm:$0xff]
      %v229 = vld [vmem:[%s219 + $0x20] sm:$0xff]
      %v230 = vld [vmem:[%s219 + $0x28] sm:$0xff]
      %v231 = vld [vmem:[%s219 + $0x30] sm:$0xff]
      %v232 = vld [vmem:[%s219 + $0x38] sm:$0xff]
      %v233 = vld [vmem:[%s219 + $0x40] sm:$0xff]
      %v234 = vld [vmem:[%s219 + $0x48] sm:$0xff]
      %v235 = vld [vmem:[%s219 + $0x50] sm:$0xff]
      %v236 = vld [vmem:[%s219 + $0x58] sm:$0xff]
      %v237 = vld [vmem:[%s219 + $0x60] sm:$0xff]
      %v238 = vld [vmem:[%s219 + $0x68] sm:$0xff]
      %v239 = vld [vmem:[%s219 + $0x70] sm:$0xff]
      %v240 = vld [vmem:[%s219 + $0x78] sm:$0xff]
      %v241 = vld [vmem:[%s219 + $0x80] sm:$0xff]
      %v242 = vld [vmem:[%s219 + $0x88] sm:$0xff]
      %v243 = vld [vmem:[%s219 + $0x90] sm:$0xff]
      %v244 = vld [vmem:[%s219 + $0x98] sm:$0xff]
      %v245 = vld [vmem:[%s219 + $0xa0] sm:$0xff]
      %v246 = vld [vmem:[%s219 + $0xa8] sm:$0xff]
      %v247 = vld [vmem:[%s219 + $0xb0] sm:$0xff]
      %v248 = vld [vmem:[%s219 + $0xb8] sm:$0xff]
      %v249 = vld [vmem:[%s219 + $0xc0] sm:$0xff]
      %v250 = vld [vmem:[%s219 + $0xc8] sm:$0xff]
      %v251 = vld [vmem:[%s219 + $0xd0] sm:$0xff]
      %v252 = vld [vmem:[%s219 + $0xd8] sm:$0xff]
      %v253 = vld [vmem:[%s219 + $0xe0] sm:$0xff]
      %v254 = vld [vmem:[%s219 + $0xe8] sm:$0xff]
      %v255 = vld [vmem:[%s219 + $0xf0] sm:$0xff]
      %v256 = vld [vmem:[%s219 + $0xf8] sm:$0xff]
      %vm257 = vcmask 31744
      %258 = vst.msk [vmem:[#allocation2] sm:$0xff] %vm257, 0.0
      %259 = vst.msk [vmem:[#allocation2 + $0x20] sm:$0xff] %vm257, 0.0
      %260 = vst.msk [vmem:[#allocation2 + $0x40] sm:$0xff] %vm257, 0.0
      %261 = vst.msk [vmem:[#allocation2 + $0x60] sm:$0xff] %vm257, 0.0
      %262 = vst.msk [vmem:[#allocation2 + $0x80] sm:$0xff] %vm257, 0.0
      %263 = vst.msk [vmem:[#allocation2 + $0xa0] sm:$0xff] %vm257, 0.0
      %264 = vst.msk [vmem:[#allocation2 + $0xc0] sm:$0xff] %vm257, 0.0
      %265 = vst.msk [vmem:[#allocation2 + $0xe0] sm:$0xff] %vm257, 0.0
      %266 = vst.msk [vmem:[#allocation2 + $0x100] sm:$0xff] %vm257, 0.0
      %267 = vst.msk [vmem:[#allocation2 + $0x120] sm:$0xff] %vm257, 0.0
      %268 = vst.msk [vmem:[#allocation2 + $0x140] sm:$0xff] %vm257, 0.0
      %269 = vst.msk [vmem:[#allocation2 + $0x160] sm:$0xff] %vm257, 0.0
      %270 = vst.msk [vmem:[#allocation2 + $0x180] sm:$0xff] %vm257, 0.0
      %271 = vst.msk [vmem:[#allocation2 + $0x1a0] sm:$0xff] %vm257, 0.0
      %272 = vst.msk [vmem:[#allocation2 + $0x1c0] sm:$0xff] %vm257, 0.0
      %273 = vst.msk [vmem:[#allocation2 + $0x1e0] sm:$0xff] %vm257, 0.0
      %274 = vst.msk [vmem:[#allocation2 + $0x200] sm:$0xff] %vm257, 0.0
      %275 = vst.msk [vmem:[#allocation2 + $0x220] sm:$0xff] %vm257, 0.0
      %276 = vst.msk [vmem:[#allocation2 + $0x18] sm:$0xff] %vm257, 0.0
      %277 = vst.msk [vmem:[#allocation2 + $0x38] sm:$0xff] %vm257, 0.0
      %278 = vst.msk [vmem:[#allocation2 + $0x58] sm:$0xff] %vm257, 0.0
      %279 = vst.msk [vmem:[#allocation2 + $0x78] sm:$0xff] %vm257, 0.0
      %280 = vst.msk [vmem:[#allocation2 + $0x98] sm:$0xff] %vm257, 0.0
      %281 = vst.msk [vmem:[#allocation2 + $0xb8] sm:$0xff] %vm257, 0.0
      %282 = vst.msk [vmem:[#allocation2 + $0xd8] sm:$0xff] %vm257, 0.0
      %283 = vst.msk [vmem:[#allocation2 + $0xf8] sm:$0xff] %vm257, 0.0
      %284 = vst.msk [vmem:[#allocation2 + $0x118] sm:$0xff] %vm257, 0.0
      %285 = vst.msk [vmem:[#allocation2 + $0x138] sm:$0xff] %vm257, 0.0
      %286 = vst.msk [vmem:[#allocation2 + $0x158] sm:$0xff] %vm257, 0.0
      %287 = vst.msk [vmem:[#allocation2 + $0x178] sm:$0xff] %vm257, 0.0
      %288 = vst.msk [vmem:[#allocation2 + $0x198] sm:$0xff] %vm257, 0.0
      %289 = vst.msk [vmem:[#allocation2 + $0x1b8] sm:$0xff] %vm257, 0.0
      %290 = vst.msk [vmem:[#allocation2 + $0x1d8] sm:$0xff] %vm257, 0.0
      %291 = vst.msk [vmem:[#allocation2 + $0x1f8] sm:$0xff] %vm257, 0.0
      %292 = vst.msk [vmem:[#allocation2 + $0x218] sm:$0xff] %vm257, 0.0
      %293 = vst.msk [vmem:[#allocation2 + $0x238] sm:$0xff] %vm257, 0.0
      %294 = vst.msk [vmem:[#allocation2 + $0x8] sm:$0xff] %vm257, 0.0
      %295 = vst.msk [vmem:[#allocation2 + $0x10] sm:$0xff] %vm257, 0.0
      %s296 = scalar_lea.vmem [#allocation2], 544
      %297 = vst.msk [vmem:[%s296 + $0x8] sm:$0xff] %vm257, 0.0
      %298 = vst.msk [vmem:[%s296 + $0x10] sm:$0xff] %vm257, 0.0
      %s299 = scalar_lea.vmem [#allocation2], 32
      %300 = vst.msk [vmem:[%s299 + $0x8] sm:$0xff] %vm257, %v225
      %301 = vst.msk [vmem:[%s299 + $0x10] sm:$0xff] %vm257, %v226
      %302 = vst.msk [vmem:[%s299 + $0x28] sm:$0xff] %vm257, %v227
      %303 = vst.msk [vmem:[%s299 + $0x30] sm:$0xff] %vm257, %v228
      %304 = vst.msk [vmem:[%s299 + $0x48] sm:$0xff] %vm257, %v229
      %305 = vst.msk [vmem:[%s299 + $0x50] sm:$0xff] %vm257, %v230
      %306 = vst.msk [vmem:[%s299 + $0x68] sm:$0xff] %vm257, %v231
      %307 = vst.msk [vmem:[%s299 + $0x70] sm:$0xff] %vm257, %v232
      %308 = vst.msk [vmem:[%s299 + $0x88] sm:$0xff] %vm257, %v233
      %309 = vst.msk [vmem:[%s299 + $0x90] sm:$0xff] %vm257, %v234
      %310 = vst.msk [vmem:[%s299 + $0xa8] sm:$0xff] %vm257, %v235
      %311 = vst.msk [vmem:[%s299 + $0xb0] sm:$0xff] %vm257, %v236
      %312 = vst.msk [vmem:[%s299 + $0xc8] sm:$0xff] %vm257, %v237
      %313 = vst.msk [vmem:[%s299 + $0xd0] sm:$0xff] %vm257, %v238
      %314 = vst.msk [vmem:[%s299 + $0xe8] sm:$0xff] %vm257, %v239
      %315 = vst.msk [vmem:[%s299 + $0xf0] sm:$0xff] %vm257, %v240
      %316 = vst.msk [vmem:[%s299 + $0x108] sm:$0xff] %vm257, %v241
      %317 = vst.msk [vmem:[%s299 + $0x110] sm:$0xff] %vm257, %v242
      %318 = vst.msk [vmem:[%s299 + $0x128] sm:$0xff] %vm257, %v243
      %319 = vst.msk [vmem:[%s299 + $0x130] sm:$0xff] %vm257, %v244
      %320 = vst.msk [vmem:[%s299 + $0x148] sm:$0xff] %vm257, %v245
      %321 = vst.msk [vmem:[%s299 + $0x150] sm:$0xff] %vm257, %v246
      %322 = vst.msk [vmem:[%s299 + $0x168] sm:$0xff] %vm257, %v247
      %323 = vst.msk [vmem:[%s299 + $0x170] sm:$0xff] %vm257, %v248
      %324 = vst.msk [vmem:[%s299 + $0x188] sm:$0xff] %vm257, %v249
      %325 = vst.msk [vmem:[%s299 + $0x190] sm:$0xff] %vm257, %v250
      %326 = vst.msk [vmem:[%s299 + $0x1a8] sm:$0xff] %vm257, %v251
      %327 = vst.msk [vmem:[%s299 + $0x1b0] sm:$0xff] %vm257, %v252
      %328 = vst.msk [vmem:[%s299 + $0x1c8] sm:$0xff] %vm257, %v253
      %329 = vst.msk [vmem:[%s299 + $0x1d0] sm:$0xff] %vm257, %v254
      %330 = vst.msk [vmem:[%s299 + $0x1e8] sm:$0xff] %vm257, %v255
      %331 = vst.msk [vmem:[%s299 + $0x1f0] sm:$0xff] %vm257, %v256
      %v332 = vld [vmem:[#allocation2] sm:$0xff]
      %v333 = vld [vmem:[#allocation2 + $0x8] sm:$0xff]
      %v334 = vld [vmem:[#allocation2 + $0x10] sm:$0xff]
      %v335 = vld [vmem:[#allocation2 + $0x18] sm:$0xff]
      %v336 = vld [vmem:[#allocation2 + $0x20] sm:$0xff]
      %v337 = vld [vmem:[#allocation2 + $0x28] sm:$0xff]
      %v338 = vld [vmem:[#allocation2 + $0x30] sm:$0xff]
      %v339 = vld [vmem:[#allocation2 + $0x38] sm:$0xff]
      %v340 = vld [vmem:[#allocation2 + $0x40] sm:$0xff]
      %v341 = vld [vmem:[#allocation2 + $0x48] sm:$0xff]
      %v342 = vld [vmem:[#allocation2 + $0x50] sm:$0xff]
      %v343 = vld [vmem:[#allocation2 + $0x58] sm:$0xff]
      %v344 = vld [vmem:[#allocation2 + $0x60] sm:$0xff]
      %v345 = vld [vmem:[#allocation2 + $0x68] sm:$0xff]
      %v346 = vld [vmem:[#allocation2 + $0x70] sm:$0xff]
      %v347 = vld [vmem:[#allocation2 + $0x78] sm:$0xff]
      %v348 = vld [vmem:[#allocation2 + $0x80] sm:$0xff]
      %v349 = vld [vmem:[#allocation2 + $0x88] sm:$0xff]
      %v350 = vld [vmem:[#allocation2 + $0x90] sm:$0xff]
      %v351 = vld [vmem:[#allocation2 + $0x98] sm:$0xff]
      %v352 = vld [vmem:[#allocation2 + $0xa0] sm:$0xff]
      %v353 = vld [vmem:[#allocation2 + $0xa8] sm:$0xff]
      %v354 = vld [vmem:[#allocation2 + $0xb0] sm:$0xff]
      %v355 = vld [vmem:[#allocation2 + $0xb8] sm:$0xff]
      %v356 = vld [vmem:[#allocation2 + $0xc0] sm:$0xff]
      %v357 = vld [vmem:[#allocation2 + $0xc8] sm:$0xff]
      %v358 = vld [vmem:[#allocation2 + $0xd0] sm:$0xff]
      %v359 = vld [vmem:[#allocation2 + $0xd8] sm:$0xff]
      %v360 = vld [vmem:[#allocation2 + $0xe0] sm:$0xff]
      %v361 = vld [vmem:[#allocation2 + $0xe8] sm:$0xff]
      %v362 = vld [vmem:[#allocation2 + $0xf0] sm:$0xff]
      %v363 = vld [vmem:[#allocation2 + $0xf8] sm:$0xff]
      %v364 = vld [vmem:[#allocation2 + $0x100] sm:$0xff]
      %v365 = vld [vmem:[#allocation2 + $0x108] sm:$0xff]
      %v366 = vld [vmem:[#allocation2 + $0x110] sm:$0xff]
      %v367 = vld [vmem:[#allocation2 + $0x118] sm:$0xff]
      %v368 = vld [vmem:[#allocation2 + $0x120] sm:$0xff]
      %v369 = vld [vmem:[#allocation2 + $0x128] sm:$0xff]
      %v370 = vld [vmem:[#allocation2 + $0x130] sm:$0xff]
      %v371 = vld [vmem:[#allocation2 + $0x138] sm:$0xff]
      %v372 = vld [vmem:[#allocation2 + $0x140] sm:$0xff]
      %v373 = vld [vmem:[#allocation2 + $0x148] sm:$0xff]
      %v374 = vld [vmem:[#allocation2 + $0x150] sm:$0xff]
      %v375 = vld [vmem:[#allocation2 + $0x158] sm:$0xff]
      %v376 = vld [vmem:[#allocation2 + $0x160] sm:$0xff]
      %v377 = vld [vmem:[#allocation2 + $0x168] sm:$0xff]
      %v378 = vld [vmem:[#allocation2 + $0x170] sm:$0xff]
      %v379 = vld [vmem:[#allocation2 + $0x178] sm:$0xff]
      %v380 = vld [vmem:[#allocation2 + $0x180] sm:$0xff]
      %v381 = vld [vmem:[#allocation2 + $0x188] sm:$0xff]
      %v382 = vld [vmem:[#allocation2 + $0x190] sm:$0xff]
      %v383 = vld [vmem:[#allocation2 + $0x198] sm:$0xff]
      %v384 = vld [vmem:[#allocation2 + $0x1a0] sm:$0xff]
      %v385 = vld [vmem:[#allocation2 + $0x1a8] sm:$0xff]
      %v386 = vld [vmem:[#allocation2 + $0x1b0] sm:$0xff]
      %v387 = vld [vmem:[#allocation2 + $0x1b8] sm:$0xff]
      %v388 = vld [vmem:[#allocation2 + $0x1c0] sm:$0xff]
      %v389 = vld [vmem:[#allocation2 + $0x1c8] sm:$0xff]
      %v390 = vld [vmem:[#allocation2 + $0x1d0] sm:$0xff]
      %v391 = vld [vmem:[#allocation2 + $0x1d8] sm:$0xff]
      %v392 = vld [vmem:[#allocation2 + $0x1e0] sm:$0xff]
      %v393 = vld [vmem:[#allocation2 + $0x1e8] sm:$0xff]
      %v394 = vld [vmem:[#allocation2 + $0x1f0] sm:$0xff]
      %v395 = vld [vmem:[#allocation2 + $0x1f8] sm:$0xff]
      %v396 = vld [vmem:[#allocation2 + $0x200] sm:$0xff]
      %v397 = vld [vmem:[#allocation2 + $0x208] sm:$0xff]
      %v398 = vld [vmem:[#allocation2 + $0x210] sm:$0xff]
      %v399 = vld [vmem:[#allocation2 + $0x218] sm:$0xff]
      %v400 = vld [vmem:[#allocation2 + $0x220] sm:$0xff]
      %v401 = vld [vmem:[#allocation2 + $0x228] sm:$0xff]
      %v402 = vld [vmem:[#allocation2 + $0x230] sm:$0xff]
      %v403 = vld [vmem:[#allocation2 + $0x238] sm:$0xff]
      %vm436 = vcmask 1046528
      %v437 = vrot.slane %v333, 1
      %v438 = vrot.slane %v334, 1
      %v439 = vsel %vm436, %v437, %v438
      %v440 = vrot.slane %v337, 1
      %v441 = vrot.slane %v338, 1
      %v442 = vsel %vm436, %v440, %v441
      %v443 = vrot.slane %v341, 1
      %v444 = vrot.slane %v342, 1
      %v445 = vsel %vm436, %v443, %v444
      %v446 = vrot.slane %v345, 1
      %v447 = vrot.slane %v346, 1
      %v448 = vsel %vm436, %v446, %v447
      %v449 = vrot.slane %v349, 1
      %v450 = vrot.slane %v350, 1
      %v451 = vsel %vm436, %v449, %v450
      %v452 = vrot.slane %v353, 1
      %v453 = vrot.slane %v354, 1
      %v454 = vsel %vm436, %v452, %v453
      %v455 = vrot.slane %v357, 1
      %v456 = vrot.slane %v358, 1
      %v457 = vsel %vm436, %v455, %v456
      %v458 = vrot.slane %v361, 1
      %v459 = vrot.slane %v362, 1
      %v460 = vsel %vm436, %v458, %v459
      %v461 = vrot.slane %v365, 1
      %v462 = vrot.slane %v366, 1
      %v463 = vsel %vm436, %v461, %v462
      %v464 = vrot.slane %v369, 1
      %v465 = vrot.slane %v370, 1
      %v466 = vsel %vm436, %v464, %v465
      %v467 = vrot.slane %v373, 1
      %v468 = vrot.slane %v374, 1
      %v469 = vsel %vm436, %v467, %v468
      %v470 = vrot.slane %v377, 1
      %v471 = vrot.slane %v378, 1
      %v472 = vsel %vm436, %v470, %v471
      %v473 = vrot.slane %v381, 1
      %v474 = vrot.slane %v382, 1
      %v475 = vsel %vm436, %v473, %v474
      %v476 = vrot.slane %v385, 1
      %v477 = vrot.slane %v386, 1
      %v478 = vsel %vm436, %v476, %v477
      %v479 = vrot.slane %v389, 1
      %v480 = vrot.slane %v390, 1
      %v481 = vsel %vm436, %v479, %v480
      %v482 = vrot.slane %v393, 1
      %v483 = vrot.slane %v394, 1
      %v484 = vsel %vm436, %v482, %v483
      %485 = vrot.lane.b32.xlu0 %v437, 4
      %v486 = vpop.permute.xlu0 %485
      %487 = vrot.lane.b32.xlu0 %v439, 4
      %v488 = vpop.permute.xlu0 %487
      %489 = vrot.lane.b32.xlu0 %v438, 4
      %v490 = vpop.permute.xlu0 %489
      %491 = vrot.lane.b32.xlu0 %v440, 4
      %v492 = vpop.permute.xlu0 %491
      %493 = vrot.lane.b32.xlu0 %v442, 4
      %v494 = vpop.permute.xlu0 %493
      %495 = vrot.lane.b32.xlu0 %v441, 4
      %v496 = vpop.permute.xlu0 %495
      %497 = vrot.lane.b32.xlu0 %v443, 4
      %v498 = vpop.permute.xlu0 %497
      %499 = vrot.lane.b32.xlu0 %v445, 4
      %v500 = vpop.permute.xlu0 %499
      %501 = vrot.lane.b32.xlu0 %v444, 4
      %v502 = vpop.permute.xlu0 %501
      %503 = vrot.lane.b32.xlu0 %v446, 4
      %v504 = vpop.permute.xlu0 %503
      %505 = vrot.lane.b32.xlu0 %v448, 4
      %v506 = vpop.permute.xlu0 %505
      %507 = vrot.lane.b32.xlu0 %v447, 4
      %v508 = vpop.permute.xlu0 %507
      %509 = vrot.lane.b32.xlu0 %v449, 4
      %v510 = vpop.permute.xlu0 %509
      %511 = vrot.lane.b32.xlu0 %v451, 4
      %v512 = vpop.permute.xlu0 %511
      %513 = vrot.lane.b32.xlu0 %v450, 4
      %v514 = vpop.permute.xlu0 %513
      %515 = vrot.lane.b32.xlu0 %v452, 4
      %v516 = vpop.permute.xlu0 %515
      %517 = vrot.lane.b32.xlu0 %v454, 4
      %v518 = vpop.permute.xlu0 %517
      %519 = vrot.lane.b32.xlu0 %v453, 4
      %v520 = vpop.permute.xlu0 %519
      %521 = vrot.lane.b32.xlu0 %v455, 4
      %v522 = vpop.permute.xlu0 %521
      %523 = vrot.lane.b32.xlu0 %v457, 4
      %v524 = vpop.permute.xlu0 %523
      %525 = vrot.lane.b32.xlu0 %v456, 4
      %v526 = vpop.permute.xlu0 %525
      %527 = vrot.lane.b32.xlu0 %v458, 4
      %v528 = vpop.permute.xlu0 %527
      %529 = vrot.lane.b32.xlu0 %v460, 4
      %v530 = vpop.permute.xlu0 %529
      %531 = vrot.lane.b32.xlu0 %v459, 4
      %v532 = vpop.permute.xlu0 %531
      %533 = vrot.lane.b32.xlu0 %v461, 4
      %v534 = vpop.permute.xlu0 %533
      %535 = vrot.lane.b32.xlu0 %v463, 4
      %v536 = vpop.permute.xlu0 %535
      %537 = vrot.lane.b32.xlu0 %v462, 4
      %v538 = vpop.permute.xlu0 %537
      %539 = vrot.lane.b32.xlu0 %v464, 4
      %v540 = vpop.permute.xlu0 %539
      %541 = vrot.lane.b32.xlu0 %v466, 4
      %v542 = vpop.permute.xlu0 %541
      %543 = vrot.lane.b32.xlu0 %v465, 4
      %v544 = vpop.permute.xlu0 %543
      %545 = vrot.lane.b32.xlu0 %v467, 4
      %v546 = vpop.permute.xlu0 %545
      %547 = vrot.lane.b32.xlu0 %v469, 4
      %v548 = vpop.permute.xlu0 %547
      %549 = vrot.lane.b32.xlu0 %v468, 4
      %v550 = vpop.permute.xlu0 %549
      %551 = vrot.lane.b32.xlu0 %v470, 4
      %v552 = vpop.permute.xlu0 %551
      %553 = vrot.lane.b32.xlu0 %v472, 4
      %v554 = vpop.permute.xlu0 %553
      %555 = vrot.lane.b32.xlu0 %v471, 4
      %v556 = vpop.permute.xlu0 %555
      %557 = vrot.lane.b32.xlu0 %v473, 4
      %v558 = vpop.permute.xlu0 %557
      %559 = vrot.lane.b32.xlu0 %v475, 4
      %v560 = vpop.permute.xlu0 %559
      %561 = vrot.lane.b32.xlu0 %v474, 4
      %v562 = vpop.permute.xlu0 %561
      %563 = vrot.lane.b32.xlu0 %v476, 4
      %v564 = vpop.permute.xlu0 %563
      %565 = vrot.lane.b32.xlu0 %v478, 4
      %v566 = vpop.permute.xlu0 %565
      %567 = vrot.lane.b32.xlu0 %v477, 4
      %v568 = vpop.permute.xlu0 %567
      %569 = vrot.lane.b32.xlu0 %v479, 4
      %v570 = vpop.permute.xlu0 %569
      %571 = vrot.lane.b32.xlu0 %v481, 4
      %v572 = vpop.permute.xlu0 %571
      %573 = vrot.lane.b32.xlu0 %v480, 4
      %v574 = vpop.permute.xlu0 %573
      %575 = vrot.lane.b32.xlu0 %v482, 4
      %v576 = vpop.permute.xlu0 %575
      %577 = vrot.lane.b32.xlu0 %v484, 4
      %v578 = vpop.permute.xlu0 %577
      %579 = vrot.lane.b32.xlu0 %v483, 4
      %v580 = vpop.permute.xlu0 %579
      %vm645 = vcmask 1045504
      %v646 = vrot.slane %v333, 2
      %v647 = vrot.slane %v334, 2
      %v648 = vsel %vm645, %v646, %v647
      %v649 = vrot.slane %v335, 2
      %v650 = vsel %vm645, %v647, %v649
      %v651 = vrot.slane %v337, 2
      %v652 = vrot.slane %v338, 2
      %v653 = vsel %vm645, %v651, %v652
      %v654 = vrot.slane %v339, 2
      %v655 = vsel %vm645, %v652, %v654
      %v656 = vrot.slane %v341, 2
      %v657 = vrot.slane %v342, 2
      %v658 = vsel %vm645, %v656, %v657
      %v659 = vrot.slane %v343, 2
      %v660 = vsel %vm645, %v657, %v659
      %v661 = vrot.slane %v345, 2
      %v662 = vrot.slane %v346, 2
      %v663 = vsel %vm645, %v661, %v662
      %v664 = vrot.slane %v347, 2
      %v665 = vsel %vm645, %v662, %v664
      %v666 = vrot.slane %v349, 2
      %v667 = vrot.slane %v350, 2
      %v668 = vsel %vm645, %v666, %v667
      %v669 = vrot.slane %v351, 2
      %v670 = vsel %vm645, %v667, %v669
      %v671 = vrot.slane %v353, 2
      %v672 = vrot.slane %v354, 2
      %v673 = vsel %vm645, %v671, %v672
      %v674 = vrot.slane %v355, 2
      %v675 = vsel %vm645, %v672, %v674
      %v676 = vrot.slane %v357, 2
      %v677 = vrot.slane %v358, 2
      %v678 = vsel %vm645, %v676, %v677
      %v679 = vrot.slane %v359, 2
      %v680 = vsel %vm645, %v677, %v679
      %v681 = vrot.slane %v361, 2
      %v682 = vrot.slane %v362, 2
      %v683 = vsel %vm645, %v681, %v682
      %v684 = vrot.slane %v363, 2
      %v685 = vsel %vm645, %v682, %v684
      %v686 = vrot.slane %v365, 2
      %v687 = vrot.slane %v366, 2
      %v688 = vsel %vm645, %v686, %v687
      %v689 = vrot.slane %v367, 2
      %v690 = vsel %vm645, %v687, %v689
      %v691 = vrot.slane %v369, 2
      %v692 = vrot.slane %v370, 2
      %v693 = vsel %vm645, %v691, %v692
      %v694 = vrot.slane %v371, 2
      %v695 = vsel %vm645, %v692, %v694
      %v696 = vrot.slane %v373, 2
      %v697 = vrot.slane %v374, 2
      %v698 = vsel %vm645, %v696, %v697
      %v699 = vrot.slane %v375, 2
      %v700 = vsel %vm645, %v697, %v699
      %v701 = vrot.slane %v377, 2
      %v702 = vrot.slane %v378, 2
      %v703 = vsel %vm645, %v701, %v702
      %v704 = vrot.slane %v379, 2
      %v705 = vsel %vm645, %v702, %v704
      %v706 = vrot.slane %v381, 2
      %v707 = vrot.slane %v382, 2
      %v708 = vsel %vm645, %v706, %v707
      %v709 = vrot.slane %v383, 2
      %v710 = vsel %vm645, %v707, %v709
      %v711 = vrot.slane %v385, 2
      %v712 = vrot.slane %v386, 2
      %v713 = vsel %vm645, %v711, %v712
      %v714 = vrot.slane %v387, 2
      %v715 = vsel %vm645, %v712, %v714
      %v716 = vrot.slane %v389, 2
      %v717 = vrot.slane %v390, 2
      %v718 = vsel %vm645, %v716, %v717
      %v719 = vrot.slane %v391, 2
      %v720 = vsel %vm645, %v717, %v719
      %v721 = vrot.slane %v393, 2
      %v722 = vrot.slane %v394, 2
      %v723 = vsel %vm645, %v721, %v722
      %v724 = vrot.slane %v395, 2
      %v725 = vsel %vm645, %v722, %v724
      %726 = vrot.lane.b32.xlu0 %v646, 8
      %v727 = vpop.permute.xlu0 %726
      %728 = vrot.lane.b32.xlu0 %v648, 8
      %v729 = vpop.permute.xlu0 %728
      %730 = vrot.lane.b32.xlu0 %v650, 8
      %v731 = vpop.permute.xlu0 %730
      %732 = vrot.lane.b32.xlu0 %v651, 8
      %v733 = vpop.permute.xlu0 %732
      %734 = vrot.lane.b32.xlu0 %v653, 8
      %v735 = vpop.permute.xlu0 %734
      %736 = vrot.lane.b32.xlu0 %v655, 8
      %v737 = vpop.permute.xlu0 %736
      %738 = vrot.lane.b32.xlu0 %v656, 8
      %v739 = vpop.permute.xlu0 %738
      %740 = vrot.lane.b32.xlu0 %v658, 8
      %v741 = vpop.permute.xlu0 %740
      %742 = vrot.lane.b32.xlu0 %v660, 8
      %v743 = vpop.permute.xlu0 %742
      %744 = vrot.lane.b32.xlu0 %v661, 8
      %v745 = vpop.permute.xlu0 %744
      %746 = vrot.lane.b32.xlu0 %v663, 8
      %v747 = vpop.permute.xlu0 %746
      %748 = vrot.lane.b32.xlu0 %v665, 8
      %v749 = vpop.permute.xlu0 %748
      %750 = vrot.lane.b32.xlu0 %v666, 8
      %v751 = vpop.permute.xlu0 %750
      %752 = vrot.lane.b32.xlu0 %v668, 8
      %v753 = vpop.permute.xlu0 %752
      %754 = vrot.lane.b32.xlu0 %v670, 8
      %v755 = vpop.permute.xlu0 %754
      %756 = vrot.lane.b32.xlu0 %v671, 8
      %v757 = vpop.permute.xlu0 %756
      %758 = vrot.lane.b32.xlu0 %v673, 8
      %v759 = vpop.permute.xlu0 %758
      %760 = vrot.lane.b32.xlu0 %v675, 8
      %v761 = vpop.permute.xlu0 %760
      %762 = vrot.lane.b32.xlu0 %v676, 8
      %v763 = vpop.permute.xlu0 %762
      %764 = vrot.lane.b32.xlu0 %v678, 8
      %v765 = vpop.permute.xlu0 %764
      %766 = vrot.lane.b32.xlu0 %v680, 8
      %v767 = vpop.permute.xlu0 %766
      %768 = vrot.lane.b32.xlu0 %v681, 8
      %v769 = vpop.permute.xlu0 %768
      %770 = vrot.lane.b32.xlu0 %v683, 8
      %v771 = vpop.permute.xlu0 %770
      %772 = vrot.lane.b32.xlu0 %v685, 8
      %v773 = vpop.permute.xlu0 %772
      %774 = vrot.lane.b32.xlu0 %v686, 8
      %v775 = vpop.permute.xlu0 %774
      %776 = vrot.lane.b32.xlu0 %v688, 8
      %v777 = vpop.permute.xlu0 %776
      %778 = vrot.lane.b32.xlu0 %v690, 8
      %v779 = vpop.permute.xlu0 %778
      %780 = vrot.lane.b32.xlu0 %v691, 8
      %v781 = vpop.permute.xlu0 %780
      %782 = vrot.lane.b32.xlu0 %v693, 8
      %v783 = vpop.permute.xlu0 %782
      %784 = vrot.lane.b32.xlu0 %v695, 8
      %v785 = vpop.permute.xlu0 %784
      %786 = vrot.lane.b32.xlu0 %v696, 8
      %v787 = vpop.permute.xlu0 %786
      %788 = vrot.lane.b32.xlu0 %v698, 8
      %v789 = vpop.permute.xlu0 %788
      %790 = vrot.lane.b32.xlu0 %v700, 8
      %v791 = vpop.permute.xlu0 %790
      %792 = vrot.lane.b32.xlu0 %v701, 8
      %v793 = vpop.permute.xlu0 %792
      %794 = vrot.lane.b32.xlu0 %v703, 8
      %v795 = vpop.permute.xlu0 %794
      %796 = vrot.lane.b32.xlu0 %v705, 8
      %v797 = vpop.permute.xlu0 %796
      %798 = vrot.lane.b32.xlu0 %v706, 8
      %v799 = vpop.permute.xlu0 %798
      %800 = vrot.lane.b32.xlu0 %v708, 8
      %v801 = vpop.permute.xlu0 %800
      %802 = vrot.lane.b32.xlu0 %v710, 8
      %v803 = vpop.permute.xlu0 %802
      %804 = vrot.lane.b32.xlu0 %v711, 8
      %v805 = vpop.permute.xlu0 %804
      %806 = vrot.lane.b32.xlu0 %v713, 8
      %v807 = vpop.permute.xlu0 %806
      %808 = vrot.lane.b32.xlu0 %v715, 8
      %v809 = vpop.permute.xlu0 %808
      %810 = vrot.lane.b32.xlu0 %v716, 8
      %v811 = vpop.permute.xlu0 %810
      %812 = vrot.lane.b32.xlu0 %v718, 8
      %v813 = vpop.permute.xlu0 %812
      %814 = vrot.lane.b32.xlu0 %v720, 8
      %v815 = vpop.permute.xlu0 %814
      %816 = vrot.lane.b32.xlu0 %v721, 8
      %v817 = vpop.permute.xlu0 %816
      %818 = vrot.lane.b32.xlu0 %v723, 8
      %v819 = vpop.permute.xlu0 %818
      %820 = vrot.lane.b32.xlu0 %v725, 8
      %v821 = vpop.permute.xlu0 %820
      %888 = vrot.lane.b32.xlu0 %v336, 12
      %v889 = vpop.permute.xlu0 %888
      %890 = vrot.lane.b32.xlu0 %v337, 12
      %v891 = vpop.permute.xlu0 %890
      %892 = vrot.lane.b32.xlu0 %v338, 12
      %v893 = vpop.permute.xlu0 %892
      %894 = vrot.lane.b32.xlu0 %v340, 12
      %v895 = vpop.permute.xlu0 %894
      %896 = vrot.lane.b32.xlu0 %v341, 12
      %v897 = vpop.permute.xlu0 %896
      %898 = vrot.lane.b32.xlu0 %v342, 12
      %v899 = vpop.permute.xlu0 %898
      %900 = vrot.lane.b32.xlu0 %v344, 12
      %v901 = vpop.permute.xlu0 %900
      %902 = vrot.lane.b32.xlu0 %v345, 12
      %v903 = vpop.permute.xlu0 %902
      %904 = vrot.lane.b32.xlu0 %v346, 12
      %v905 = vpop.permute.xlu0 %904
      %906 = vrot.lane.b32.xlu0 %v348, 12
      %v907 = vpop.permute.xlu0 %906
      %908 = vrot.lane.b32.xlu0 %v349, 12
      %v909 = vpop.permute.xlu0 %908
      %910 = vrot.lane.b32.xlu0 %v350, 12
      %v911 = vpop.permute.xlu0 %910
      %912 = vrot.lane.b32.xlu0 %v352, 12
      %v913 = vpop.permute.xlu0 %912
      %914 = vrot.lane.b32.xlu0 %v353, 12
      %v915 = vpop.permute.xlu0 %914
      %916 = vrot.lane.b32.xlu0 %v354, 12
      %v917 = vpop.permute.xlu0 %916
      %918 = vrot.lane.b32.xlu0 %v356, 12
      %v919 = vpop.permute.xlu0 %918
      %920 = vrot.lane.b32.xlu0 %v357, 12
      %v921 = vpop.permute.xlu0 %920
      %922 = vrot.lane.b32.xlu0 %v358, 12
      %v923 = vpop.permute.xlu0 %922
      %924 = vrot.lane.b32.xlu0 %v360, 12
      %v925 = vpop.permute.xlu0 %924
      %926 = vrot.lane.b32.xlu0 %v361, 12
      %v927 = vpop.permute.xlu0 %926
      %928 = vrot.lane.b32.xlu0 %v362, 12
      %v929 = vpop.permute.xlu0 %928
      %930 = vrot.lane.b32.xlu0 %v364, 12
      %v931 = vpop.permute.xlu0 %930
      %932 = vrot.lane.b32.xlu0 %v365, 12
      %v933 = vpop.permute.xlu0 %932
      %934 = vrot.lane.b32.xlu0 %v366, 12
      %v935 = vpop.permute.xlu0 %934
      %936 = vrot.lane.b32.xlu0 %v368, 12
      %v937 = vpop.permute.xlu0 %936
      %938 = vrot.lane.b32.xlu0 %v369, 12
      %v939 = vpop.permute.xlu0 %938
      %940 = vrot.lane.b32.xlu0 %v370, 12
      %v941 = vpop.permute.xlu0 %940
      %942 = vrot.lane.b32.xlu0 %v372, 12
      %v943 = vpop.permute.xlu0 %942
      %944 = vrot.lane.b32.xlu0 %v373, 12
      %v945 = vpop.permute.xlu0 %944
      %946 = vrot.lane.b32.xlu0 %v374, 12
      %v947 = vpop.permute.xlu0 %946
      %948 = vrot.lane.b32.xlu0 %v376, 12
      %v949 = vpop.permute.xlu0 %948
      %950 = vrot.lane.b32.xlu0 %v377, 12
      %v951 = vpop.permute.xlu0 %950
      %952 = vrot.lane.b32.xlu0 %v378, 12
      %v953 = vpop.permute.xlu0 %952
      %954 = vrot.lane.b32.xlu0 %v380, 12
      %v955 = vpop.permute.xlu0 %954
      %956 = vrot.lane.b32.xlu0 %v381, 12
      %v957 = vpop.permute.xlu0 %956
      %958 = vrot.lane.b32.xlu0 %v382, 12
      %v959 = vpop.permute.xlu0 %958
      %960 = vrot.lane.b32.xlu0 %v384, 12
      %v961 = vpop.permute.xlu0 %960
      %962 = vrot.lane.b32.xlu0 %v385, 12
      %v963 = vpop.permute.xlu0 %962
      %964 = vrot.lane.b32.xlu0 %v386, 12
      %v965 = vpop.permute.xlu0 %964
      %966 = vrot.lane.b32.xlu0 %v388, 12
      %v967 = vpop.permute.xlu0 %966
      %968 = vrot.lane.b32.xlu0 %v389, 12
      %v969 = vpop.permute.xlu0 %968
      %970 = vrot.lane.b32.xlu0 %v390, 12
      %v971 = vpop.permute.xlu0 %970
      %972 = vrot.lane.b32.xlu0 %v392, 12
      %v973 = vpop.permute.xlu0 %972
      %974 = vrot.lane.b32.xlu0 %v393, 12
      %v975 = vpop.permute.xlu0 %974
      %976 = vrot.lane.b32.xlu0 %v394, 12
      %v977 = vpop.permute.xlu0 %976
      %978 = vrot.lane.b32.xlu0 %v396, 12
      %v979 = vpop.permute.xlu0 %978
      %980 = vrot.lane.b32.xlu0 %v397, 12
      %v981 = vpop.permute.xlu0 %980
      %982 = vrot.lane.b32.xlu0 %v398, 12
      %v983 = vpop.permute.xlu0 %982
      %v1032 = vrot.slane %v397, 1
      %v1033 = vrot.slane %v398, 1
      %v1034 = vsel %vm436, %v1032, %v1033
      %1035 = vrot.lane.b32.xlu0 %v440, 16
      %v1036 = vpop.permute.xlu0 %1035
      %1037 = vrot.lane.b32.xlu0 %v442, 16
      %v1038 = vpop.permute.xlu0 %1037
      %1039 = vrot.lane.b32.xlu0 %v441, 16
      %v1040 = vpop.permute.xlu0 %1039
      %1041 = vrot.lane.b32.xlu0 %v443, 16
      %v1042 = vpop.permute.xlu0 %1041
      %1043 = vrot.lane.b32.xlu0 %v445, 16
      %v1044 = vpop.permute.xlu0 %1043
      %1045 = vrot.lane.b32.xlu0 %v444, 16
      %v1046 = vpop.permute.xlu0 %1045
      %1047 = vrot.lane.b32.xlu0 %v446, 16
      %v1048 = vpop.permute.xlu0 %1047
      %1049 = vrot.lane.b32.xlu0 %v448, 16
      %v1050 = vpop.permute.xlu0 %1049
      %1051 = vrot.lane.b32.xlu0 %v447, 16
      %v1052 = vpop.permute.xlu0 %1051
      %1053 = vrot.lane.b32.xlu0 %v449, 16
      %v1054 = vpop.permute.xlu0 %1053
      %1055 = vrot.lane.b32.xlu0 %v451, 16
      %v1056 = vpop.permute.xlu0 %1055
      %1057 = vrot.lane.b32.xlu0 %v450, 16
      %v1058 = vpop.permute.xlu0 %1057
      %1059 = vrot.lane.b32.xlu0 %v452, 16
      %v1060 = vpop.permute.xlu0 %1059
      %1061 = vrot.lane.b32.xlu0 %v454, 16
      %v1062 = vpop.permute.xlu0 %1061
      %1063 = vrot.lane.b32.xlu0 %v453, 16
      %v1064 = vpop.permute.xlu0 %1063
      %1065 = vrot.lane.b32.xlu0 %v455, 16
      %v1066 = vpop.permute.xlu0 %1065
      %1067 = vrot.lane.b32.xlu0 %v457, 16
      %v1068 = vpop.permute.xlu0 %1067
      %1069 = vrot.lane.b32.xlu0 %v456, 16
      %v1070 = vpop.permute.xlu0 %1069
      %1071 = vrot.lane.b32.xlu0 %v458, 16
      %v1072 = vpop.permute.xlu0 %1071
      %1073 = vrot.lane.b32.xlu0 %v460, 16
      %v1074 = vpop.permute.xlu0 %1073
      %1075 = vrot.lane.b32.xlu0 %v459, 16
      %v1076 = vpop.permute.xlu0 %1075
      %1077 = vrot.lane.b32.xlu0 %v461, 16
      %v1078 = vpop.permute.xlu0 %1077
      %1079 = vrot.lane.b32.xlu0 %v463, 16
      %v1080 = vpop.permute.xlu0 %1079
      %1081 = vrot.lane.b32.xlu0 %v462, 16
      %v1082 = vpop.permute.xlu0 %1081
      %1083 = vrot.lane.b32.xlu0 %v464, 16
      %v1084 = vpop.permute.xlu0 %1083
      %1085 = vrot.lane.b32.xlu0 %v466, 16
      %v1086 = vpop.permute.xlu0 %1085
      %1087 = vrot.lane.b32.xlu0 %v465, 16
      %v1088 = vpop.permute.xlu0 %1087
      %1089 = vrot.lane.b32.xlu0 %v467, 16
      %v1090 = vpop.permute.xlu0 %1089
      %1091 = vrot.lane.b32.xlu0 %v469, 16
      %v1092 = vpop.permute.xlu0 %1091
      %1093 = vrot.lane.b32.xlu0 %v468, 16
      %v1094 = vpop.permute.xlu0 %1093
      %1095 = vrot.lane.b32.xlu0 %v470, 16
      %v1096 = vpop.permute.xlu0 %1095
      %1097 = vrot.lane.b32.xlu0 %v472, 16
      %v1098 = vpop.permute.xlu0 %1097
      %1099 = vrot.lane.b32.xlu0 %v471, 16
      %v1100 = vpop.permute.xlu0 %1099
      %1101 = vrot.lane.b32.xlu0 %v473, 16
      %v1102 = vpop.permute.xlu0 %1101
      %1103 = vrot.lane.b32.xlu0 %v475, 16
      %v1104 = vpop.permute.xlu0 %1103
      %1105 = vrot.lane.b32.xlu0 %v474, 16
      %v1106 = vpop.permute.xlu0 %1105
      %1107 = vrot.lane.b32.xlu0 %v476, 16
      %v1108 = vpop.permute.xlu0 %1107
      %1109 = vrot.lane.b32.xlu0 %v478, 16
      %v1110 = vpop.permute.xlu0 %1109
      %1111 = vrot.lane.b32.xlu0 %v477, 16
      %v1112 = vpop.permute.xlu0 %1111
      %1113 = vrot.lane.b32.xlu0 %v479, 16
      %v1114 = vpop.permute.xlu0 %1113
      %1115 = vrot.lane.b32.xlu0 %v481, 16
      %v1116 = vpop.permute.xlu0 %1115
      %1117 = vrot.lane.b32.xlu0 %v480, 16
      %v1118 = vpop.permute.xlu0 %1117
      %1119 = vrot.lane.b32.xlu0 %v482, 16
      %v1120 = vpop.permute.xlu0 %1119
      %1121 = vrot.lane.b32.xlu0 %v484, 16
      %v1122 = vpop.permute.xlu0 %1121
      %1123 = vrot.lane.b32.xlu0 %v483, 16
      %v1124 = vpop.permute.xlu0 %1123
      %1125 = vrot.lane.b32.xlu0 %v1032, 16
      %v1126 = vpop.permute.xlu0 %1125
      %1127 = vrot.lane.b32.xlu0 %v1034, 16
      %v1128 = vpop.permute.xlu0 %1127
      %1129 = vrot.lane.b32.xlu0 %v1033, 16
      %v1130 = vpop.permute.xlu0 %1129
      %v1180 = vrot.slane %v397, 2
      %v1181 = vrot.slane %v398, 2
      %v1182 = vsel %vm645, %v1180, %v1181
      %v1183 = vrot.slane %v399, 2
      %v1184 = vsel %vm645, %v1181, %v1183
      %1185 = vrot.lane.b32.xlu0 %v651, 20
      %v1186 = vpop.permute.xlu0 %1185
      %1187 = vrot.lane.b32.xlu0 %v653, 20
      %v1188 = vpop.permute.xlu0 %1187
      %1189 = vrot.lane.b32.xlu0 %v655, 20
      %v1190 = vpop.permute.xlu0 %1189
      %1191 = vrot.lane.b32.xlu0 %v656, 20
      %v1192 = vpop.permute.xlu0 %1191
      %1193 = vrot.lane.b32.xlu0 %v658, 20
      %v1194 = vpop.permute.xlu0 %1193
      %1195 = vrot.lane.b32.xlu0 %v660, 20
      %v1196 = vpop.permute.xlu0 %1195
      %1197 = vrot.lane.b32.xlu0 %v661, 20
      %v1198 = vpop.permute.xlu0 %1197
      %1199 = vrot.lane.b32.xlu0 %v663, 20
      %v1200 = vpop.permute.xlu0 %1199
      %1201 = vrot.lane.b32.xlu0 %v665, 20
      %v1202 = vpop.permute.xlu0 %1201
      %1203 = vrot.lane.b32.xlu0 %v666, 20
      %v1204 = vpop.permute.xlu0 %1203
      %1205 = vrot.lane.b32.xlu0 %v668, 20
      %v1206 = vpop.permute.xlu0 %1205
      %1207 = vrot.lane.b32.xlu0 %v670, 20
      %v1208 = vpop.permute.xlu0 %1207
      %1209 = vrot.lane.b32.xlu0 %v671, 20
      %v1210 = vpop.permute.xlu0 %1209
      %1211 = vrot.lane.b32.xlu0 %v673, 20
      %v1212 = vpop.permute.xlu0 %1211
      %1213 = vrot.lane.b32.xlu0 %v675, 20
      %v1214 = vpop.permute.xlu0 %1213
      %1215 = vrot.lane.b32.xlu0 %v676, 20
      %v1216 = vpop.permute.xlu0 %1215
      %1217 = vrot.lane.b32.xlu0 %v678, 20
      %v1218 = vpop.permute.xlu0 %1217
      %1219 = vrot.lane.b32.xlu0 %v680, 20
      %v1220 = vpop.permute.xlu0 %1219
      %1221 = vrot.lane.b32.xlu0 %v681, 20
      %v1222 = vpop.permute.xlu0 %1221
      %1223 = vrot.lane.b32.xlu0 %v683, 20
      %v1224 = vpop.permute.xlu0 %1223
      %1225 = vrot.lane.b32.xlu0 %v685, 20
      %v1226 = vpop.permute.xlu0 %1225
      %1227 = vrot.lane.b32.xlu0 %v686, 20
      %v1228 = vpop.permute.xlu0 %1227
      %1229 = vrot.lane.b32.xlu0 %v688, 20
      %v1230 = vpop.permute.xlu0 %1229
      %1231 = vrot.lane.b32.xlu0 %v690, 20
      %v1232 = vpop.permute.xlu0 %1231
      %1233 = vrot.lane.b32.xlu0 %v691, 20
      %v1234 = vpop.permute.xlu0 %1233
      %1235 = vrot.lane.b32.xlu0 %v693, 20
      %v1236 = vpop.permute.xlu0 %1235
      %1237 = vrot.lane.b32.xlu0 %v695, 20
      %v1238 = vpop.permute.xlu0 %1237
      %1239 = vrot.lane.b32.xlu0 %v696, 20
      %v1240 = vpop.permute.xlu0 %1239
      %1241 = vrot.lane.b32.xlu0 %v698, 20
      %v1242 = vpop.permute.xlu0 %1241
      %1243 = vrot.lane.b32.xlu0 %v700, 20
      %v1244 = vpop.permute.xlu0 %1243
      %1245 = vrot.lane.b32.xlu0 %v701, 20
      %v1246 = vpop.permute.xlu0 %1245
      %1247 = vrot.lane.b32.xlu0 %v703, 20
      %v1248 = vpop.permute.xlu0 %1247
      %1249 = vrot.lane.b32.xlu0 %v705, 20
      %v1250 = vpop.permute.xlu0 %1249
      %1251 = vrot.lane.b32.xlu0 %v706, 20
      %v1252 = vpop.permute.xlu0 %1251
      %1253 = vrot.lane.b32.xlu0 %v708, 20
      %v1254 = vpop.permute.xlu0 %1253
      %1255 = vrot.lane.b32.xlu0 %v710, 20
      %v1256 = vpop.permute.xlu0 %1255
      %1257 = vrot.lane.b32.xlu0 %v711, 20
      %v1258 = vpop.permute.xlu0 %1257
      %1259 = vrot.lane.b32.xlu0 %v713, 20
      %v1260 = vpop.permute.xlu0 %1259
      %1261 = vrot.lane.b32.xlu0 %v715, 20
      %v1262 = vpop.permute.xlu0 %1261
      %1263 = vrot.lane.b32.xlu0 %v716, 20
      %v1264 = vpop.permute.xlu0 %1263
      %1265 = vrot.lane.b32.xlu0 %v718, 20
      %v1266 = vpop.permute.xlu0 %1265
      %1267 = vrot.lane.b32.xlu0 %v720, 20
      %v1268 = vpop.permute.xlu0 %1267
      %1269 = vrot.lane.b32.xlu0 %v721, 20
      %v1270 = vpop.permute.xlu0 %1269
      %1271 = vrot.lane.b32.xlu0 %v723, 20
      %v1272 = vpop.permute.xlu0 %1271
      %1273 = vrot.lane.b32.xlu0 %v725, 20
      %v1274 = vpop.permute.xlu0 %1273
      %1275 = vrot.lane.b32.xlu0 %v1180, 20
      %v1276 = vpop.permute.xlu0 %1275
      %1277 = vrot.lane.b32.xlu0 %v1182, 20
      %v1278 = vpop.permute.xlu0 %1277
      %1279 = vrot.lane.b32.xlu0 %v1184, 20
      %v1280 = vpop.permute.xlu0 %1279
      %1332 = vrot.lane.b32.xlu0 %v340, 24
      %v1333 = vpop.permute.xlu0 %1332
      %1334 = vrot.lane.b32.xlu0 %v341, 24
      %v1335 = vpop.permute.xlu0 %1334
      %1336 = vrot.lane.b32.xlu0 %v342, 24
      %v1337 = vpop.permute.xlu0 %1336
      %1338 = vrot.lane.b32.xlu0 %v344, 24
      %v1339 = vpop.permute.xlu0 %1338
      %1340 = vrot.lane.b32.xlu0 %v345, 24
      %v1341 = vpop.permute.xlu0 %1340
      %1342 = vrot.lane.b32.xlu0 %v346, 24
      %v1343 = vpop.permute.xlu0 %1342
      %1344 = vrot.lane.b32.xlu0 %v348, 24
      %v1345 = vpop.permute.xlu0 %1344
      %1346 = vrot.lane.b32.xlu0 %v349, 24
      %v1347 = vpop.permute.xlu0 %1346
      %1348 = vrot.lane.b32.xlu0 %v350, 24
      %v1349 = vpop.permute.xlu0 %1348
      %1350 = vrot.lane.b32.xlu0 %v352, 24
      %v1351 = vpop.permute.xlu0 %1350
      %1352 = vrot.lane.b32.xlu0 %v353, 24
      %v1353 = vpop.permute.xlu0 %1352
      %1354 = vrot.lane.b32.xlu0 %v354, 24
      %v1355 = vpop.permute.xlu0 %1354
      %1356 = vrot.lane.b32.xlu0 %v356, 24
      %v1357 = vpop.permute.xlu0 %1356
      %1358 = vrot.lane.b32.xlu0 %v357, 24
      %v1359 = vpop.permute.xlu0 %1358
      %1360 = vrot.lane.b32.xlu0 %v358, 24
      %v1361 = vpop.permute.xlu0 %1360
      %1362 = vrot.lane.b32.xlu0 %v360, 24
      %v1363 = vpop.permute.xlu0 %1362
      %1364 = vrot.lane.b32.xlu0 %v361, 24
      %v1365 = vpop.permute.xlu0 %1364
      %1366 = vrot.lane.b32.xlu0 %v362, 24
      %v1367 = vpop.permute.xlu0 %1366
      %1368 = vrot.lane.b32.xlu0 %v364, 24
      %v1369 = vpop.permute.xlu0 %1368
      %1370 = vrot.lane.b32.xlu0 %v365, 24
      %v1371 = vpop.permute.xlu0 %1370
      %1372 = vrot.lane.b32.xlu0 %v366, 24
      %v1373 = vpop.permute.xlu0 %1372
      %1374 = vrot.lane.b32.xlu0 %v368, 24
      %v1375 = vpop.permute.xlu0 %1374
      %1376 = vrot.lane.b32.xlu0 %v369, 24
      %v1377 = vpop.permute.xlu0 %1376
      %1378 = vrot.lane.b32.xlu0 %v370, 24
      %v1379 = vpop.permute.xlu0 %1378
      %1380 = vrot.lane.b32.xlu0 %v372, 24
      %v1381 = vpop.permute.xlu0 %1380
      %1382 = vrot.lane.b32.xlu0 %v373, 24
      %v1383 = vpop.permute.xlu0 %1382
      %1384 = vrot.lane.b32.xlu0 %v374, 24
      %v1385 = vpop.permute.xlu0 %1384
      %1386 = vrot.lane.b32.xlu0 %v376, 24
      %v1387 = vpop.permute.xlu0 %1386
      %1388 = vrot.lane.b32.xlu0 %v377, 24
      %v1389 = vpop.permute.xlu0 %1388
      %1390 = vrot.lane.b32.xlu0 %v378, 24
      %v1391 = vpop.permute.xlu0 %1390
      %1392 = vrot.lane.b32.xlu0 %v380, 24
      %v1393 = vpop.permute.xlu0 %1392
      %1394 = vrot.lane.b32.xlu0 %v381, 24
      %v1395 = vpop.permute.xlu0 %1394
      %1396 = vrot.lane.b32.xlu0 %v382, 24
      %v1397 = vpop.permute.xlu0 %1396
      %1398 = vrot.lane.b32.xlu0 %v384, 24
      %v1399 = vpop.permute.xlu0 %1398
      %1400 = vrot.lane.b32.xlu0 %v385, 24
      %v1401 = vpop.permute.xlu0 %1400
      %1402 = vrot.lane.b32.xlu0 %v386, 24
      %v1403 = vpop.permute.xlu0 %1402
      %1404 = vrot.lane.b32.xlu0 %v388, 24
      %v1405 = vpop.permute.xlu0 %1404
      %1406 = vrot.lane.b32.xlu0 %v389, 24
      %v1407 = vpop.permute.xlu0 %1406
      %1408 = vrot.lane.b32.xlu0 %v390, 24
      %v1409 = vpop.permute.xlu0 %1408
      %1410 = vrot.lane.b32.xlu0 %v392, 24
      %v1411 = vpop.permute.xlu0 %1410
      %1412 = vrot.lane.b32.xlu0 %v393, 24
      %v1413 = vpop.permute.xlu0 %1412
      %1414 = vrot.lane.b32.xlu0 %v394, 24
      %v1415 = vpop.permute.xlu0 %1414
      %1416 = vrot.lane.b32.xlu0 %v396, 24
      %v1417 = vpop.permute.xlu0 %1416
      %1418 = vrot.lane.b32.xlu0 %v397, 24
      %v1419 = vpop.permute.xlu0 %1418
      %1420 = vrot.lane.b32.xlu0 %v398, 24
      %v1421 = vpop.permute.xlu0 %1420
      %1422 = vrot.lane.b32.xlu0 %v400, 24
      %v1423 = vpop.permute.xlu0 %1422
      %1424 = vrot.lane.b32.xlu0 %v401, 24
      %v1425 = vpop.permute.xlu0 %1424
      %1426 = vrot.lane.b32.xlu0 %v402, 24
      %v1427 = vpop.permute.xlu0 %1426
      %v1476 = vrot.slane %v401, 1
      %v1477 = vrot.slane %v402, 1
      %v1478 = vsel %vm436, %v1476, %v1477
      %1479 = vrot.lane.b32.xlu0 %v443, 28
      %v1480 = vpop.permute.xlu0 %1479
      %1481 = vrot.lane.b32.xlu0 %v445, 28
      %v1482 = vpop.permute.xlu0 %1481
      %1483 = vrot.lane.b32.xlu0 %v444, 28
      %v1484 = vpop.permute.xlu0 %1483
      %1485 = vrot.lane.b32.xlu0 %v446, 28
      %v1486 = vpop.permute.xlu0 %1485
      %1487 = vrot.lane.b32.xlu0 %v448, 28
      %v1488 = vpop.permute.xlu0 %1487
      %1489 = vrot.lane.b32.xlu0 %v447, 28
      %v1490 = vpop.permute.xlu0 %1489
      %1491 = vrot.lane.b32.xlu0 %v449, 28
      %v1492 = vpop.permute.xlu0 %1491
      %1493 = vrot.lane.b32.xlu0 %v451, 28
      %v1494 = vpop.permute.xlu0 %1493
      %1495 = vrot.lane.b32.xlu0 %v450, 28
      %v1496 = vpop.permute.xlu0 %1495
      %1497 = vrot.lane.b32.xlu0 %v452, 28
      %v1498 = vpop.permute.xlu0 %1497
      %1499 = vrot.lane.b32.xlu0 %v454, 28
      %v1500 = vpop.permute.xlu0 %1499
      %1501 = vrot.lane.b32.xlu0 %v453, 28
      %v1502 = vpop.permute.xlu0 %1501
      %1503 = vrot.lane.b32.xlu0 %v455, 28
      %v1504 = vpop.permute.xlu0 %1503
      %1505 = vrot.lane.b32.xlu0 %v457, 28
      %v1506 = vpop.permute.xlu0 %1505
      %1507 = vrot.lane.b32.xlu0 %v456, 28
      %v1508 = vpop.permute.xlu0 %1507
      %1509 = vrot.lane.b32.xlu0 %v458, 28
      %v1510 = vpop.permute.xlu0 %1509
      %1511 = vrot.lane.b32.xlu0 %v460, 28
      %v1512 = vpop.permute.xlu0 %1511
      %1513 = vrot.lane.b32.xlu0 %v459, 28
      %v1514 = vpop.permute.xlu0 %1513
      %1515 = vrot.lane.b32.xlu0 %v461, 28
      %v1516 = vpop.permute.xlu0 %1515
      %1517 = vrot.lane.b32.xlu0 %v463, 28
      %v1518 = vpop.permute.xlu0 %1517
      %1519 = vrot.lane.b32.xlu0 %v462, 28
      %v1520 = vpop.permute.xlu0 %1519
      %1521 = vrot.lane.b32.xlu0 %v464, 28
      %v1522 = vpop.permute.xlu0 %1521
      %1523 = vrot.lane.b32.xlu0 %v466, 28
      %v1524 = vpop.permute.xlu0 %1523
      %1525 = vrot.lane.b32.xlu0 %v465, 28
      %v1526 = vpop.permute.xlu0 %1525
      %1527 = vrot.lane.b32.xlu0 %v467, 28
      %v1528 = vpop.permute.xlu0 %1527
      %1529 = vrot.lane.b32.xlu0 %v469, 28
      %v1530 = vpop.permute.xlu0 %1529
      %1531 = vrot.lane.b32.xlu0 %v468, 28
      %v1532 = vpop.permute.xlu0 %1531
      %1533 = vrot.lane.b32.xlu0 %v470, 28
      %v1534 = vpop.permute.xlu0 %1533
      %1535 = vrot.lane.b32.xlu0 %v472, 28
      %v1536 = vpop.permute.xlu0 %1535
      %1537 = vrot.lane.b32.xlu0 %v471, 28
      %v1538 = vpop.permute.xlu0 %1537
      %1539 = vrot.lane.b32.xlu0 %v473, 28
      %v1540 = vpop.permute.xlu0 %1539
      %1541 = vrot.lane.b32.xlu0 %v475, 28
      %v1542 = vpop.permute.xlu0 %1541
      %1543 = vrot.lane.b32.xlu0 %v474, 28
      %v1544 = vpop.permute.xlu0 %1543
      %1545 = vrot.lane.b32.xlu0 %v476, 28
      %v1546 = vpop.permute.xlu0 %1545
      %1547 = vrot.lane.b32.xlu0 %v478, 28
      %v1548 = vpop.permute.xlu0 %1547
      %1549 = vrot.lane.b32.xlu0 %v477, 28
      %v1550 = vpop.permute.xlu0 %1549
      %1551 = vrot.lane.b32.xlu0 %v479, 28
      %v1552 = vpop.permute.xlu0 %1551
      %1553 = vrot.lane.b32.xlu0 %v481, 28
      %v1554 = vpop.permute.xlu0 %1553
      %1555 = vrot.lane.b32.xlu0 %v480, 28
      %v1556 = vpop.permute.xlu0 %1555
      %1557 = vrot.lane.b32.xlu0 %v482, 28
      %v1558 = vpop.permute.xlu0 %1557
      %1559 = vrot.lane.b32.xlu0 %v484, 28
      %v1560 = vpop.permute.xlu0 %1559
      %1561 = vrot.lane.b32.xlu0 %v483, 28
      %v1562 = vpop.permute.xlu0 %1561
      %1563 = vrot.lane.b32.xlu0 %v1032, 28
      %v1564 = vpop.permute.xlu0 %1563
      %1565 = vrot.lane.b32.xlu0 %v1034, 28
      %v1566 = vpop.permute.xlu0 %1565
      %1567 = vrot.lane.b32.xlu0 %v1033, 28
      %v1568 = vpop.permute.xlu0 %1567
      %1569 = vrot.lane.b32.xlu0 %v1476, 28
      %v1570 = vpop.permute.xlu0 %1569
      %1571 = vrot.lane.b32.xlu0 %v1478, 28
      %v1572 = vpop.permute.xlu0 %1571
      %1573 = vrot.lane.b32.xlu0 %v1477, 28
      %v1574 = vpop.permute.xlu0 %1573
      %v1624 = vrot.slane %v401, 2
      %v1625 = vrot.slane %v402, 2
      %v1626 = vsel %vm645, %v1624, %v1625
      %v1627 = vrot.slane %v403, 2
      %v1628 = vsel %vm645, %v1625, %v1627
      %1629 = vrot.lane.b32.xlu0 %v656, 32
      %v1630 = vpop.permute.xlu0 %1629
      %1631 = vrot.lane.b32.xlu0 %v658, 32
      %v1632 = vpop.permute.xlu0 %1631
      %1633 = vrot.lane.b32.xlu0 %v660, 32
      %v1634 = vpop.permute.xlu0 %1633
      %1635 = vrot.lane.b32.xlu0 %v661, 32
      %v1636 = vpop.permute.xlu0 %1635
      %1637 = vrot.lane.b32.xlu0 %v663, 32
      %v1638 = vpop.permute.xlu0 %1637
      %1639 = vrot.lane.b32.xlu0 %v665, 32
      %v1640 = vpop.permute.xlu0 %1639
      %1641 = vrot.lane.b32.xlu0 %v666, 32
      %v1642 = vpop.permute.xlu0 %1641
      %1643 = vrot.lane.b32.xlu0 %v668, 32
      %v1644 = vpop.permute.xlu0 %1643
      %1645 = vrot.lane.b32.xlu0 %v670, 32
      %v1646 = vpop.permute.xlu0 %1645
      %1647 = vrot.lane.b32.xlu0 %v671, 32
      %v1648 = vpop.permute.xlu0 %1647
      %1649 = vrot.lane.b32.xlu0 %v673, 32
      %v1650 = vpop.permute.xlu0 %1649
      %1651 = vrot.lane.b32.xlu0 %v675, 32
      %v1652 = vpop.permute.xlu0 %1651
      %1653 = vrot.lane.b32.xlu0 %v676, 32
      %v1654 = vpop.permute.xlu0 %1653
      %1655 = vrot.lane.b32.xlu0 %v678, 32
      %v1656 = vpop.permute.xlu0 %1655
      %1657 = vrot.lane.b32.xlu0 %v680, 32
      %v1658 = vpop.permute.xlu0 %1657
      %1659 = vrot.lane.b32.xlu0 %v681, 32
      %v1660 = vpop.permute.xlu0 %1659
      %1661 = vrot.lane.b32.xlu0 %v683, 32
      %v1662 = vpop.permute.xlu0 %1661
      %1663 = vrot.lane.b32.xlu0 %v685, 32
      %v1664 = vpop.permute.xlu0 %1663
      %1665 = vrot.lane.b32.xlu0 %v686, 32
      %v1666 = vpop.permute.xlu0 %1665
      %1667 = vrot.lane.b32.xlu0 %v688, 32
      %v1668 = vpop.permute.xlu0 %1667
      %1669 = vrot.lane.b32.xlu0 %v690, 32
      %v1670 = vpop.permute.xlu0 %1669
      %1671 = vrot.lane.b32.xlu0 %v691, 32
      %v1672 = vpop.permute.xlu0 %1671
      %1673 = vrot.lane.b32.xlu0 %v693, 32
      %v1674 = vpop.permute.xlu0 %1673
      %1675 = vrot.lane.b32.xlu0 %v695, 32
      %v1676 = vpop.permute.xlu0 %1675
      %1677 = vrot.lane.b32.xlu0 %v696, 32
      %v1678 = vpop.permute.xlu0 %1677
      %1679 = vrot.lane.b32.xlu0 %v698, 32
      %v1680 = vpop.permute.xlu0 %1679
      %1681 = vrot.lane.b32.xlu0 %v700, 32
      %v1682 = vpop.permute.xlu0 %1681
      %1683 = vrot.lane.b32.xlu0 %v701, 32
      %v1684 = vpop.permute.xlu0 %1683
      %1685 = vrot.lane.b32.xlu0 %v703, 32
      %v1686 = vpop.permute.xlu0 %1685
      %1687 = vrot.lane.b32.xlu0 %v705, 32
      %v1688 = vpop.permute.xlu0 %1687
      %1689 = vrot.lane.b32.xlu0 %v706, 32
      %v1690 = vpop.permute.xlu0 %1689
      %1691 = vrot.lane.b32.xlu0 %v708, 32
      %v1692 = vpop.permute.xlu0 %1691
      %1693 = vrot.lane.b32.xlu0 %v710, 32
      %v1694 = vpop.permute.xlu0 %1693
      %1695 = vrot.lane.b32.xlu0 %v711, 32
      %v1696 = vpop.permute.xlu0 %1695
      %1697 = vrot.lane.b32.xlu0 %v713, 32
      %v1698 = vpop.permute.xlu0 %1697
      %1699 = vrot.lane.b32.xlu0 %v715, 32
      %v1700 = vpop.permute.xlu0 %1699
      %1701 = vrot.lane.b32.xlu0 %v716, 32
      %v1702 = vpop.permute.xlu0 %1701
      %1703 = vrot.lane.b32.xlu0 %v718, 32
      %v1704 = vpop.permute.xlu0 %1703
      %1705 = vrot.lane.b32.xlu0 %v720, 32
      %v1706 = vpop.permute.xlu0 %1705
      %1707 = vrot.lane.b32.xlu0 %v721, 32
      %v1708 = vpop.permute.xlu0 %1707
      %1709 = vrot.lane.b32.xlu0 %v723, 32
      %v1710 = vpop.permute.xlu0 %1709
      %1711 = vrot.lane.b32.xlu0 %v725, 32
      %v1712 = vpop.permute.xlu0 %1711
      %1713 = vrot.lane.b32.xlu0 %v1180, 32
      %v1714 = vpop.permute.xlu0 %1713
      %1715 = vrot.lane.b32.xlu0 %v1182, 32
      %v1716 = vpop.permute.xlu0 %1715
      %1717 = vrot.lane.b32.xlu0 %v1184, 32
      %v1718 = vpop.permute.xlu0 %1717
      %1719 = vrot.lane.b32.xlu0 %v1624, 32
      %v1720 = vpop.permute.xlu0 %1719
      %1721 = vrot.lane.b32.xlu0 %v1626, 32
      %v1722 = vpop.permute.xlu0 %1721
      %1723 = vrot.lane.b32.xlu0 %v1628, 32
      %v1724 = vpop.permute.xlu0 %1723
      %v1773 = vsel %vm257, %v332, %v486
      %v1774 = vsel %vm257, %v333, %v488
      %v1775 = vsel %vm257, %v334, %v490
      %v1776 = vsel %vm257, %v336, %v492
      %v1777 = vsel %vm257, %v337, %v494
      %v1778 = vsel %vm257, %v338, %v496
      %v1779 = vsel %vm257, %v340, %v498
      %v1780 = vsel %vm257, %v341, %v500
      %v1781 = vsel %vm257, %v342, %v502
      %v1782 = vsel %vm257, %v344, %v504
      %v1783 = vsel %vm257, %v345, %v506
      %v1784 = vsel %vm257, %v346, %v508
      %v1785 = vsel %vm257, %v348, %v510
      %v1786 = vsel %vm257, %v349, %v512
      %v1787 = vsel %vm257, %v350, %v514
      %v1788 = vsel %vm257, %v352, %v516
      %v1789 = vsel %vm257, %v353, %v518
      %v1790 = vsel %vm257, %v354, %v520
      %v1791 = vsel %vm257, %v356, %v522
      %v1792 = vsel %vm257, %v357, %v524
      %v1793 = vsel %vm257, %v358, %v526
      %v1794 = vsel %vm257, %v360, %v528
      %v1795 = vsel %vm257, %v361, %v530
      %v1796 = vsel %vm257, %v362, %v532
      %v1797 = vsel %vm257, %v364, %v534
      %v1798 = vsel %vm257, %v365, %v536
      %v1799 = vsel %vm257, %v366, %v538
      %v1800 = vsel %vm257, %v368, %v540
      %v1801 = vsel %vm257, %v369, %v542
      %v1802 = vsel %vm257, %v370, %v544
      %v1803 = vsel %vm257, %v372, %v546
      %v1804 = vsel %vm257, %v373, %v548
      %v1805 = vsel %vm257, %v374, %v550
      %v1806 = vsel %vm257, %v376, %v552
      %v1807 = vsel %vm257, %v377, %v554
      %v1808 = vsel %vm257, %v378, %v556
      %v1809 = vsel %vm257, %v380, %v558
      %v1810 = vsel %vm257, %v381, %v560
      %v1811 = vsel %vm257, %v382, %v562
      %v1812 = vsel %vm257, %v384, %v564
      %v1813 = vsel %vm257, %v385, %v566
      %v1814 = vsel %vm257, %v386, %v568
      %v1815 = vsel %vm257, %v388, %v570
      %v1816 = vsel %vm257, %v389, %v572
      %v1817 = vsel %vm257, %v390, %v574
      %v1818 = vsel %vm257, %v392, %v576
      %v1819 = vsel %vm257, %v393, %v578
      %v1820 = vsel %vm257, %v394, %v580
      %vm1821 = vcmask 64512
      %v1822 = vsel %vm1821, %v1773, %v727
      %v1823 = vsel %vm1821, %v1774, %v729
      %v1824 = vsel %vm1821, %v1775, %v731
      %v1825 = vsel %vm1821, %v1776, %v733
      %v1826 = vsel %vm1821, %v1777, %v735
      %v1827 = vsel %vm1821, %v1778, %v737
      %v1828 = vsel %vm1821, %v1779, %v739
      %v1829 = vsel %vm1821, %v1780, %v741
      %v1830 = vsel %vm1821, %v1781, %v743
      %v1831 = vsel %vm1821, %v1782, %v745
      %v1832 = vsel %vm1821, %v1783, %v747
      %v1833 = vsel %vm1821, %v1784, %v749
      %v1834 = vsel %vm1821, %v1785, %v751
      %v1835 = vsel %vm1821, %v1786, %v753
      %v1836 = vsel %vm1821, %v1787, %v755
      %v1837 = vsel %vm1821, %v1788, %v757
      %v1838 = vsel %vm1821, %v1789, %v759
      %v1839 = vsel %vm1821, %v1790, %v761
      %v1840 = vsel %vm1821, %v1791, %v763
      %v1841 = vsel %vm1821, %v1792, %v765
      %v1842 = vsel %vm1821, %v1793, %v767
      %v1843 = vsel %vm1821, %v1794, %v769
      %v1844 = vsel %vm1821, %v1795, %v771
      %v1845 = vsel %vm1821, %v1796, %v773
      %v1846 = vsel %vm1821, %v1797, %v775
      %v1847 = vsel %vm1821, %v1798, %v777
      %v1848 = vsel %vm1821, %v1799, %v779
      %v1849 = vsel %vm1821, %v1800, %v781
      %v1850 = vsel %vm1821, %v1801, %v783
      %v1851 = vsel %vm1821, %v1802, %v785
      %v1852 = vsel %vm1821, %v1803, %v787
      %v1853 = vsel %vm1821, %v1804, %v789
      %v1854 = vsel %vm1821, %v1805, %v791
      %v1855 = vsel %vm1821, %v1806, %v793
      %v1856 = vsel %vm1821, %v1807, %v795
      %v1857 = vsel %vm1821, %v1808, %v797
      %v1858 = vsel %vm1821, %v1809, %v799
      %v1859 = vsel %vm1821, %v1810, %v801
      %v1860 = vsel %vm1821, %v1811, %v803
      %v1861 = vsel %vm1821, %v1812, %v805
      %v1862 = vsel %vm1821, %v1813, %v807
      %v1863 = vsel %vm1821, %v1814, %v809
      %v1864 = vsel %vm1821, %v1815, %v811
      %v1865 = vsel %vm1821, %v1816, %v813
      %v1866 = vsel %vm1821, %v1817, %v815
      %v1867 = vsel %vm1821, %v1818, %v817
      %v1868 = vsel %vm1821, %v1819, %v819
      %v1869 = vsel %vm1821, %v1820, %v821
      %vm1870 = vcmask 97280
      %v1871 = vsel %vm1870, %v1822, %v889
      %v1872 = vsel %vm1870, %v1823, %v891
      %v1873 = vsel %vm1870, %v1824, %v893
      %v1874 = vsel %vm1870, %v1825, %v895
      %v1875 = vsel %vm1870, %v1826, %v897
      %v1876 = vsel %vm1870, %v1827, %v899
      %v1877 = vsel %vm1870, %v1828, %v901
      %v1878 = vsel %vm1870, %v1829, %v903
      %v1879 = vsel %vm1870, %v1830, %v905
      %v1880 = vsel %vm1870, %v1831, %v907
      %v1881 = vsel %vm1870, %v1832, %v909
      %v1882 = vsel %vm1870, %v1833, %v911
      %v1883 = vsel %vm1870, %v1834, %v913
      %v1884 = vsel %vm1870, %v1835, %v915
      %v1885 = vsel %vm1870, %v1836, %v917
      %v1886 = vsel %vm1870, %v1837, %v919
      %v1887 = vsel %vm1870, %v1838, %v921
      %v1888 = vsel %vm1870, %v1839, %v923
      %v1889 = vsel %vm1870, %v1840, %v925
      %v1890 = vsel %vm1870, %v1841, %v927
      %v1891 = vsel %vm1870, %v1842, %v929
      %v1892 = vsel %vm1870, %v1843, %v931
      %v1893 = vsel %vm1870, %v1844, %v933
      %v1894 = vsel %vm1870, %v1845, %v935
      %v1895 = vsel %vm1870, %v1846, %v937
      %v1896 = vsel %vm1870, %v1847, %v939
      %v1897 = vsel %vm1870, %v1848, %v941
      %v1898 = vsel %vm1870, %v1849, %v943
      %v1899 = vsel %vm1870, %v1850, %v945
      %v1900 = vsel %vm1870, %v1851, %v947
      %v1901 = vsel %vm1870, %v1852, %v949
      %v1902 = vsel %vm1870, %v1853, %v951
      %v1903 = vsel %vm1870, %v1854, %v953
      %v1904 = vsel %vm1870, %v1855, %v955
      %v1905 = vsel %vm1870, %v1856, %v957
      %v1906 = vsel %vm1870, %v1857, %v959
      %v1907 = vsel %vm1870, %v1858, %v961
      %v1908 = vsel %vm1870, %v1859, %v963
      %v1909 = vsel %vm1870, %v1860, %v965
      %v1910 = vsel %vm1870, %v1861, %v967
      %v1911 = vsel %vm1870, %v1862, %v969
      %v1912 = vsel %vm1870, %v1863, %v971
      %v1913 = vsel %vm1870, %v1864, %v973
      %v1914 = vsel %vm1870, %v1865, %v975
      %v1915 = vsel %vm1870, %v1866, %v977
      %v1916 = vsel %vm1870, %v1867, %v979
      %v1917 = vsel %vm1870, %v1868, %v981
      %v1918 = vsel %vm1870, %v1869, %v983
      %vm1919 = vcmask 130048
      %v1920 = vsel %vm1919, %v1871, %v1036
      %v1921 = vsel %vm1919, %v1872, %v1038
      %v1922 = vsel %vm1919, %v1873, %v1040
      %v1923 = vsel %vm1919, %v1874, %v1042
      %v1924 = vsel %vm1919, %v1875, %v1044
      %v1925 = vsel %vm1919, %v1876, %v1046
      %v1926 = vsel %vm1919, %v1877, %v1048
      %v1927 = vsel %vm1919, %v1878, %v1050
      %v1928 = vsel %vm1919, %v1879, %v1052
      %v1929 = vsel %vm1919, %v1880, %v1054
      %v1930 = vsel %vm1919, %v1881, %v1056
      %v1931 = vsel %vm1919, %v1882, %v1058
      %v1932 = vsel %vm1919, %v1883, %v1060
      %v1933 = vsel %vm1919, %v1884, %v1062
      %v1934 = vsel %vm1919, %v1885, %v1064
      %v1935 = vsel %vm1919, %v1886, %v1066
      %v1936 = vsel %vm1919, %v1887, %v1068
      %v1937 = vsel %vm1919, %v1888, %v1070
      %v1938 = vsel %vm1919, %v1889, %v1072
      %v1939 = vsel %vm1919, %v1890, %v1074
      %v1940 = vsel %vm1919, %v1891, %v1076
      %v1941 = vsel %vm1919, %v1892, %v1078
      %v1942 = vsel %vm1919, %v1893, %v1080
      %v1943 = vsel %vm1919, %v1894, %v1082
      %v1944 = vsel %vm1919, %v1895, %v1084
      %v1945 = vsel %vm1919, %v1896, %v1086
      %v1946 = vsel %vm1919, %v1897, %v1088
      %v1947 = vsel %vm1919, %v1898, %v1090
      %v1948 = vsel %vm1919, %v1899, %v1092
      %v1949 = vsel %vm1919, %v1900, %v1094
      %v1950 = vsel %vm1919, %v1901, %v1096
      %v1951 = vsel %vm1919, %v1902, %v1098
      %v1952 = vsel %vm1919, %v1903, %v1100
      %v1953 = vsel %vm1919, %v1904, %v1102
      %v1954 = vsel %vm1919, %v1905, %v1104
      %v1955 = vsel %vm1919, %v1906, %v1106
      %v1956 = vsel %vm1919, %v1907, %v1108
      %v1957 = vsel %vm1919, %v1908, %v1110
      %v1958 = vsel %vm1919, %v1909, %v1112
      %v1959 = vsel %vm1919, %v1910, %v1114
      %v1960 = vsel %vm1919, %v1911, %v1116
      %v1961 = vsel %vm1919, %v1912, %v1118
      %v1962 = vsel %vm1919, %v1913, %v1120
      %v1963 = vsel %vm1919, %v1914, %v1122
      %v1964 = vsel %vm1919, %v1915, %v1124
      %v1965 = vsel %vm1919, %v1916, %v1126
      %v1966 = vsel %vm1919, %v1917, %v1128
      %v1967 = vsel %vm1919, %v1918, %v1130
      %vm1968 = vcmask 162816
      %v1969 = vsel %vm1968, %v1920, %v1186
      %v1970 = vsel %vm1968, %v1921, %v1188
      %v1971 = vsel %vm1968, %v1922, %v1190
      %v1972 = vsel %vm1968, %v1923, %v1192
      %v1973 = vsel %vm1968, %v1924, %v1194
      %v1974 = vsel %vm1968, %v1925, %v1196
      %v1975 = vsel %vm1968, %v1926, %v1198
      %v1976 = vsel %vm1968, %v1927, %v1200
      %v1977 = vsel %vm1968, %v1928, %v1202
      %v1978 = vsel %vm1968, %v1929, %v1204
      %v1979 = vsel %vm1968, %v1930, %v1206
      %v1980 = vsel %vm1968, %v1931, %v1208
      %v1981 = vsel %vm1968, %v1932, %v1210
      %v1982 = vsel %vm1968, %v1933, %v1212
      %v1983 = vsel %vm1968, %v1934, %v1214
      %v1984 = vsel %vm1968, %v1935, %v1216
      %v1985 = vsel %vm1968, %v1936, %v1218
      %v1986 = vsel %vm1968, %v1937, %v1220
      %v1987 = vsel %vm1968, %v1938, %v1222
      %v1988 = vsel %vm1968, %v1939, %v1224
      %v1989 = vsel %vm1968, %v1940, %v1226
      %v1990 = vsel %vm1968, %v1941, %v1228
      %v1991 = vsel %vm1968, %v1942, %v1230
      %v1992 = vsel %vm1968, %v1943, %v1232
      %v1993 = vsel %vm1968, %v1944, %v1234
      %v1994 = vsel %vm1968, %v1945, %v1236
      %v1995 = vsel %vm1968, %v1946, %v1238
      %v1996 = vsel %vm1968, %v1947, %v1240
      %v1997 = vsel %vm1968, %v1948, %v1242
      %v1998 = vsel %vm1968, %v1949, %v1244
      %v1999 = vsel %vm1968, %v1950, %v1246
      %v2000 = vsel %vm1968, %v1951, %v1248
      %v2001 = vsel %vm1968, %v1952, %v1250
      %v2002 = vsel %vm1968, %v1953, %v1252
      %v2003 = vsel %vm1968, %v1954, %v1254
      %v2004 = vsel %vm1968, %v1955, %v1256
      %v2005 = vsel %vm1968, %v1956, %v1258
      %v2006 = vsel %vm1968, %v1957, %v1260
      %v2007 = vsel %vm1968, %v1958, %v1262
      %v2008 = vsel %vm1968, %v1959, %v1264
      %v2009 = vsel %vm1968, %v1960, %v1266
      %v2010 = vsel %vm1968, %v1961, %v1268
      %v2011 = vsel %vm1968, %v1962, %v1270
      %v2012 = vsel %vm1968, %v1963, %v1272
      %v2013 = vsel %vm1968, %v1964, %v1274
      %v2014 = vsel %vm1968, %v1965, %v1276
      %v2015 = vsel %vm1968, %v1966, %v1278
      %v2016 = vsel %vm1968, %v1967, %v1280
      %vm2017 = vcmask 195584
      %v2018 = vsel %vm2017, %v1969, %v1333
      %v2019 = vsel %vm2017, %v1970, %v1335
      %v2020 = vsel %vm2017, %v1971, %v1337
      %v2021 = vsel %vm2017, %v1972, %v1339
      %v2022 = vsel %vm2017, %v1973, %v1341
      %v2023 = vsel %vm2017, %v1974, %v1343
      %v2024 = vsel %vm2017, %v1975, %v1345
      %v2025 = vsel %vm2017, %v1976, %v1347
      %v2026 = vsel %vm2017, %v1977, %v1349
      %v2027 = vsel %vm2017, %v1978, %v1351
      %v2028 = vsel %vm2017, %v1979, %v1353
      %v2029 = vsel %vm2017, %v1980, %v1355
      %v2030 = vsel %vm2017, %v1981, %v1357
      %v2031 = vsel %vm2017, %v1982, %v1359
      %v2032 = vsel %vm2017, %v1983, %v1361
      %v2033 = vsel %vm2017, %v1984, %v1363
      %v2034 = vsel %vm2017, %v1985, %v1365
      %v2035 = vsel %vm2017, %v1986, %v1367
      %v2036 = vsel %vm2017, %v1987, %v1369
      %v2037 = vsel %vm2017, %v1988, %v1371
      %v2038 = vsel %vm2017, %v1989, %v1373
      %v2039 = vsel %vm2017, %v1990, %v1375
      %v2040 = vsel %vm2017, %v1991, %v1377
      %v2041 = vsel %vm2017, %v1992, %v1379
      %v2042 = vsel %vm2017, %v1993, %v1381
      %v2043 = vsel %vm2017, %v1994, %v1383
      %v2044 = vsel %vm2017, %v1995, %v1385
      %v2045 = vsel %vm2017, %v1996, %v1387
      %v2046 = vsel %vm2017, %v1997, %v1389
      %v2047 = vsel %vm2017, %v1998, %v1391
      %v2048 = vsel %vm2017, %v1999, %v1393
      %v2049 = vsel %vm2017, %v2000, %v1395
      %v2050 = vsel %vm2017, %v2001, %v1397
      %v2051 = vsel %vm2017, %v2002, %v1399
      %v2052 = vsel %vm2017, %v2003, %v1401
      %v2053 = vsel %vm2017, %v2004, %v1403
      %v2054 = vsel %vm2017, %v2005, %v1405
      %v2055 = vsel %vm2017, %v2006, %v1407
      %v2056 = vsel %vm2017, %v2007, %v1409
      %v2057 = vsel %vm2017, %v2008, %v1411
      %v2058 = vsel %vm2017, %v2009, %v1413
      %v2059 = vsel %vm2017, %v2010, %v1415
      %v2060 = vsel %vm2017, %v2011, %v1417
      %v2061 = vsel %vm2017, %v2012, %v1419
      %v2062 = vsel %vm2017, %v2013, %v1421
      %v2063 = vsel %vm2017, %v2014, %v1423
      %v2064 = vsel %vm2017, %v2015, %v1425
      %v2065 = vsel %vm2017, %v2016, %v1427
      %vm2066 = vcmask 228352
      %v2067 = vsel %vm2066, %v2018, %v1480
      %v2068 = vsel %vm2066, %v2019, %v1482
      %v2069 = vsel %vm2066, %v2020, %v1484
      %v2070 = vsel %vm2066, %v2021, %v1486
      %v2071 = vsel %vm2066, %v2022, %v1488
      %v2072 = vsel %vm2066, %v2023, %v1490
      %v2073 = vsel %vm2066, %v2024, %v1492
      %v2074 = vsel %vm2066, %v2025, %v1494
      %v2075 = vsel %vm2066, %v2026, %v1496
      %v2076 = vsel %vm2066, %v2027, %v1498
      %v2077 = vsel %vm2066, %v2028, %v1500
      %v2078 = vsel %vm2066, %v2029, %v1502
      %v2079 = vsel %vm2066, %v2030, %v1504
      %v2080 = vsel %vm2066, %v2031, %v1506
      %v2081 = vsel %vm2066, %v2032, %v1508
      %v2082 = vsel %vm2066, %v2033, %v1510
      %v2083 = vsel %vm2066, %v2034, %v1512
      %v2084 = vsel %vm2066, %v2035, %v1514
      %v2085 = vsel %vm2066, %v2036, %v1516
      %v2086 = vsel %vm2066, %v2037, %v1518
      %v2087 = vsel %vm2066, %v2038, %v1520
      %v2088 = vsel %vm2066, %v2039, %v1522
      %v2089 = vsel %vm2066, %v2040, %v1524
      %v2090 = vsel %vm2066, %v2041, %v1526
      %v2091 = vsel %vm2066, %v2042, %v1528
      %v2092 = vsel %vm2066, %v2043, %v1530
      %v2093 = vsel %vm2066, %v2044, %v1532
      %v2094 = vsel %vm2066, %v2045, %v1534
      %v2095 = vsel %vm2066, %v2046, %v1536
      %v2096 = vsel %vm2066, %v2047, %v1538
      %v2097 = vsel %vm2066, %v2048, %v1540
      %v2098 = vsel %vm2066, %v2049, %v1542
      %v2099 = vsel %vm2066, %v2050, %v1544
      %v2100 = vsel %vm2066, %v2051, %v1546
      %v2101 = vsel %vm2066, %v2052, %v1548
      %v2102 = vsel %vm2066, %v2053, %v1550
      %v2103 = vsel %vm2066, %v2054, %v1552
      %v2104 = vsel %vm2066, %v2055, %v1554
      %v2105 = vsel %vm2066, %v2056, %v1556
      %v2106 = vsel %vm2066, %v2057, %v1558
      %v2107 = vsel %vm2066, %v2058, %v1560
      %v2108 = vsel %vm2066, %v2059, %v1562
      %v2109 = vsel %vm2066, %v2060, %v1564
      %v2110 = vsel %vm2066, %v2061, %v1566
      %v2111 = vsel %vm2066, %v2062, %v1568
      %v2112 = vsel %vm2066, %v2063, %v1570
      %v2113 = vsel %vm2066, %v2064, %v1572
      %v2114 = vsel %vm2066, %v2065, %v1574
      %vm2115 = vcmask 261120
      %v2116 = vsel %vm2115, %v2067, %v1630
      %v2117 = vsel %vm2115, %v2068, %v1632
      %v2118 = vsel %vm2115, %v2069, %v1634
      %v2119 = vsel %vm2115, %v2070, %v1636
      %v2120 = vsel %vm2115, %v2071, %v1638
      %v2121 = vsel %vm2115, %v2072, %v1640
      %v2122 = vsel %vm2115, %v2073, %v1642
      %v2123 = vsel %vm2115, %v2074, %v1644
      %v2124 = vsel %vm2115, %v2075, %v1646
      %v2125 = vsel %vm2115, %v2076, %v1648
      %v2126 = vsel %vm2115, %v2077, %v1650
      %v2127 = vsel %vm2115, %v2078, %v1652
      %v2128 = vsel %vm2115, %v2079, %v1654
      %v2129 = vsel %vm2115, %v2080, %v1656
      %v2130 = vsel %vm2115, %v2081, %v1658
      %v2131 = vsel %vm2115, %v2082, %v1660
      %v2132 = vsel %vm2115, %v2083, %v1662
      %v2133 = vsel %vm2115, %v2084, %v1664
      %v2134 = vsel %vm2115, %v2085, %v1666
      %v2135 = vsel %vm2115, %v2086, %v1668
      %v2136 = vsel %vm2115, %v2087, %v1670
      %v2137 = vsel %vm2115, %v2088, %v1672
      %v2138 = vsel %vm2115, %v2089, %v1674
      %v2139 = vsel %vm2115, %v2090, %v1676
      %v2140 = vsel %vm2115, %v2091, %v1678
      %v2141 = vsel %vm2115, %v2092, %v1680
      %v2142 = vsel %vm2115, %v2093, %v1682
      %v2143 = vsel %vm2115, %v2094, %v1684
      %v2144 = vsel %vm2115, %v2095, %v1686
      %v2145 = vsel %vm2115, %v2096, %v1688
      %v2146 = vsel %vm2115, %v2097, %v1690
      %v2147 = vsel %vm2115, %v2098, %v1692
      %v2148 = vsel %vm2115, %v2099, %v1694
      %v2149 = vsel %vm2115, %v2100, %v1696
      %v2150 = vsel %vm2115, %v2101, %v1698
      %v2151 = vsel %vm2115, %v2102, %v1700
      %v2152 = vsel %vm2115, %v2103, %v1702
      %v2153 = vsel %vm2115, %v2104, %v1704
      %v2154 = vsel %vm2115, %v2105, %v1706
      %v2155 = vsel %vm2115, %v2106, %v1708
      %v2156 = vsel %vm2115, %v2107, %v1710
      %v2157 = vsel %vm2115, %v2108, %v1712
      %v2158 = vsel %vm2115, %v2109, %v1714
      %v2159 = vsel %vm2115, %v2110, %v1716
      %v2160 = vsel %vm2115, %v2111, %v1718
      %v2161 = vsel %vm2115, %v2112, %v1720
      %v2162 = vsel %vm2115, %v2113, %v1722
      %v2163 = vsel %vm2115, %v2114, %v1724
      %v2164 = vld [vmem:[%s1] sm:$0xff]
      %v2165 = vld [vmem:[%s1 + $0x8] sm:$0xff]
      %v2166 = vld [vmem:[%s1 + $0x10] sm:$0xff]
      %v2167 = vld [vmem:[%s1 + $0x18] sm:$0xff]
      %v2168 = vld [vmem:[%s1 + $0x20] sm:$0xf]
      %v2169 = vld [vmem:[%s2] sm:$0x1]
      %v2171 = vlaneseq
      %v2172 = vshrl.u32 %v2171, 7
      %v2173 = vsub.s32 0, %v2172
      %v2174 = vrot.slane %v2169, %v2173
      %vm2224 = vcmask 1040384
      %v2225 = vrot.slane %v2116, 7
      %v2226 = vrot.slane %v2117, 7
      %v2227 = vsel %vm2224, %v2225, %v2226
      %v2228 = vrot.slane %v2118, 7
      %v2229 = vsel %vm2224, %v2226, %v2228
      %v2230 = vrot.slane %v2119, 7
      %v2231 = vrot.slane %v2120, 7
      %v2232 = vsel %vm2224, %v2230, %v2231
      %v2233 = vrot.slane %v2121, 7
      %v2234 = vsel %vm2224, %v2231, %v2233
      %v2235 = vrot.slane %v2122, 7
      %v2236 = vrot.slane %v2123, 7
      %v2237 = vsel %vm2224, %v2235, %v2236
      %v2238 = vrot.slane %v2124, 7
      %v2239 = vsel %vm2224, %v2236, %v2238
      %v2240 = vrot.slane %v2125, 7
      %v2241 = vrot.slane %v2126, 7
      %v2242 = vsel %vm2224, %v2240, %v2241
      %v2243 = vrot.slane %v2127, 7
      %v2244 = vsel %vm2224, %v2241, %v2243
      %v2245 = vrot.slane %v2128, 7
      %v2246 = vrot.slane %v2129, 7
      %v2247 = vsel %vm2224, %v2245, %v2246
      %v2248 = vrot.slane %v2130, 7
      %v2249 = vsel %vm2224, %v2246, %v2248
      %v2250 = vrot.slane %v2131, 7
      %v2251 = vrot.slane %v2132, 7
      %v2252 = vsel %vm2224, %v2250, %v2251
      %v2253 = vrot.slane %v2133, 7
      %v2254 = vsel %vm2224, %v2251, %v2253
      %v2255 = vrot.slane %v2134, 7
      %v2256 = vrot.slane %v2135, 7
      %v2257 = vsel %vm2224, %v2255, %v2256
      %v2258 = vrot.slane %v2136, 7
      %v2259 = vsel %vm2224, %v2256, %v2258
      %v2260 = vrot.slane %v2137, 7
      %v2261 = vrot.slane %v2138, 7
      %v2262 = vsel %vm2224, %v2260, %v2261
      %v2263 = vrot.slane %v2139, 7
      %v2264 = vsel %vm2224, %v2261, %v2263
      %v2265 = vrot.slane %v2140, 7
      %v2266 = vrot.slane %v2141, 7
      %v2267 = vsel %vm2224, %v2265, %v2266
      %v2268 = vrot.slane %v2142, 7
      %v2269 = vsel %vm2224, %v2266, %v2268
      %v2270 = vrot.slane %v2143, 7
      %v2271 = vrot.slane %v2144, 7
      %v2272 = vsel %vm2224, %v2270, %v2271
      %v2273 = vrot.slane %v2145, 7
      %v2274 = vsel %vm2224, %v2271, %v2273
      %v2275 = vrot.slane %v2146, 7
      %v2276 = vrot.slane %v2147, 7
      %v2277 = vsel %vm2224, %v2275, %v2276
      %v2278 = vrot.slane %v2148, 7
      %v2279 = vsel %vm2224, %v2276, %v2278
      %v2280 = vrot.slane %v2149, 7
      %v2281 = vrot.slane %v2150, 7
      %v2282 = vsel %vm2224, %v2280, %v2281
      %v2283 = vrot.slane %v2151, 7
      %v2284 = vsel %vm2224, %v2281, %v2283
      %v2285 = vrot.slane %v2152, 7
      %v2286 = vrot.slane %v2153, 7
      %v2287 = vsel %vm2224, %v2285, %v2286
      %v2288 = vrot.slane %v2154, 7
      %v2289 = vsel %vm2224, %v2286, %v2288
      %v2290 = vrot.slane %v2155, 7
      %v2291 = vrot.slane %v2156, 7
      %v2292 = vsel %vm2224, %v2290, %v2291
      %v2293 = vrot.slane %v2157, 7
      %v2294 = vsel %vm2224, %v2291, %v2293
      %v2295 = vrot.slane %v2158, 7
      %v2296 = vrot.slane %v2159, 7
      %v2297 = vsel %vm2224, %v2295, %v2296
      %v2298 = vrot.slane %v2160, 7
      %v2299 = vsel %vm2224, %v2296, %v2298
      %v2300 = vrot.slane %v2161, 7
      %v2301 = vrot.slane %v2162, 7
      %v2302 = vsel %vm2224, %v2300, %v2301
      %v2303 = vrot.slane %v2163, 7
      %v2304 = vsel %vm2224, %v2301, %v2303
      %vm2305 = vcmask 293888
      %v2306 = vsel %vm2305, %v2227, 0
      %v2308 = vsel %vm2305, %v2229, 0
      %v2310 = vsel %vm2305, %v2232, 0
      %v2312 = vsel %vm2305, %v2234, 0
      %v2314 = vsel %vm2305, %v2237, 0
      %v2316 = vsel %vm2305, %v2239, 0
      %v2318 = vsel %vm2305, %v2242, 0
      %v2320 = vsel %vm2305, %v2244, 0
      %v2322 = vsel %vm2305, %v2247, 0
      %v2324 = vsel %vm2305, %v2249, 0
      %v2326 = vsel %vm2305, %v2252, 0
      %v2328 = vsel %vm2305, %v2254, 0
      %v2330 = vsel %vm2305, %v2257, 0
      %v2332 = vsel %vm2305, %v2259, 0
      %v2334 = vsel %vm2305, %v2262, 0
      %v2336 = vsel %vm2305, %v2264, 0
      %v2338 = vsel %vm2305, %v2267, 0
      %v2340 = vsel %vm2305, %v2269, 0
      %v2342 = vsel %vm2305, %v2272, 0
      %v2344 = vsel %vm2305, %v2274, 0
      %v2346 = vsel %vm2305, %v2277, 0
      %v2348 = vsel %vm2305, %v2279, 0
      %v2350 = vsel %vm2305, %v2282, 0
      %v2352 = vsel %vm2305, %v2284, 0
      %v2354 = vsel %vm2305, %v2287, 0
      %v2356 = vsel %vm2305, %v2289, 0
      %v2358 = vsel %vm2305, %v2292, 0
      %v2360 = vsel %vm2305, %v2294, 0
      %v2362 = vsel %vm2305, %v2297, 0
      %v2364 = vsel %vm2305, %v2299, 0
      %v2366 = vsel %vm2305, %v2302, 0
      %v2368 = vsel %vm2305, %v2304, 0
      %vm2370 = vcmask 1043456
      %v2372 = vsel %vm2370, %v2168, 0
      %2374 = vmatprep.subr.mxu0 0.0
      %2375 = vmatpush1.msra.mxu0 0.0
      %2376 = vmatprep.subr.mxu0 0.0
      %2377 = vmatpush1.msra.mxu0 0.0
      %2378 = vmatprep.subr.mxu0 0.0
      %2379 = vmatpush1.msra.mxu0 0.0
      %2380 = vmatprep.subr.mxu0 0.0
      %2381 = vmatpush1.msra.mxu0 0.0
      %2382 = vmatprep.subr.mxu0 0.0
      %2383 = vmatpush1.msra.mxu0 0.0
      %2384 = vmatprep.subr.mxu0 0.0
      %2385 = vmatpush1.msra.mxu0 0.0
      %2386 = vmatprep.subr.mxu0 0.0
      %2387 = vmatpush1.msra.mxu0 0.0
      %2388 = vmatprep.subr.mxu0 0.0
      %2389 = vmatpush1.msra.mxu0 0.0
      %2390 = vmatprep.subr.mxu0 0.0
      %2391 = vmatpush1.msra.mxu0 0.0
      %2392 = vmatprep.subr.mxu0 0.0
      %2393 = vmatpush1.msra.mxu0 0.0
      %2394 = vmatprep.subr.mxu0 0.0
      %2395 = vmatpush1.msra.mxu0 0.0
      %2396 = vmatprep.subr.mxu0 0.0
      %2397 = vmatpush1.msra.mxu0 %v2372
      %2398 = vmatprep.subr.mxu0 0.0
      %2399 = vmatpush1.msra.mxu0 %v2167
      %2400 = vmatprep.subr.mxu0 0.0
      %2401 = vmatpush1.msra.mxu0 %v2166
      %2402 = vmatprep.subr.mxu0 0.0
      %2403 = vmatpush1.msra.mxu0 %v2165
      %2404 = vmatprep.subr.mxu0 0.0
      %2405 = vmatpush1.msra.mxu0 %v2164
      %2406 = vmatprep.subr.mxu0 0.0
      %2407 = vmatpush2.msra.mxu0 0.0
      %2408 = vmatprep.subr.mxu0 0.0
      %2409 = vmatpush2.msra.mxu0 0.0
      %2410 = vmatprep.subr.mxu0 0.0
      %2411 = vmatpush2.msra.mxu0 0.0
      %2412 = vmatprep.subr.mxu0 0.0
      %2413 = vmatpush2.msra.mxu0 0.0
      %2414 = vmatprep.subr.mxu0 0.0
      %2415 = vmatpush2.msra.mxu0 0.0
      %2416 = vmatprep.subr.mxu0 0.0
      %2417 = vmatpush2.msra.mxu0 0.0
      %2418 = vmatprep.subr.mxu0 0.0
      %2419 = vmatpush2.msra.mxu0 0.0
      %2420 = vmatprep.subr.mxu0 0.0
      %2421 = vmatpush2.msra.mxu0 0.0
      %2422 = vmatprep.subr.mxu0 0.0
      %2423 = vmatpush2.msra.mxu0 0.0
      %2424 = vmatprep.subr.mxu0 0.0
      %2425 = vmatpush2.msra.mxu0 0.0
      %2426 = vmatprep.subr.mxu0 0.0
      %2427 = vmatpush2.msra.mxu0 0.0
      %2428 = vmatprep.subr.mxu0 0.0
      %2429 = vmatpush2.msra.mxu0 0.0
      %2430 = vmatprep.subr.mxu0 0.0
      %2431 = vmatpush2.msra.mxu0 0.0
      %2432 = vmatprep.subr.mxu0 0.0
      %2433 = vmatpush2.msra.mxu0 0.0
      %2434 = vmatprep.subr.mxu0 0.0
      %2435 = vmatpush2.msra.mxu0 0.0
      %2436 = vmatprep.subr.mxu0 0.0
      %2437 = vmatpush2.msra.mxu0 0.0
      %2438 = vmatprep.mubr.f32.mxu0 0.0
      %2439 = vmatmul.mubr.f32.gmra.mxu0 %v2306
      %v2440 = vpop.f32.mrf.mxu0
      %v2441 = vadd.f32 %v2174, %v2440
      %v2442 = vpop.f32.mrf.mxu0
      %2443 = vmatprep.mubr.f32.mxu0 0.0
      %2444 = vmatmul.mubr.f32.gmra.mxu0 %v2308
      %v2445 = vpop.f32.mrf.mxu0
      %v2446 = vadd.f32 %v2174, %v2445
      %v2447 = vpop.f32.mrf.mxu0
      %2448 = vmatprep.mubr.f32.mxu0 0.0
      %2449 = vmatmul.mubr.f32.gmra.mxu0 %v2310
      %v2450 = vpop.f32.mrf.mxu0
      %v2451 = vadd.f32 %v2174, %v2450
      %v2452 = vpop.f32.mrf.mxu0
      %2453 = vmatprep.mubr.f32.mxu0 0.0
      %2454 = vmatmul.mubr.f32.gmra.mxu0 %v2312
      %v2455 = vpop.f32.mrf.mxu0
      %v2456 = vadd.f32 %v2174, %v2455
      %v2457 = vpop.f32.mrf.mxu0
      %2458 = vmatprep.mubr.f32.mxu0 0.0
      %2459 = vmatmul.mubr.f32.gmra.mxu0 %v2314
      %v2460 = vpop.f32.mrf.mxu0
      %v2461 = vadd.f32 %v2174, %v2460
      %v2462 = vpop.f32.mrf.mxu0
      %2463 = vmatprep.mubr.f32.mxu0 0.0
      %2464 = vmatmul.mubr.f32.gmra.mxu0 %v2316
      %v2465 = vpop.f32.mrf.mxu0
      %v2466 = vadd.f32 %v2174, %v2465
      %v2467 = vpop.f32.mrf.mxu0
      %2468 = vmatprep.mubr.f32.mxu0 0.0
      %2469 = vmatmul.mubr.f32.gmra.mxu0 %v2318
      %v2470 = vpop.f32.mrf.mxu0
      %v2471 = vadd.f32 %v2174, %v2470
      %v2472 = vpop.f32.mrf.mxu0
      %2473 = vmatprep.mubr.f32.mxu0 0.0
      %2474 = vmatmul.mubr.f32.gmra.mxu0 %v2320
      %v2475 = vpop.f32.mrf.mxu0
      %v2476 = vadd.f32 %v2174, %v2475
      %v2477 = vpop.f32.mrf.mxu0
      %2478 = vmatprep.mubr.f32.mxu0 0.0
      %2479 = vmatmul.mubr.f32.gmra.mxu0 %v2322
      %v2480 = vpop.f32.mrf.mxu0
      %v2481 = vadd.f32 %v2174, %v2480
      %v2482 = vpop.f32.mrf.mxu0
      %2483 = vmatprep.mubr.f32.mxu0 0.0
      %2484 = vmatmul.mubr.f32.gmra.mxu0 %v2324
      %v2485 = vpop.f32.mrf.mxu0
      %v2486 = vadd.f32 %v2174, %v2485
      %v2487 = vpop.f32.mrf.mxu0
      %2488 = vmatprep.mubr.f32.mxu0 0.0
      %2489 = vmatmul.mubr.f32.gmra.mxu0 %v2326
      %v2490 = vpop.f32.mrf.mxu0
      %v2491 = vadd.f32 %v2174, %v2490
      %v2492 = vpop.f32.mrf.mxu0
      %2493 = vmatprep.mubr.f32.mxu0 0.0
      %2494 = vmatmul.mubr.f32.gmra.mxu0 %v2328
      %v2495 = vpop.f32.mrf.mxu0
      %v2496 = vadd.f32 %v2174, %v2495
      %v2497 = vpop.f32.mrf.mxu0
      %2498 = vmatprep.mubr.f32.mxu0 0.0
      %2499 = vmatmul.mubr.f32.gmra.mxu0 %v2330
      %v2500 = vpop.f32.mrf.mxu0
      %v2501 = vadd.f32 %v2174, %v2500
      %v2502 = vpop.f32.mrf.mxu0
      %2503 = vmatprep.mubr.f32.mxu0 0.0
      %2504 = vmatmul.mubr.f32.gmra.mxu0 %v2332
      %v2505 = vpop.f32.mrf.mxu0
      %v2506 = vadd.f32 %v2174, %v2505
      %v2507 = vpop.f32.mrf.mxu0
      %2508 = vmatprep.mubr.f32.mxu0 0.0
      %2509 = vmatmul.mubr.f32.gmra.mxu0 %v2334
      %v2510 = vpop.f32.mrf.mxu0
      %v2511 = vadd.f32 %v2174, %v2510
      %v2512 = vpop.f32.mrf.mxu0
      %2513 = vmatprep.mubr.f32.mxu0 0.0
      %2514 = vmatmul.mubr.f32.gmra.mxu0 %v2336
      %v2515 = vpop.f32.mrf.mxu0
      %v2516 = vadd.f32 %v2174, %v2515
      %v2517 = vpop.f32.mrf.mxu0
      %2518 = vmatprep.mubr.f32.mxu0 0.0
      %2519 = vmatmul.mubr.f32.gmra.mxu0 %v2338
      %v2520 = vpop.f32.mrf.mxu0
      %v2521 = vadd.f32 %v2174, %v2520
      %v2522 = vpop.f32.mrf.mxu0
      %2523 = vmatprep.mubr.f32.mxu0 0.0
      %2524 = vmatmul.mubr.f32.gmra.mxu0 %v2340
      %v2525 = vpop.f32.mrf.mxu0
      %v2526 = vadd.f32 %v2174, %v2525
      %v2527 = vpop.f32.mrf.mxu0
      %2528 = vmatprep.mubr.f32.mxu0 0.0
      %2529 = vmatmul.mubr.f32.gmra.mxu0 %v2342
      %v2530 = vpop.f32.mrf.mxu0
      %v2531 = vadd.f32 %v2174, %v2530
      %v2532 = vpop.f32.mrf.mxu0
      %2533 = vmatprep.mubr.f32.mxu0 0.0
      %2534 = vmatmul.mubr.f32.gmra.mxu0 %v2344
      %v2535 = vpop.f32.mrf.mxu0
      %v2536 = vadd.f32 %v2174, %v2535
      %v2537 = vpop.f32.mrf.mxu0
      %2538 = vmatprep.mubr.f32.mxu0 0.0
      %2539 = vmatmul.mubr.f32.gmra.mxu0 %v2346
      %v2540 = vpop.f32.mrf.mxu0
      %v2541 = vadd.f32 %v2174, %v2540
      %v2542 = vpop.f32.mrf.mxu0
      %2543 = vmatprep.mubr.f32.mxu0 0.0
      %2544 = vmatmul.mubr.f32.gmra.mxu0 %v2348
      %v2545 = vpop.f32.mrf.mxu0
      %v2546 = vadd.f32 %v2174, %v2545
      %v2547 = vpop.f32.mrf.mxu0
      %2548 = vmatprep.mubr.f32.mxu0 0.0
      %2549 = vmatmul.mubr.f32.gmra.mxu0 %v2350
      %v2550 = vpop.f32.mrf.mxu0
      %v2551 = vadd.f32 %v2174, %v2550
      %v2552 = vpop.f32.mrf.mxu0
      %2553 = vmatprep.mubr.f32.mxu0 0.0
      %2554 = vmatmul.mubr.f32.gmra.mxu0 %v2352
      %v2555 = vpop.f32.mrf.mxu0
      %v2556 = vadd.f32 %v2174, %v2555
      %v2557 = vpop.f32.mrf.mxu0
      %2558 = vmatprep.mubr.f32.mxu0 0.0
      %2559 = vmatmul.mubr.f32.gmra.mxu0 %v2354
      %v2560 = vpop.f32.mrf.mxu0
      %v2561 = vadd.f32 %v2174, %v2560
      %v2562 = vpop.f32.mrf.mxu0
      %2563 = vmatprep.mubr.f32.mxu0 0.0
      %2564 = vmatmul.mubr.f32.gmra.mxu0 %v2356
      %v2565 = vpop.f32.mrf.mxu0
      %v2566 = vadd.f32 %v2174, %v2565
      %v2567 = vpop.f32.mrf.mxu0
      %2568 = vmatprep.mubr.f32.mxu0 0.0
      %2569 = vmatmul.mubr.f32.gmra.mxu0 %v2358
      %v2570 = vpop.f32.mrf.mxu0
      %v2571 = vadd.f32 %v2174, %v2570
      %v2572 = vpop.f32.mrf.mxu0
      %2573 = vmatprep.mubr.f32.mxu0 0.0
      %2574 = vmatmul.mubr.f32.gmra.mxu0 %v2360
      %v2575 = vpop.f32.mrf.mxu0
      %v2576 = vadd.f32 %v2174, %v2575
      %v2577 = vpop.f32.mrf.mxu0
      %2578 = vmatprep.mubr.f32.mxu0 0.0
      %2579 = vmatmul.mubr.f32.gmra.mxu0 %v2362
      %v2580 = vpop.f32.mrf.mxu0
      %v2581 = vadd.f32 %v2174, %v2580
      %v2582 = vpop.f32.mrf.mxu0
      %2583 = vmatprep.mubr.f32.mxu0 0.0
      %2584 = vmatmul.mubr.f32.gmra.mxu0 %v2364
      %v2585 = vpop.f32.mrf.mxu0
      %v2586 = vadd.f32 %v2174, %v2585
      %v2587 = vpop.f32.mrf.mxu0
      %2588 = vmatprep.mubr.f32.mxu0 0.0
      %2589 = vmatmul.mubr.f32.gmra.mxu0 %v2366
      %v2590 = vpop.f32.mrf.mxu0
      %v2591 = vadd.f32 %v2174, %v2590
      %v2592 = vpop.f32.mrf.mxu0
      %2593 = vmatprep.mubr.f32.mxu0 0.0
      %2594 = vmatmul.mubr.f32.gmra.mxu0 %v2368
      %v2595 = vpop.f32.mrf.mxu0
      %v2596 = vadd.f32 %v2174, %v2595
      %v2597 = vpop.f32.mrf.mxu0
      %2598 = vdwg.mxu0
      %v2599 = vmax.f32 %v2441, 0.0
      %v2600 = vmax.f32 %v2446, 0.0
      %v2601 = vmax.f32 %v2451, 0.0
      %v2602 = vmax.f32 %v2456, 0.0
      %v2603 = vmax.f32 %v2461, 0.0
      %v2604 = vmax.f32 %v2466, 0.0
      %v2605 = vmax.f32 %v2471, 0.0
      %v2606 = vmax.f32 %v2476, 0.0
      %v2607 = vmax.f32 %v2481, 0.0
      %v2608 = vmax.f32 %v2486, 0.0
      %v2609 = vmax.f32 %v2491, 0.0
      %v2610 = vmax.f32 %v2496, 0.0
      %v2611 = vmax.f32 %v2501, 0.0
      %v2612 = vmax.f32 %v2506, 0.0
      %v2613 = vmax.f32 %v2511, 0.0
      %v2614 = vmax.f32 %v2516, 0.0
      %v2615 = vmax.f32 %v2521, 0.0
      %v2616 = vmax.f32 %v2526, 0.0
      %v2617 = vmax.f32 %v2531, 0.0
      %v2618 = vmax.f32 %v2536, 0.0
      %v2619 = vmax.f32 %v2541, 0.0
      %v2620 = vmax.f32 %v2546, 0.0
      %v2621 = vmax.f32 %v2551, 0.0
      %v2622 = vmax.f32 %v2556, 0.0
      %v2623 = vmax.f32 %v2561, 0.0
      %v2624 = vmax.f32 %v2566, 0.0
      %v2625 = vmax.f32 %v2571, 0.0
      %v2626 = vmax.f32 %v2576, 0.0
      %v2627 = vmax.f32 %v2581, 0.0
      %v2628 = vmax.f32 %v2586, 0.0
      %v2629 = vmax.f32 %v2591, 0.0
      %v2630 = vmax.f32 %v2596, 0.0
      %2631 = vst.msk [vmem:[#allocation3] sm:$0xff] %vm257, 0.0
      %2632 = vst.msk [vmem:[#allocation3 + $0x20] sm:$0xff] %vm257, 0.0
      %2633 = vst.msk [vmem:[#allocation3 + $0x40] sm:$0xff] %vm257, 0.0
      %2634 = vst.msk [vmem:[#allocation3 + $0x60] sm:$0xff] %vm257, 0.0
      %2635 = vst.msk [vmem:[#allocation3 + $0x80] sm:$0xff] %vm257, 0.0
      %2636 = vst.msk [vmem:[#allocation3 + $0xa0] sm:$0xff] %vm257, 0.0
      %2637 = vst.msk [vmem:[#allocation3 + $0xc0] sm:$0xff] %vm257, 0.0
      %2638 = vst.msk [vmem:[#allocation3 + $0xe0] sm:$0xff] %vm257, 0.0
      %2639 = vst.msk [vmem:[#allocation3 + $0x100] sm:$0xff] %vm257, 0.0
      %2640 = vst.msk [vmem:[#allocation3 + $0x120] sm:$0xff] %vm257, 0.0
      %2641 = vst.msk [vmem:[#allocation3 + $0x140] sm:$0xff] %vm257, 0.0
      %2642 = vst.msk [vmem:[#allocation3 + $0x160] sm:$0xff] %vm257, 0.0
      %2643 = vst.msk [vmem:[#allocation3 + $0x180] sm:$0xff] %vm257, 0.0
      %2644 = vst.msk [vmem:[#allocation3 + $0x1a0] sm:$0xff] %vm257, 0.0
      %2645 = vst.msk [vmem:[#allocation3 + $0x1c0] sm:$0xff] %vm257, 0.0
      %2646 = vst.msk [vmem:[#allocation3 + $0x1e0] sm:$0xff] %vm257, 0.0
      %2647 = vst.msk [vmem:[#allocation3 + $0x200] sm:$0xff] %vm257, 0.0
      %2648 = vst.msk [vmem:[#allocation3 + $0x220] sm:$0xff] %vm257, 0.0
      %2649 = vst.msk [vmem:[#allocation3 + $0x18] sm:$0xff] %vm257, 0.0
      %2650 = vst.msk [vmem:[#allocation3 + $0x38] sm:$0xff] %vm257, 0.0
      %2651 = vst.msk [vmem:[#allocation3 + $0x58] sm:$0xff] %vm257, 0.0
      %2652 = vst.msk [vmem:[#allocation3 + $0x78] sm:$0xff] %vm257, 0.0
      %2653 = vst.msk [vmem:[#allocation3 + $0x98] sm:$0xff] %vm257, 0.0
      %2654 = vst.msk [vmem:[#allocation3 + $0xb8] sm:$0xff] %vm257, 0.0
      %2655 = vst.msk [vmem:[#allocation3 + $0xd8] sm:$0xff] %vm257, 0.0
      %2656 = vst.msk [vmem:[#allocation3 + $0xf8] sm:$0xff] %vm257, 0.0
      %2657 = vst.msk [vmem:[#allocation3 + $0x118] sm:$0xff] %vm257, 0.0
      %2658 = vst.msk [vmem:[#allocation3 + $0x138] sm:$0xff] %vm257, 0.0
      %2659 = vst.msk [vmem:[#allocation3 + $0x158] sm:$0xff] %vm257, 0.0
      %2660 = vst.msk [vmem:[#allocation3 + $0x178] sm:$0xff] %vm257, 0.0
      %2661 = vst.msk [vmem:[#allocation3 + $0x198] sm:$0xff] %vm257, 0.0
      %2662 = vst.msk [vmem:[#allocation3 + $0x1b8] sm:$0xff] %vm257, 0.0
      %2663 = vst.msk [vmem:[#allocation3 + $0x1d8] sm:$0xff] %vm257, 0.0
      %2664 = vst.msk [vmem:[#allocation3 + $0x1f8] sm:$0xff] %vm257, 0.0
      %2665 = vst.msk [vmem:[#allocation3 + $0x218] sm:$0xff] %vm257, 0.0
      %2666 = vst.msk [vmem:[#allocation3 + $0x238] sm:$0xff] %vm257, 0.0
      %2667 = vst.msk [vmem:[#allocation3 + $0x8] sm:$0xff] %vm257, 0.0
      %2668 = vst.msk [vmem:[#allocation3 + $0x10] sm:$0xff] %vm257, 0.0
      %s2669 = scalar_lea.vmem [#allocation3], 544
      %2670 = vst.msk [vmem:[%s2669 + $0x8] sm:$0xff] %vm257, 0.0
      %2671 = vst.msk [vmem:[%s2669 + $0x10] sm:$0xff] %vm257, 0.0
      %s2672 = scalar_lea.vmem [#allocation3], 32
      %2673 = vst.msk [vmem:[%s2672 + $0x8] sm:$0xff] %vm257, %v2599
      %2674 = vst.msk [vmem:[%s2672 + $0x10] sm:$0xff] %vm257, %v2600
      %2675 = vst.msk [vmem:[%s2672 + $0x28] sm:$0xff] %vm257, %v2601
      %2676 = vst.msk [vmem:[%s2672 + $0x30] sm:$0xff] %vm257, %v2602
      %2677 = vst.msk [vmem:[%s2672 + $0x48] sm:$0xff] %vm257, %v2603
      %2678 = vst.msk [vmem:[%s2672 + $0x50] sm:$0xff] %vm257, %v2604
      %2679 = vst.msk [vmem:[%s2672 + $0x68] sm:$0xff] %vm257, %v2605
      %2680 = vst.msk [vmem:[%s2672 + $0x70] sm:$0xff] %vm257, %v2606
      %2681 = vst.msk [vmem:[%s2672 + $0x88] sm:$0xff] %vm257, %v2607
      %2682 = vst.msk [vmem:[%s2672 + $0x90] sm:$0xff] %vm257, %v2608
      %2683 = vst.msk [vmem:[%s2672 + $0xa8] sm:$0xff] %vm257, %v2609
      %2684 = vst.msk [vmem:[%s2672 + $0xb0] sm:$0xff] %vm257, %v2610
      %2685 = vst.msk [vmem:[%s2672 + $0xc8] sm:$0xff] %vm257, %v2611
      %2686 = vst.msk [vmem:[%s2672 + $0xd0] sm:$0xff] %vm257, %v2612
      %2687 = vst.msk [vmem:[%s2672 + $0xe8] sm:$0xff] %vm257, %v2613
      %2688 = vst.msk [vmem:[%s2672 + $0xf0] sm:$0xff] %vm257, %v2614
      %2689 = vst.msk [vmem:[%s2672 + $0x108] sm:$0xff] %vm257, %v2615
      %2690 = vst.msk [vmem:[%s2672 + $0x110] sm:$0xff] %vm257, %v2616
      %2691 = vst.msk [vmem:[%s2672 + $0x128] sm:$0xff] %vm257, %v2617
      %2692 = vst.msk [vmem:[%s2672 + $0x130] sm:$0xff] %vm257, %v2618
      %2693 = vst.msk [vmem:[%s2672 + $0x148] sm:$0xff] %vm257, %v2619
      %2694 = vst.msk [vmem:[%s2672 + $0x150] sm:$0xff] %vm257, %v2620
      %2695 = vst.msk [vmem:[%s2672 + $0x168] sm:$0xff] %vm257, %v2621
      %2696 = vst.msk [vmem:[%s2672 + $0x170] sm:$0xff] %vm257, %v2622
      %2697 = vst.msk [vmem:[%s2672 + $0x188] sm:$0xff] %vm257, %v2623
      %2698 = vst.msk [vmem:[%s2672 + $0x190] sm:$0xff] %vm257, %v2624
      %2699 = vst.msk [vmem:[%s2672 + $0x1a8] sm:$0xff] %vm257, %v2625
      %2700 = vst.msk [vmem:[%s2672 + $0x1b0] sm:$0xff] %vm257, %v2626
      %2701 = vst.msk [vmem:[%s2672 + $0x1c8] sm:$0xff] %vm257, %v2627
      %2702 = vst.msk [vmem:[%s2672 + $0x1d0] sm:$0xff] %vm257, %v2628
      %2703 = vst.msk [vmem:[%s2672 + $0x1e8] sm:$0xff] %vm257, %v2629
      %2704 = vst.msk [vmem:[%s2672 + $0x1f0] sm:$0xff] %vm257, %v2630
      %v2705 = vld [vmem:[#allocation3] sm:$0xff]
      %v2706 = vld [vmem:[#allocation3 + $0x8] sm:$0xff]
      %v2707 = vld [vmem:[#allocation3 + $0x10] sm:$0xff]
      %v2708 = vld [vmem:[#allocation3 + $0x18] sm:$0xff]
      %v2709 = vld [vmem:[#allocation3 + $0x20] sm:$0xff]
      %v2710 = vld [vmem:[#allocation3 + $0x28] sm:$0xff]
      %v2711 = vld [vmem:[#allocation3 + $0x30] sm:$0xff]
      %v2712 = vld [vmem:[#allocation3 + $0x38] sm:$0xff]
      %v2713 = vld [vmem:[#allocation3 + $0x40] sm:$0xff]
      %v2714 = vld [vmem:[#allocation3 + $0x48] sm:$0xff]
      %v2715 = vld [vmem:[#allocation3 + $0x50] sm:$0xff]
      %v2716 = vld [vmem:[#allocation3 + $0x58] sm:$0xff]
      %v2717 = vld [vmem:[#allocation3 + $0x60] sm:$0xff]
      %v2718 = vld [vmem:[#allocation3 + $0x68] sm:$0xff]
      %v2719 = vld [vmem:[#allocation3 + $0x70] sm:$0xff]
      %v2720 = vld [vmem:[#allocation3 + $0x78] sm:$0xff]
      %v2721 = vld [vmem:[#allocation3 + $0x80] sm:$0xff]
      %v2722 = vld [vmem:[#allocation3 + $0x88] sm:$0xff]
      %v2723 = vld [vmem:[#allocation3 + $0x90] sm:$0xff]
      %v2724 = vld [vmem:[#allocation3 + $0x98] sm:$0xff]
      %v2725 = vld [vmem:[#allocation3 + $0xa0] sm:$0xff]
      %v2726 = vld [vmem:[#allocation3 + $0xa8] sm:$0xff]
      %v2727 = vld [vmem:[#allocation3 + $0xb0] sm:$0xff]
      %v2728 = vld [vmem:[#allocation3 + $0xb8] sm:$0xff]
      %v2729 = vld [vmem:[#allocation3 + $0xc0] sm:$0xff]
      %v2730 = vld [vmem:[#allocation3 + $0xc8] sm:$0xff]
      %v2731 = vld [vmem:[#allocation3 + $0xd0] sm:$0xff]
      %v2732 = vld [vmem:[#allocation3 + $0xd8] sm:$0xff]
      %v2733 = vld [vmem:[#allocation3 + $0xe0] sm:$0xff]
      %v2734 = vld [vmem:[#allocation3 + $0xe8] sm:$0xff]
      %v2735 = vld [vmem:[#allocation3 + $0xf0] sm:$0xff]
      %v2736 = vld [vmem:[#allocation3 + $0xf8] sm:$0xff]
      %v2737 = vld [vmem:[#allocation3 + $0x100] sm:$0xff]
      %v2738 = vld [vmem:[#allocation3 + $0x108] sm:$0xff]
      %v2739 = vld [vmem:[#allocation3 + $0x110] sm:$0xff]
      %v2740 = vld [vmem:[#allocation3 + $0x118] sm:$0xff]
      %v2741 = vld [vmem:[#allocation3 + $0x120] sm:$0xff]
      %v2742 = vld [vmem:[#allocation3 + $0x128] sm:$0xff]
      %v2743 = vld [vmem:[#allocation3 + $0x130] sm:$0xff]
      %v2744 = vld [vmem:[#allocation3 + $0x138] sm:$0xff]
      %v2745 = vld [vmem:[#allocation3 + $0x140] sm:$0xff]
      %v2746 = vld [vmem:[#allocation3 + $0x148] sm:$0xff]
      %v2747 = vld [vmem:[#allocation3 + $0x150] sm:$0xff]
      %v2748 = vld [vmem:[#allocation3 + $0x158] sm:$0xff]
      %v2749 = vld [vmem:[#allocation3 + $0x160] sm:$0xff]
      %v2750 = vld [vmem:[#allocation3 + $0x168] sm:$0xff]
      %v2751 = vld [vmem:[#allocation3 + $0x170] sm:$0xff]
      %v2752 = vld [vmem:[#allocation3 + $0x178] sm:$0xff]
      %v2753 = vld [vmem:[#allocation3 + $0x180] sm:$0xff]
      %v2754 = vld [vmem:[#allocation3 + $0x188] sm:$0xff]
      %v2755 = vld [vmem:[#allocation3 + $0x190] sm:$0xff]
      %v2756 = vld [vmem:[#allocation3 + $0x198] sm:$0xff]
      %v2757 = vld [vmem:[#allocation3 + $0x1a0] sm:$0xff]
      %v2758 = vld [vmem:[#allocation3 + $0x1a8] sm:$0xff]
      %v2759 = vld [vmem:[#allocation3 + $0x1b0] sm:$0xff]
      %v2760 = vld [vmem:[#allocation3 + $0x1b8] sm:$0xff]
      %v2761 = vld [vmem:[#allocation3 + $0x1c0] sm:$0xff]
      %v2762 = vld [vmem:[#allocation3 + $0x1c8] sm:$0xff]
      %v2763 = vld [vmem:[#allocation3 + $0x1d0] sm:$0xff]
      %v2764 = vld [vmem:[#allocation3 + $0x1d8] sm:$0xff]
      %v2765 = vld [vmem:[#allocation3 + $0x1e0] sm:$0xff]
      %v2766 = vld [vmem:[#allocation3 + $0x1e8] sm:$0xff]
      %v2767 = vld [vmem:[#allocation3 + $0x1f0] sm:$0xff]
      %v2768 = vld [vmem:[#allocation3 + $0x1f8] sm:$0xff]
      %v2769 = vld [vmem:[#allocation3 + $0x200] sm:$0xff]
      %v2770 = vld [vmem:[#allocation3 + $0x208] sm:$0xff]
      %v2771 = vld [vmem:[#allocation3 + $0x210] sm:$0xff]
      %v2772 = vld [vmem:[#allocation3 + $0x218] sm:$0xff]
      %v2773 = vld [vmem:[#allocation3 + $0x220] sm:$0xff]
      %v2774 = vld [vmem:[#allocation3 + $0x228] sm:$0xff]
      %v2775 = vld [vmem:[#allocation3 + $0x230] sm:$0xff]
      %v2776 = vld [vmem:[#allocation3 + $0x238] sm:$0xff]
      %v2809 = vrot.slane %v2706, 1
      %v2810 = vrot.slane %v2707, 1
      %v2811 = vsel %vm436, %v2809, %v2810
      %v2812 = vrot.slane %v2710, 1
      %v2813 = vrot.slane %v2711, 1
      %v2814 = vsel %vm436, %v2812, %v2813
      %v2815 = vrot.slane %v2714, 1
      %v2816 = vrot.slane %v2715, 1
      %v2817 = vsel %vm436, %v2815, %v2816
      %v2818 = vrot.slane %v2718, 1
      %v2819 = vrot.slane %v2719, 1
      %v2820 = vsel %vm436, %v2818, %v2819
      %v2821 = vrot.slane %v2722, 1
      %v2822 = vrot.slane %v2723, 1
      %v2823 = vsel %vm436, %v2821, %v2822
      %v2824 = vrot.slane %v2726, 1
      %v2825 = vrot.slane %v2727, 1
      %v2826 = vsel %vm436, %v2824, %v2825
      %v2827 = vrot.slane %v2730, 1
      %v2828 = vrot.slane %v2731, 1
      %v2829 = vsel %vm436, %v2827, %v2828
      %v2830 = vrot.slane %v2734, 1
      %v2831 = vrot.slane %v2735, 1
      %v2832 = vsel %vm436, %v2830, %v2831
      %v2833 = vrot.slane %v2738, 1
      %v2834 = vrot.slane %v2739, 1
      %v2835 = vsel %vm436, %v2833, %v2834
      %v2836 = vrot.slane %v2742, 1
      %v2837 = vrot.slane %v2743, 1
      %v2838 = vsel %vm436, %v2836, %v2837
      %v2839 = vrot.slane %v2746, 1
      %v2840 = vrot.slane %v2747, 1
      %v2841 = vsel %vm436, %v2839, %v2840
      %v2842 = vrot.slane %v2750, 1
      %v2843 = vrot.slane %v2751, 1
      %v2844 = vsel %vm436, %v2842, %v2843
      %v2845 = vrot.slane %v2754, 1
      %v2846 = vrot.slane %v2755, 1
      %v2847 = vsel %vm436, %v2845, %v2846
      %v2848 = vrot.slane %v2758, 1
      %v2849 = vrot.slane %v2759, 1
      %v2850 = vsel %vm436, %v2848, %v2849
      %v2851 = vrot.slane %v2762, 1
      %v2852 = vrot.slane %v2763, 1
      %v2853 = vsel %vm436, %v2851, %v2852
      %v2854 = vrot.slane %v2766, 1
      %v2855 = vrot.slane %v2767, 1
      %v2856 = vsel %vm436, %v2854, %v2855
      %2857 = vrot.lane.b32.xlu0 %v2809, 4
      %v2858 = vpop.permute.xlu0 %2857
      %2859 = vrot.lane.b32.xlu0 %v2811, 4
      %v2860 = vpop.permute.xlu0 %2859
      %2861 = vrot.lane.b32.xlu0 %v2810, 4
      %v2862 = vpop.permute.xlu0 %2861
      %2863 = vrot.lane.b32.xlu0 %v2812, 4
      %v2864 = vpop.permute.xlu0 %2863
      %2865 = vrot.lane.b32.xlu0 %v2814, 4
      %v2866 = vpop.permute.xlu0 %2865
      %2867 = vrot.lane.b32.xlu0 %v2813, 4
      %v2868 = vpop.permute.xlu0 %2867
      %2869 = vrot.lane.b32.xlu0 %v2815, 4
      %v2870 = vpop.permute.xlu0 %2869
      %2871 = vrot.lane.b32.xlu0 %v2817, 4
      %v2872 = vpop.permute.xlu0 %2871
      %2873 = vrot.lane.b32.xlu0 %v2816, 4
      %v2874 = vpop.permute.xlu0 %2873
      %2875 = vrot.lane.b32.xlu0 %v2818, 4
      %v2876 = vpop.permute.xlu0 %2875
      %2877 = vrot.lane.b32.xlu0 %v2820, 4
      %v2878 = vpop.permute.xlu0 %2877
      %2879 = vrot.lane.b32.xlu0 %v2819, 4
      %v2880 = vpop.permute.xlu0 %2879
      %2881 = vrot.lane.b32.xlu0 %v2821, 4
      %v2882 = vpop.permute.xlu0 %2881
      %2883 = vrot.lane.b32.xlu0 %v2823, 4
      %v2884 = vpop.permute.xlu0 %2883
      %2885 = vrot.lane.b32.xlu0 %v2822, 4
      %v2886 = vpop.permute.xlu0 %2885
      %2887 = vrot.lane.b32.xlu0 %v2824, 4
      %v2888 = vpop.permute.xlu0 %2887
      %2889 = vrot.lane.b32.xlu0 %v2826, 4
      %v2890 = vpop.permute.xlu0 %2889
      %2891 = vrot.lane.b32.xlu0 %v2825, 4
      %v2892 = vpop.permute.xlu0 %2891
      %2893 = vrot.lane.b32.xlu0 %v2827, 4
      %v2894 = vpop.permute.xlu0 %2893
      %2895 = vrot.lane.b32.xlu0 %v2829, 4
      %v2896 = vpop.permute.xlu0 %2895
      %2897 = vrot.lane.b32.xlu0 %v2828, 4
      %v2898 = vpop.permute.xlu0 %2897
      %2899 = vrot.lane.b32.xlu0 %v2830, 4
      %v2900 = vpop.permute.xlu0 %2899
      %2901 = vrot.lane.b32.xlu0 %v2832, 4
      %v2902 = vpop.permute.xlu0 %2901
      %2903 = vrot.lane.b32.xlu0 %v2831, 4
      %v2904 = vpop.permute.xlu0 %2903
      %2905 = vrot.lane.b32.xlu0 %v2833, 4
      %v2906 = vpop.permute.xlu0 %2905
      %2907 = vrot.lane.b32.xlu0 %v2835, 4
      %v2908 = vpop.permute.xlu0 %2907
      %2909 = vrot.lane.b32.xlu0 %v2834, 4
      %v2910 = vpop.permute.xlu0 %2909
      %2911 = vrot.lane.b32.xlu0 %v2836, 4
      %v2912 = vpop.permute.xlu0 %2911
      %2913 = vrot.lane.b32.xlu0 %v2838, 4
      %v2914 = vpop.permute.xlu0 %2913
      %2915 = vrot.lane.b32.xlu0 %v2837, 4
      %v2916 = vpop.permute.xlu0 %2915
      %2917 = vrot.lane.b32.xlu0 %v2839, 4
      %v2918 = vpop.permute.xlu0 %2917
      %2919 = vrot.lane.b32.xlu0 %v2841, 4
      %v2920 = vpop.permute.xlu0 %2919
      %2921 = vrot.lane.b32.xlu0 %v2840, 4
      %v2922 = vpop.permute.xlu0 %2921
      %2923 = vrot.lane.b32.xlu0 %v2842, 4
      %v2924 = vpop.permute.xlu0 %2923
      %2925 = vrot.lane.b32.xlu0 %v2844, 4
      %v2926 = vpop.permute.xlu0 %2925
      %2927 = vrot.lane.b32.xlu0 %v2843, 4
      %v2928 = vpop.permute.xlu0 %2927
      %2929 = vrot.lane.b32.xlu0 %v2845, 4
      %v2930 = vpop.permute.xlu0 %2929
      %2931 = vrot.lane.b32.xlu0 %v2847, 4
      %v2932 = vpop.permute.xlu0 %2931
      %2933 = vrot.lane.b32.xlu0 %v2846, 4
      %v2934 = vpop.permute.xlu0 %2933
      %2935 = vrot.lane.b32.xlu0 %v2848, 4
      %v2936 = vpop.permute.xlu0 %2935
      %2937 = vrot.lane.b32.xlu0 %v2850, 4
      %v2938 = vpop.permute.xlu0 %2937
      %2939 = vrot.lane.b32.xlu0 %v2849, 4
      %v2940 = vpop.permute.xlu0 %2939
      %2941 = vrot.lane.b32.xlu0 %v2851, 4
      %v2942 = vpop.permute.xlu0 %2941
      %2943 = vrot.lane.b32.xlu0 %v2853, 4
      %v2944 = vpop.permute.xlu0 %2943
      %2945 = vrot.lane.b32.xlu0 %v2852, 4
      %v2946 = vpop.permute.xlu0 %2945
      %2947 = vrot.lane.b32.xlu0 %v2854, 4
      %v2948 = vpop.permute.xlu0 %2947
      %2949 = vrot.lane.b32.xlu0 %v2856, 4
      %v2950 = vpop.permute.xlu0 %2949
      %2951 = vrot.lane.b32.xlu0 %v2855, 4
      %v2952 = vpop.permute.xlu0 %2951
      %v3017 = vrot.slane %v2706, 2
      %v3018 = vrot.slane %v2707, 2
      %v3019 = vsel %vm645, %v3017, %v3018
      %v3020 = vrot.slane %v2708, 2
      %v3021 = vsel %vm645, %v3018, %v3020
      %v3022 = vrot.slane %v2710, 2
      %v3023 = vrot.slane %v2711, 2
      %v3024 = vsel %vm645, %v3022, %v3023
      %v3025 = vrot.slane %v2712, 2
      %v3026 = vsel %vm645, %v3023, %v3025
      %v3027 = vrot.slane %v2714, 2
      %v3028 = vrot.slane %v2715, 2
      %v3029 = vsel %vm645, %v3027, %v3028
      %v3030 = vrot.slane %v2716, 2
      %v3031 = vsel %vm645, %v3028, %v3030
      %v3032 = vrot.slane %v2718, 2
      %v3033 = vrot.slane %v2719, 2
      %v3034 = vsel %vm645, %v3032, %v3033
      %v3035 = vrot.slane %v2720, 2
      %v3036 = vsel %vm645, %v3033, %v3035
      %v3037 = vrot.slane %v2722, 2
      %v3038 = vrot.slane %v2723, 2
      %v3039 = vsel %vm645, %v3037, %v3038
      %v3040 = vrot.slane %v2724, 2
      %v3041 = vsel %vm645, %v3038, %v3040
      %v3042 = vrot.slane %v2726, 2
      %v3043 = vrot.slane %v2727, 2
      %v3044 = vsel %vm645, %v3042, %v3043
      %v3045 = vrot.slane %v2728, 2
      %v3046 = vsel %vm645, %v3043, %v3045
      %v3047 = vrot.slane %v2730, 2
      %v3048 = vrot.slane %v2731, 2
      %v3049 = vsel %vm645, %v3047, %v3048
      %v3050 = vrot.slane %v2732, 2
      %v3051 = vsel %vm645, %v3048, %v3050
      %v3052 = vrot.slane %v2734, 2
      %v3053 = vrot.slane %v2735, 2
      %v3054 = vsel %vm645, %v3052, %v3053
      %v3055 = vrot.slane %v2736, 2
      %v3056 = vsel %vm645, %v3053, %v3055
      %v3057 = vrot.slane %v2738, 2
      %v3058 = vrot.slane %v2739, 2
      %v3059 = vsel %vm645, %v3057, %v3058
      %v3060 = vrot.slane %v2740, 2
      %v3061 = vsel %vm645, %v3058, %v3060
      %v3062 = vrot.slane %v2742, 2
      %v3063 = vrot.slane %v2743, 2
      %v3064 = vsel %vm645, %v3062, %v3063
      %v3065 = vrot.slane %v2744, 2
      %v3066 = vsel %vm645, %v3063, %v3065
      %v3067 = vrot.slane %v2746, 2
      %v3068 = vrot.slane %v2747, 2
      %v3069 = vsel %vm645, %v3067, %v3068
      %v3070 = vrot.slane %v2748, 2
      %v3071 = vsel %vm645, %v3068, %v3070
      %v3072 = vrot.slane %v2750, 2
      %v3073 = vrot.slane %v2751, 2
      %v3074 = vsel %vm645, %v3072, %v3073
      %v3075 = vrot.slane %v2752, 2
      %v3076 = vsel %vm645, %v3073, %v3075
      %v3077 = vrot.slane %v2754, 2
      %v3078 = vrot.slane %v2755, 2
      %v3079 = vsel %vm645, %v3077, %v3078
      %v3080 = vrot.slane %v2756, 2
      %v3081 = vsel %vm645, %v3078, %v3080
      %v3082 = vrot.slane %v2758, 2
      %v3083 = vrot.slane %v2759, 2
      %v3084 = vsel %vm645, %v3082, %v3083
      %v3085 = vrot.slane %v2760, 2
      %v3086 = vsel %vm645, %v3083, %v3085
      %v3087 = vrot.slane %v2762, 2
      %v3088 = vrot.slane %v2763, 2
      %v3089 = vsel %vm645, %v3087, %v3088
      %v3090 = vrot.slane %v2764, 2
      %v3091 = vsel %vm645, %v3088, %v3090
      %v3092 = vrot.slane %v2766, 2
      %v3093 = vrot.slane %v2767, 2
      %v3094 = vsel %vm645, %v3092, %v3093
      %v3095 = vrot.slane %v2768, 2
      %v3096 = vsel %vm645, %v3093, %v3095
      %3097 = vrot.lane.b32.xlu0 %v3017, 8
      %v3098 = vpop.permute.xlu0 %3097
      %3099 = vrot.lane.b32.xlu0 %v3019, 8
      %v3100 = vpop.permute.xlu0 %3099
      %3101 = vrot.lane.b32.xlu0 %v3021, 8
      %v3102 = vpop.permute.xlu0 %3101
      %3103 = vrot.lane.b32.xlu0 %v3022, 8
      %v3104 = vpop.permute.xlu0 %3103
      %3105 = vrot.lane.b32.xlu0 %v3024, 8
      %v3106 = vpop.permute.xlu0 %3105
      %3107 = vrot.lane.b32.xlu0 %v3026, 8
      %v3108 = vpop.permute.xlu0 %3107
      %3109 = vrot.lane.b32.xlu0 %v3027, 8
      %v3110 = vpop.permute.xlu0 %3109
      %3111 = vrot.lane.b32.xlu0 %v3029, 8
      %v3112 = vpop.permute.xlu0 %3111
      %3113 = vrot.lane.b32.xlu0 %v3031, 8
      %v3114 = vpop.permute.xlu0 %3113
      %3115 = vrot.lane.b32.xlu0 %v3032, 8
      %v3116 = vpop.permute.xlu0 %3115
      %3117 = vrot.lane.b32.xlu0 %v3034, 8
      %v3118 = vpop.permute.xlu0 %3117
      %3119 = vrot.lane.b32.xlu0 %v3036, 8
      %v3120 = vpop.permute.xlu0 %3119
      %3121 = vrot.lane.b32.xlu0 %v3037, 8
      %v3122 = vpop.permute.xlu0 %3121
      %3123 = vrot.lane.b32.xlu0 %v3039, 8
      %v3124 = vpop.permute.xlu0 %3123
      %3125 = vrot.lane.b32.xlu0 %v3041, 8
      %v3126 = vpop.permute.xlu0 %3125
      %3127 = vrot.lane.b32.xlu0 %v3042, 8
      %v3128 = vpop.permute.xlu0 %3127
      %3129 = vrot.lane.b32.xlu0 %v3044, 8
      %v3130 = vpop.permute.xlu0 %3129
      %3131 = vrot.lane.b32.xlu0 %v3046, 8
      %v3132 = vpop.permute.xlu0 %3131
      %3133 = vrot.lane.b32.xlu0 %v3047, 8
      %v3134 = vpop.permute.xlu0 %3133
      %3135 = vrot.lane.b32.xlu0 %v3049, 8
      %v3136 = vpop.permute.xlu0 %3135
      %3137 = vrot.lane.b32.xlu0 %v3051, 8
      %v3138 = vpop.permute.xlu0 %3137
      %3139 = vrot.lane.b32.xlu0 %v3052, 8
      %v3140 = vpop.permute.xlu0 %3139
      %3141 = vrot.lane.b32.xlu0 %v3054, 8
      %v3142 = vpop.permute.xlu0 %3141
      %3143 = vrot.lane.b32.xlu0 %v3056, 8
      %v3144 = vpop.permute.xlu0 %3143
      %3145 = vrot.lane.b32.xlu0 %v3057, 8
      %v3146 = vpop.permute.xlu0 %3145
      %3147 = vrot.lane.b32.xlu0 %v3059, 8
      %v3148 = vpop.permute.xlu0 %3147
      %3149 = vrot.lane.b32.xlu0 %v3061, 8
      %v3150 = vpop.permute.xlu0 %3149
      %3151 = vrot.lane.b32.xlu0 %v3062, 8
      %v3152 = vpop.permute.xlu0 %3151
      %3153 = vrot.lane.b32.xlu0 %v3064, 8
      %v3154 = vpop.permute.xlu0 %3153
      %3155 = vrot.lane.b32.xlu0 %v3066, 8
      %v3156 = vpop.permute.xlu0 %3155
      %3157 = vrot.lane.b32.xlu0 %v3067, 8
      %v3158 = vpop.permute.xlu0 %3157
      %3159 = vrot.lane.b32.xlu0 %v3069, 8
      %v3160 = vpop.permute.xlu0 %3159
      %3161 = vrot.lane.b32.xlu0 %v3071, 8
      %v3162 = vpop.permute.xlu0 %3161
      %3163 = vrot.lane.b32.xlu0 %v3072, 8
      %v3164 = vpop.permute.xlu0 %3163
      %3165 = vrot.lane.b32.xlu0 %v3074, 8
      %v3166 = vpop.permute.xlu0 %3165
      %3167 = vrot.lane.b32.xlu0 %v3076, 8
      %v3168 = vpop.permute.xlu0 %3167
      %3169 = vrot.lane.b32.xlu0 %v3077, 8
      %v3170 = vpop.permute.xlu0 %3169
      %3171 = vrot.lane.b32.xlu0 %v3079, 8
      %v3172 = vpop.permute.xlu0 %3171
      %3173 = vrot.lane.b32.xlu0 %v3081, 8
      %v3174 = vpop.permute.xlu0 %3173
      %3175 = vrot.lane.b32.xlu0 %v3082, 8
      %v3176 = vpop.permute.xlu0 %3175
      %3177 = vrot.lane.b32.xlu0 %v3084, 8
      %v3178 = vpop.permute.xlu0 %3177
      %3179 = vrot.lane.b32.xlu0 %v3086, 8
      %v3180 = vpop.permute.xlu0 %3179
      %3181 = vrot.lane.b32.xlu0 %v3087, 8
      %v3182 = vpop.permute.xlu0 %3181
      %3183 = vrot.lane.b32.xlu0 %v3089, 8
      %v3184 = vpop.permute.xlu0 %3183
      %3185 = vrot.lane.b32.xlu0 %v3091, 8
      %v3186 = vpop.permute.xlu0 %3185
      %3187 = vrot.lane.b32.xlu0 %v3092, 8
      %v3188 = vpop.permute.xlu0 %3187
      %3189 = vrot.lane.b32.xlu0 %v3094, 8
      %v3190 = vpop.permute.xlu0 %3189
      %3191 = vrot.lane.b32.xlu0 %v3096, 8
      %v3192 = vpop.permute.xlu0 %3191
      %3259 = vrot.lane.b32.xlu0 %v2709, 12
      %v3260 = vpop.permute.xlu0 %3259
      %3261 = vrot.lane.b32.xlu0 %v2710, 12
      %v3262 = vpop.permute.xlu0 %3261
      %3263 = vrot.lane.b32.xlu0 %v2711, 12
      %v3264 = vpop.permute.xlu0 %3263
      %3265 = vrot.lane.b32.xlu0 %v2713, 12
      %v3266 = vpop.permute.xlu0 %3265
      %3267 = vrot.lane.b32.xlu0 %v2714, 12
      %v3268 = vpop.permute.xlu0 %3267
      %3269 = vrot.lane.b32.xlu0 %v2715, 12
      %v3270 = vpop.permute.xlu0 %3269
      %3271 = vrot.lane.b32.xlu0 %v2717, 12
      %v3272 = vpop.permute.xlu0 %3271
      %3273 = vrot.lane.b32.xlu0 %v2718, 12
      %v3274 = vpop.permute.xlu0 %3273
      %3275 = vrot.lane.b32.xlu0 %v2719, 12
      %v3276 = vpop.permute.xlu0 %3275
      %3277 = vrot.lane.b32.xlu0 %v2721, 12
      %v3278 = vpop.permute.xlu0 %3277
      %3279 = vrot.lane.b32.xlu0 %v2722, 12
      %v3280 = vpop.permute.xlu0 %3279
      %3281 = vrot.lane.b32.xlu0 %v2723, 12
      %v3282 = vpop.permute.xlu0 %3281
      %3283 = vrot.lane.b32.xlu0 %v2725, 12
      %v3284 = vpop.permute.xlu0 %3283
      %3285 = vrot.lane.b32.xlu0 %v2726, 12
      %v3286 = vpop.permute.xlu0 %3285
      %3287 = vrot.lane.b32.xlu0 %v2727, 12
      %v3288 = vpop.permute.xlu0 %3287
      %3289 = vrot.lane.b32.xlu0 %v2729, 12
      %v3290 = vpop.permute.xlu0 %3289
      %3291 = vrot.lane.b32.xlu0 %v2730, 12
      %v3292 = vpop.permute.xlu0 %3291
      %3293 = vrot.lane.b32.xlu0 %v2731, 12
      %v3294 = vpop.permute.xlu0 %3293
      %3295 = vrot.lane.b32.xlu0 %v2733, 12
      %v3296 = vpop.permute.xlu0 %3295
      %3297 = vrot.lane.b32.xlu0 %v2734, 12
      %v3298 = vpop.permute.xlu0 %3297
      %3299 = vrot.lane.b32.xlu0 %v2735, 12
      %v3300 = vpop.permute.xlu0 %3299
      %3301 = vrot.lane.b32.xlu0 %v2737, 12
      %v3302 = vpop.permute.xlu0 %3301
      %3303 = vrot.lane.b32.xlu0 %v2738, 12
      %v3304 = vpop.permute.xlu0 %3303
      %3305 = vrot.lane.b32.xlu0 %v2739, 12
      %v3306 = vpop.permute.xlu0 %3305
      %3307 = vrot.lane.b32.xlu0 %v2741, 12
      %v3308 = vpop.permute.xlu0 %3307
      %3309 = vrot.lane.b32.xlu0 %v2742, 12
      %v3310 = vpop.permute.xlu0 %3309
      %3311 = vrot.lane.b32.xlu0 %v2743, 12
      %v3312 = vpop.permute.xlu0 %3311
      %3313 = vrot.lane.b32.xlu0 %v2745, 12
      %v3314 = vpop.permute.xlu0 %3313
      %3315 = vrot.lane.b32.xlu0 %v2746, 12
      %v3316 = vpop.permute.xlu0 %3315
      %3317 = vrot.lane.b32.xlu0 %v2747, 12
      %v3318 = vpop.permute.xlu0 %3317
      %3319 = vrot.lane.b32.xlu0 %v2749, 12
      %v3320 = vpop.permute.xlu0 %3319
      %3321 = vrot.lane.b32.xlu0 %v2750, 12
      %v3322 = vpop.permute.xlu0 %3321
      %3323 = vrot.lane.b32.xlu0 %v2751, 12
      %v3324 = vpop.permute.xlu0 %3323
      %3325 = vrot.lane.b32.xlu0 %v2753, 12
      %v3326 = vpop.permute.xlu0 %3325
      %3327 = vrot.lane.b32.xlu0 %v2754, 12
      %v3328 = vpop.permute.xlu0 %3327
      %3329 = vrot.lane.b32.xlu0 %v2755, 12
      %v3330 = vpop.permute.xlu0 %3329
      %3331 = vrot.lane.b32.xlu0 %v2757, 12
      %v3332 = vpop.permute.xlu0 %3331
      %3333 = vrot.lane.b32.xlu0 %v2758, 12
      %v3334 = vpop.permute.xlu0 %3333
      %3335 = vrot.lane.b32.xlu0 %v2759, 12
      %v3336 = vpop.permute.xlu0 %3335
      %3337 = vrot.lane.b32.xlu0 %v2761, 12
      %v3338 = vpop.permute.xlu0 %3337
      %3339 = vrot.lane.b32.xlu0 %v2762, 12
      %v3340 = vpop.permute.xlu0 %3339
      %3341 = vrot.lane.b32.xlu0 %v2763, 12
      %v3342 = vpop.permute.xlu0 %3341
      %3343 = vrot.lane.b32.xlu0 %v2765, 12
      %v3344 = vpop.permute.xlu0 %3343
      %3345 = vrot.lane.b32.xlu0 %v2766, 12
      %v3346 = vpop.permute.xlu0 %3345
      %3347 = vrot.lane.b32.xlu0 %v2767, 12
      %v3348 = vpop.permute.xlu0 %3347
      %3349 = vrot.lane.b32.xlu0 %v2769, 12
      %v3350 = vpop.permute.xlu0 %3349
      %3351 = vrot.lane.b32.xlu0 %v2770, 12
      %v3352 = vpop.permute.xlu0 %3351
      %3353 = vrot.lane.b32.xlu0 %v2771, 12
      %v3354 = vpop.permute.xlu0 %3353
      %v3403 = vrot.slane %v2770, 1
      %v3404 = vrot.slane %v2771, 1
      %v3405 = vsel %vm436, %v3403, %v3404
      %3406 = vrot.lane.b32.xlu0 %v2812, 16
      %v3407 = vpop.permute.xlu0 %3406
      %3408 = vrot.lane.b32.xlu0 %v2814, 16
      %v3409 = vpop.permute.xlu0 %3408
      %3410 = vrot.lane.b32.xlu0 %v2813, 16
      %v3411 = vpop.permute.xlu0 %3410
      %3412 = vrot.lane.b32.xlu0 %v2815, 16
      %v3413 = vpop.permute.xlu0 %3412
      %3414 = vrot.lane.b32.xlu0 %v2817, 16
      %v3415 = vpop.permute.xlu0 %3414
      %3416 = vrot.lane.b32.xlu0 %v2816, 16
      %v3417 = vpop.permute.xlu0 %3416
      %3418 = vrot.lane.b32.xlu0 %v2818, 16
      %v3419 = vpop.permute.xlu0 %3418
      %3420 = vrot.lane.b32.xlu0 %v2820, 16
      %v3421 = vpop.permute.xlu0 %3420
      %3422 = vrot.lane.b32.xlu0 %v2819, 16
      %v3423 = vpop.permute.xlu0 %3422
      %3424 = vrot.lane.b32.xlu0 %v2821, 16
      %v3425 = vpop.permute.xlu0 %3424
      %3426 = vrot.lane.b32.xlu0 %v2823, 16
      %v3427 = vpop.permute.xlu0 %3426
      %3428 = vrot.lane.b32.xlu0 %v2822, 16
      %v3429 = vpop.permute.xlu0 %3428
      %3430 = vrot.lane.b32.xlu0 %v2824, 16
      %v3431 = vpop.permute.xlu0 %3430
      %3432 = vrot.lane.b32.xlu0 %v2826, 16
      %v3433 = vpop.permute.xlu0 %3432
      %3434 = vrot.lane.b32.xlu0 %v2825, 16
      %v3435 = vpop.permute.xlu0 %3434
      %3436 = vrot.lane.b32.xlu0 %v2827, 16
      %v3437 = vpop.permute.xlu0 %3436
      %3438 = vrot.lane.b32.xlu0 %v2829, 16
      %v3439 = vpop.permute.xlu0 %3438
      %3440 = vrot.lane.b32.xlu0 %v2828, 16
      %v3441 = vpop.permute.xlu0 %3440
      %3442 = vrot.lane.b32.xlu0 %v2830, 16
      %v3443 = vpop.permute.xlu0 %3442
      %3444 = vrot.lane.b32.xlu0 %v2832, 16
      %v3445 = vpop.permute.xlu0 %3444
      %3446 = vrot.lane.b32.xlu0 %v2831, 16
      %v3447 = vpop.permute.xlu0 %3446
      %3448 = vrot.lane.b32.xlu0 %v2833, 16
      %v3449 = vpop.permute.xlu0 %3448
      %3450 = vrot.lane.b32.xlu0 %v2835, 16
      %v3451 = vpop.permute.xlu0 %3450
      %3452 = vrot.lane.b32.xlu0 %v2834, 16
      %v3453 = vpop.permute.xlu0 %3452
      %3454 = vrot.lane.b32.xlu0 %v2836, 16
      %v3455 = vpop.permute.xlu0 %3454
      %3456 = vrot.lane.b32.xlu0 %v2838, 16
      %v3457 = vpop.permute.xlu0 %3456
      %3458 = vrot.lane.b32.xlu0 %v2837, 16
      %v3459 = vpop.permute.xlu0 %3458
      %3460 = vrot.lane.b32.xlu0 %v2839, 16
      %v3461 = vpop.permute.xlu0 %3460
      %3462 = vrot.lane.b32.xlu0 %v2841, 16
      %v3463 = vpop.permute.xlu0 %3462
      %3464 = vrot.lane.b32.xlu0 %v2840, 16
      %v3465 = vpop.permute.xlu0 %3464
      %3466 = vrot.lane.b32.xlu0 %v2842, 16
      %v3467 = vpop.permute.xlu0 %3466
      %3468 = vrot.lane.b32.xlu0 %v2844, 16
      %v3469 = vpop.permute.xlu0 %3468
      %3470 = vrot.lane.b32.xlu0 %v2843, 16
      %v3471 = vpop.permute.xlu0 %3470
      %3472 = vrot.lane.b32.xlu0 %v2845, 16
      %v3473 = vpop.permute.xlu0 %3472
      %3474 = vrot.lane.b32.xlu0 %v2847, 16
      %v3475 = vpop.permute.xlu0 %3474
      %3476 = vrot.lane.b32.xlu0 %v2846, 16
      %v3477 = vpop.permute.xlu0 %3476
      %3478 = vrot.lane.b32.xlu0 %v2848, 16
      %v3479 = vpop.permute.xlu0 %3478
      %3480 = vrot.lane.b32.xlu0 %v2850, 16
      %v3481 = vpop.permute.xlu0 %3480
      %3482 = vrot.lane.b32.xlu0 %v2849, 16
      %v3483 = vpop.permute.xlu0 %3482
      %3484 = vrot.lane.b32.xlu0 %v2851, 16
      %v3485 = vpop.permute.xlu0 %3484
      %3486 = vrot.lane.b32.xlu0 %v2853, 16
      %v3487 = vpop.permute.xlu0 %3486
      %3488 = vrot.lane.b32.xlu0 %v2852, 16
      %v3489 = vpop.permute.xlu0 %3488
      %3490 = vrot.lane.b32.xlu0 %v2854, 16
      %v3491 = vpop.permute.xlu0 %3490
      %3492 = vrot.lane.b32.xlu0 %v2856, 16
      %v3493 = vpop.permute.xlu0 %3492
      %3494 = vrot.lane.b32.xlu0 %v2855, 16
      %v3495 = vpop.permute.xlu0 %3494
      %3496 = vrot.lane.b32.xlu0 %v3403, 16
      %v3497 = vpop.permute.xlu0 %3496
      %3498 = vrot.lane.b32.xlu0 %v3405, 16
      %v3499 = vpop.permute.xlu0 %3498
      %3500 = vrot.lane.b32.xlu0 %v3404, 16
      %v3501 = vpop.permute.xlu0 %3500
      %v3551 = vrot.slane %v2770, 2
      %v3552 = vrot.slane %v2771, 2
      %v3553 = vsel %vm645, %v3551, %v3552
      %v3554 = vrot.slane %v2772, 2
      %v3555 = vsel %vm645, %v3552, %v3554
      %3556 = vrot.lane.b32.xlu0 %v3022, 20
      %v3557 = vpop.permute.xlu0 %3556
      %3558 = vrot.lane.b32.xlu0 %v3024, 20
      %v3559 = vpop.permute.xlu0 %3558
      %3560 = vrot.lane.b32.xlu0 %v3026, 20
      %v3561 = vpop.permute.xlu0 %3560
      %3562 = vrot.lane.b32.xlu0 %v3027, 20
      %v3563 = vpop.permute.xlu0 %3562
      %3564 = vrot.lane.b32.xlu0 %v3029, 20
      %v3565 = vpop.permute.xlu0 %3564
      %3566 = vrot.lane.b32.xlu0 %v3031, 20
      %v3567 = vpop.permute.xlu0 %3566
      %3568 = vrot.lane.b32.xlu0 %v3032, 20
      %v3569 = vpop.permute.xlu0 %3568
      %3570 = vrot.lane.b32.xlu0 %v3034, 20
      %v3571 = vpop.permute.xlu0 %3570
      %3572 = vrot.lane.b32.xlu0 %v3036, 20
      %v3573 = vpop.permute.xlu0 %3572
      %3574 = vrot.lane.b32.xlu0 %v3037, 20
      %v3575 = vpop.permute.xlu0 %3574
      %3576 = vrot.lane.b32.xlu0 %v3039, 20
      %v3577 = vpop.permute.xlu0 %3576
      %3578 = vrot.lane.b32.xlu0 %v3041, 20
      %v3579 = vpop.permute.xlu0 %3578
      %3580 = vrot.lane.b32.xlu0 %v3042, 20
      %v3581 = vpop.permute.xlu0 %3580
      %3582 = vrot.lane.b32.xlu0 %v3044, 20
      %v3583 = vpop.permute.xlu0 %3582
      %3584 = vrot.lane.b32.xlu0 %v3046, 20
      %v3585 = vpop.permute.xlu0 %3584
      %3586 = vrot.lane.b32.xlu0 %v3047, 20
      %v3587 = vpop.permute.xlu0 %3586
      %3588 = vrot.lane.b32.xlu0 %v3049, 20
      %v3589 = vpop.permute.xlu0 %3588
      %3590 = vrot.lane.b32.xlu0 %v3051, 20
      %v3591 = vpop.permute.xlu0 %3590
      %3592 = vrot.lane.b32.xlu0 %v3052, 20
      %v3593 = vpop.permute.xlu0 %3592
      %3594 = vrot.lane.b32.xlu0 %v3054, 20
      %v3595 = vpop.permute.xlu0 %3594
      %3596 = vrot.lane.b32.xlu0 %v3056, 20
      %v3597 = vpop.permute.xlu0 %3596
      %3598 = vrot.lane.b32.xlu0 %v3057, 20
      %v3599 = vpop.permute.xlu0 %3598
      %3600 = vrot.lane.b32.xlu0 %v3059, 20
      %v3601 = vpop.permute.xlu0 %3600
      %3602 = vrot.lane.b32.xlu0 %v3061, 20
      %v3603 = vpop.permute.xlu0 %3602
      %3604 = vrot.lane.b32.xlu0 %v3062, 20
      %v3605 = vpop.permute.xlu0 %3604
      %3606 = vrot.lane.b32.xlu0 %v3064, 20
      %v3607 = vpop.permute.xlu0 %3606
      %3608 = vrot.lane.b32.xlu0 %v3066, 20
      %v3609 = vpop.permute.xlu0 %3608
      %3610 = vrot.lane.b32.xlu0 %v3067, 20
      %v3611 = vpop.permute.xlu0 %3610
      %3612 = vrot.lane.b32.xlu0 %v3069, 20
      %v3613 = vpop.permute.xlu0 %3612
      %3614 = vrot.lane.b32.xlu0 %v3071, 20
      %v3615 = vpop.permute.xlu0 %3614
      %3616 = vrot.lane.b32.xlu0 %v3072, 20
      %v3617 = vpop.permute.xlu0 %3616
      %3618 = vrot.lane.b32.xlu0 %v3074, 20
      %v3619 = vpop.permute.xlu0 %3618
      %3620 = vrot.lane.b32.xlu0 %v3076, 20
      %v3621 = vpop.permute.xlu0 %3620
      %3622 = vrot.lane.b32.xlu0 %v3077, 20
      %v3623 = vpop.permute.xlu0 %3622
      %3624 = vrot.lane.b32.xlu0 %v3079, 20
      %v3625 = vpop.permute.xlu0 %3624
      %3626 = vrot.lane.b32.xlu0 %v3081, 20
      %v3627 = vpop.permute.xlu0 %3626
      %3628 = vrot.lane.b32.xlu0 %v3082, 20
      %v3629 = vpop.permute.xlu0 %3628
      %3630 = vrot.lane.b32.xlu0 %v3084, 20
      %v3631 = vpop.permute.xlu0 %3630
      %3632 = vrot.lane.b32.xlu0 %v3086, 20
      %v3633 = vpop.permute.xlu0 %3632
      %3634 = vrot.lane.b32.xlu0 %v3087, 20
      %v3635 = vpop.permute.xlu0 %3634
      %3636 = vrot.lane.b32.xlu0 %v3089, 20
      %v3637 = vpop.permute.xlu0 %3636
      %3638 = vrot.lane.b32.xlu0 %v3091, 20
      %v3639 = vpop.permute.xlu0 %3638
      %3640 = vrot.lane.b32.xlu0 %v3092, 20
      %v3641 = vpop.permute.xlu0 %3640
      %3642 = vrot.lane.b32.xlu0 %v3094, 20
      %v3643 = vpop.permute.xlu0 %3642
      %3644 = vrot.lane.b32.xlu0 %v3096, 20
      %v3645 = vpop.permute.xlu0 %3644
      %3646 = vrot.lane.b32.xlu0 %v3551, 20
      %v3647 = vpop.permute.xlu0 %3646
      %3648 = vrot.lane.b32.xlu0 %v3553, 20
      %v3649 = vpop.permute.xlu0 %3648
      %3650 = vrot.lane.b32.xlu0 %v3555, 20
      %v3651 = vpop.permute.xlu0 %3650
      %3703 = vrot.lane.b32.xlu0 %v2713, 24
      %v3704 = vpop.permute.xlu0 %3703
      %3705 = vrot.lane.b32.xlu0 %v2714, 24
      %v3706 = vpop.permute.xlu0 %3705
      %3707 = vrot.lane.b32.xlu0 %v2715, 24
      %v3708 = vpop.permute.xlu0 %3707
      %3709 = vrot.lane.b32.xlu0 %v2717, 24
      %v3710 = vpop.permute.xlu0 %3709
      %3711 = vrot.lane.b32.xlu0 %v2718, 24
      %v3712 = vpop.permute.xlu0 %3711
      %3713 = vrot.lane.b32.xlu0 %v2719, 24
      %v3714 = vpop.permute.xlu0 %3713
      %3715 = vrot.lane.b32.xlu0 %v2721, 24
      %v3716 = vpop.permute.xlu0 %3715
      %3717 = vrot.lane.b32.xlu0 %v2722, 24
      %v3718 = vpop.permute.xlu0 %3717
      %3719 = vrot.lane.b32.xlu0 %v2723, 24
      %v3720 = vpop.permute.xlu0 %3719
      %3721 = vrot.lane.b32.xlu0 %v2725, 24
      %v3722 = vpop.permute.xlu0 %3721
      %3723 = vrot.lane.b32.xlu0 %v2726, 24
      %v3724 = vpop.permute.xlu0 %3723
      %3725 = vrot.lane.b32.xlu0 %v2727, 24
      %v3726 = vpop.permute.xlu0 %3725
      %3727 = vrot.lane.b32.xlu0 %v2729, 24
      %v3728 = vpop.permute.xlu0 %3727
      %3729 = vrot.lane.b32.xlu0 %v2730, 24
      %v3730 = vpop.permute.xlu0 %3729
      %3731 = vrot.lane.b32.xlu0 %v2731, 24
      %v3732 = vpop.permute.xlu0 %3731
      %3733 = vrot.lane.b32.xlu0 %v2733, 24
      %v3734 = vpop.permute.xlu0 %3733
      %3735 = vrot.lane.b32.xlu0 %v2734, 24
      %v3736 = vpop.permute.xlu0 %3735
      %3737 = vrot.lane.b32.xlu0 %v2735, 24
      %v3738 = vpop.permute.xlu0 %3737
      %3739 = vrot.lane.b32.xlu0 %v2737, 24
      %v3740 = vpop.permute.xlu0 %3739
      %3741 = vrot.lane.b32.xlu0 %v2738, 24
      %v3742 = vpop.permute.xlu0 %3741
      %3743 = vrot.lane.b32.xlu0 %v2739, 24
      %v3744 = vpop.permute.xlu0 %3743
      %3745 = vrot.lane.b32.xlu0 %v2741, 24
      %v3746 = vpop.permute.xlu0 %3745
      %3747 = vrot.lane.b32.xlu0 %v2742, 24
      %v3748 = vpop.permute.xlu0 %3747
      %3749 = vrot.lane.b32.xlu0 %v2743, 24
      %v3750 = vpop.permute.xlu0 %3749
      %3751 = vrot.lane.b32.xlu0 %v2745, 24
      %v3752 = vpop.permute.xlu0 %3751
      %3753 = vrot.lane.b32.xlu0 %v2746, 24
      %v3754 = vpop.permute.xlu0 %3753
      %3755 = vrot.lane.b32.xlu0 %v2747, 24
      %v3756 = vpop.permute.xlu0 %3755
      %3757 = vrot.lane.b32.xlu0 %v2749, 24
      %v3758 = vpop.permute.xlu0 %3757
      %3759 = vrot.lane.b32.xlu0 %v2750, 24
      %v3760 = vpop.permute.xlu0 %3759
      %3761 = vrot.lane.b32.xlu0 %v2751, 24
      %v3762 = vpop.permute.xlu0 %3761
      %3763 = vrot.lane.b32.xlu0 %v2753, 24
      %v3764 = vpop.permute.xlu0 %3763
      %3765 = vrot.lane.b32.xlu0 %v2754, 24
      %v3766 = vpop.permute.xlu0 %3765
      %3767 = vrot.lane.b32.xlu0 %v2755, 24
      %v3768 = vpop.permute.xlu0 %3767
      %3769 = vrot.lane.b32.xlu0 %v2757, 24
      %v3770 = vpop.permute.xlu0 %3769
      %3771 = vrot.lane.b32.xlu0 %v2758, 24
      %v3772 = vpop.permute.xlu0 %3771
      %3773 = vrot.lane.b32.xlu0 %v2759, 24
      %v3774 = vpop.permute.xlu0 %3773
      %3775 = vrot.lane.b32.xlu0 %v2761, 24
      %v3776 = vpop.permute.xlu0 %3775
      %3777 = vrot.lane.b32.xlu0 %v2762, 24
      %v3778 = vpop.permute.xlu0 %3777
      %3779 = vrot.lane.b32.xlu0 %v2763, 24
      %v3780 = vpop.permute.xlu0 %3779
      %3781 = vrot.lane.b32.xlu0 %v2765, 24
      %v3782 = vpop.permute.xlu0 %3781
      %3783 = vrot.lane.b32.xlu0 %v2766, 24
      %v3784 = vpop.permute.xlu0 %3783
      %3785 = vrot.lane.b32.xlu0 %v2767, 24
      %v3786 = vpop.permute.xlu0 %3785
      %3787 = vrot.lane.b32.xlu0 %v2769, 24
      %v3788 = vpop.permute.xlu0 %3787
      %3789 = vrot.lane.b32.xlu0 %v2770, 24
      %v3790 = vpop.permute.xlu0 %3789
      %3791 = vrot.lane.b32.xlu0 %v2771, 24
      %v3792 = vpop.permute.xlu0 %3791
      %3793 = vrot.lane.b32.xlu0 %v2773, 24
      %v3794 = vpop.permute.xlu0 %3793
      %3795 = vrot.lane.b32.xlu0 %v2774, 24
      %v3796 = vpop.permute.xlu0 %3795
      %3797 = vrot.lane.b32.xlu0 %v2775, 24
      %v3798 = vpop.permute.xlu0 %3797
      %v3847 = vrot.slane %v2774, 1
      %v3848 = vrot.slane %v2775, 1
      %v3849 = vsel %vm436, %v3847, %v3848
      %3850 = vrot.lane.b32.xlu0 %v2815, 28
      %v3851 = vpop.permute.xlu0 %3850
      %3852 = vrot.lane.b32.xlu0 %v2817, 28
      %v3853 = vpop.permute.xlu0 %3852
      %3854 = vrot.lane.b32.xlu0 %v2816, 28
      %v3855 = vpop.permute.xlu0 %3854
      %3856 = vrot.lane.b32.xlu0 %v2818, 28
      %v3857 = vpop.permute.xlu0 %3856
      %3858 = vrot.lane.b32.xlu0 %v2820, 28
      %v3859 = vpop.permute.xlu0 %3858
      %3860 = vrot.lane.b32.xlu0 %v2819, 28
      %v3861 = vpop.permute.xlu0 %3860
      %3862 = vrot.lane.b32.xlu0 %v2821, 28
      %v3863 = vpop.permute.xlu0 %3862
      %3864 = vrot.lane.b32.xlu0 %v2823, 28
      %v3865 = vpop.permute.xlu0 %3864
      %3866 = vrot.lane.b32.xlu0 %v2822, 28
      %v3867 = vpop.permute.xlu0 %3866
      %3868 = vrot.lane.b32.xlu0 %v2824, 28
      %v3869 = vpop.permute.xlu0 %3868
      %3870 = vrot.lane.b32.xlu0 %v2826, 28
      %v3871 = vpop.permute.xlu0 %3870
      %3872 = vrot.lane.b32.xlu0 %v2825, 28
      %v3873 = vpop.permute.xlu0 %3872
      %3874 = vrot.lane.b32.xlu0 %v2827, 28
      %v3875 = vpop.permute.xlu0 %3874
      %3876 = vrot.lane.b32.xlu0 %v2829, 28
      %v3877 = vpop.permute.xlu0 %3876
      %3878 = vrot.lane.b32.xlu0 %v2828, 28
      %v3879 = vpop.permute.xlu0 %3878
      %3880 = vrot.lane.b32.xlu0 %v2830, 28
      %v3881 = vpop.permute.xlu0 %3880
      %3882 = vrot.lane.b32.xlu0 %v2832, 28
      %v3883 = vpop.permute.xlu0 %3882
      %3884 = vrot.lane.b32.xlu0 %v2831, 28
      %v3885 = vpop.permute.xlu0 %3884
      %3886 = vrot.lane.b32.xlu0 %v2833, 28
      %v3887 = vpop.permute.xlu0 %3886
      %3888 = vrot.lane.b32.xlu0 %v2835, 28
      %v3889 = vpop.permute.xlu0 %3888
      %3890 = vrot.lane.b32.xlu0 %v2834, 28
      %v3891 = vpop.permute.xlu0 %3890
      %3892 = vrot.lane.b32.xlu0 %v2836, 28
      %v3893 = vpop.permute.xlu0 %3892
      %3894 = vrot.lane.b32.xlu0 %v2838, 28
      %v3895 = vpop.permute.xlu0 %3894
      %3896 = vrot.lane.b32.xlu0 %v2837, 28
      %v3897 = vpop.permute.xlu0 %3896
      %3898 = vrot.lane.b32.xlu0 %v2839, 28
      %v3899 = vpop.permute.xlu0 %3898
      %3900 = vrot.lane.b32.xlu0 %v2841, 28
      %v3901 = vpop.permute.xlu0 %3900
      %3902 = vrot.lane.b32.xlu0 %v2840, 28
      %v3903 = vpop.permute.xlu0 %3902
      %3904 = vrot.lane.b32.xlu0 %v2842, 28
      %v3905 = vpop.permute.xlu0 %3904
      %3906 = vrot.lane.b32.xlu0 %v2844, 28
      %v3907 = vpop.permute.xlu0 %3906
      %3908 = vrot.lane.b32.xlu0 %v2843, 28
      %v3909 = vpop.permute.xlu0 %3908
      %3910 = vrot.lane.b32.xlu0 %v2845, 28
      %v3911 = vpop.permute.xlu0 %3910
      %3912 = vrot.lane.b32.xlu0 %v2847, 28
      %v3913 = vpop.permute.xlu0 %3912
      %3914 = vrot.lane.b32.xlu0 %v2846, 28
      %v3915 = vpop.permute.xlu0 %3914
      %3916 = vrot.lane.b32.xlu0 %v2848, 28
      %v3917 = vpop.permute.xlu0 %3916
      %3918 = vrot.lane.b32.xlu0 %v2850, 28
      %v3919 = vpop.permute.xlu0 %3918
      %3920 = vrot.lane.b32.xlu0 %v2849, 28
      %v3921 = vpop.permute.xlu0 %3920
      %3922 = vrot.lane.b32.xlu0 %v2851, 28
      %v3923 = vpop.permute.xlu0 %3922
      %3924 = vrot.lane.b32.xlu0 %v2853, 28
      %v3925 = vpop.permute.xlu0 %3924
      %3926 = vrot.lane.b32.xlu0 %v2852, 28
      %v3927 = vpop.permute.xlu0 %3926
      %3928 = vrot.lane.b32.xlu0 %v2854, 28
      %v3929 = vpop.permute.xlu0 %3928
      %3930 = vrot.lane.b32.xlu0 %v2856, 28
      %v3931 = vpop.permute.xlu0 %3930
      %3932 = vrot.lane.b32.xlu0 %v2855, 28
      %v3933 = vpop.permute.xlu0 %3932
      %3934 = vrot.lane.b32.xlu0 %v3403, 28
      %v3935 = vpop.permute.xlu0 %3934
      %3936 = vrot.lane.b32.xlu0 %v3405, 28
      %v3937 = vpop.permute.xlu0 %3936
      %3938 = vrot.lane.b32.xlu0 %v3404, 28
      %v3939 = vpop.permute.xlu0 %3938
      %3940 = vrot.lane.b32.xlu0 %v3847, 28
      %v3941 = vpop.permute.xlu0 %3940
      %3942 = vrot.lane.b32.xlu0 %v3849, 28
      %v3943 = vpop.permute.xlu0 %3942
      %3944 = vrot.lane.b32.xlu0 %v3848, 28
      %v3945 = vpop.permute.xlu0 %3944
      %v3995 = vrot.slane %v2774, 2
      %v3996 = vrot.slane %v2775, 2
      %v3997 = vsel %vm645, %v3995, %v3996
      %v3998 = vrot.slane %v2776, 2
      %v3999 = vsel %vm645, %v3996, %v3998
      %4000 = vrot.lane.b32.xlu0 %v3027, 32
      %v4001 = vpop.permute.xlu0 %4000
      %4002 = vrot.lane.b32.xlu0 %v3029, 32
      %v4003 = vpop.permute.xlu0 %4002
      %4004 = vrot.lane.b32.xlu0 %v3031, 32
      %v4005 = vpop.permute.xlu0 %4004
      %4006 = vrot.lane.b32.xlu0 %v3032, 32
      %v4007 = vpop.permute.xlu0 %4006
      %4008 = vrot.lane.b32.xlu0 %v3034, 32
      %v4009 = vpop.permute.xlu0 %4008
      %4010 = vrot.lane.b32.xlu0 %v3036, 32
      %v4011 = vpop.permute.xlu0 %4010
      %4012 = vrot.lane.b32.xlu0 %v3037, 32
      %v4013 = vpop.permute.xlu0 %4012
      %4014 = vrot.lane.b32.xlu0 %v3039, 32
      %v4015 = vpop.permute.xlu0 %4014
      %4016 = vrot.lane.b32.xlu0 %v3041, 32
      %v4017 = vpop.permute.xlu0 %4016
      %4018 = vrot.lane.b32.xlu0 %v3042, 32
      %v4019 = vpop.permute.xlu0 %4018
      %4020 = vrot.lane.b32.xlu0 %v3044, 32
      %v4021 = vpop.permute.xlu0 %4020
      %4022 = vrot.lane.b32.xlu0 %v3046, 32
      %v4023 = vpop.permute.xlu0 %4022
      %4024 = vrot.lane.b32.xlu0 %v3047, 32
      %v4025 = vpop.permute.xlu0 %4024
      %4026 = vrot.lane.b32.xlu0 %v3049, 32
      %v4027 = vpop.permute.xlu0 %4026
      %4028 = vrot.lane.b32.xlu0 %v3051, 32
      %v4029 = vpop.permute.xlu0 %4028
      %4030 = vrot.lane.b32.xlu0 %v3052, 32
      %v4031 = vpop.permute.xlu0 %4030
      %4032 = vrot.lane.b32.xlu0 %v3054, 32
      %v4033 = vpop.permute.xlu0 %4032
      %4034 = vrot.lane.b32.xlu0 %v3056, 32
      %v4035 = vpop.permute.xlu0 %4034
      %4036 = vrot.lane.b32.xlu0 %v3057, 32
      %v4037 = vpop.permute.xlu0 %4036
      %4038 = vrot.lane.b32.xlu0 %v3059, 32
      %v4039 = vpop.permute.xlu0 %4038
      %4040 = vrot.lane.b32.xlu0 %v3061, 32
      %v4041 = vpop.permute.xlu0 %4040
      %4042 = vrot.lane.b32.xlu0 %v3062, 32
      %v4043 = vpop.permute.xlu0 %4042
      %4044 = vrot.lane.b32.xlu0 %v3064, 32
      %v4045 = vpop.permute.xlu0 %4044
      %4046 = vrot.lane.b32.xlu0 %v3066, 32
      %v4047 = vpop.permute.xlu0 %4046
      %4048 = vrot.lane.b32.xlu0 %v3067, 32
      %v4049 = vpop.permute.xlu0 %4048
      %4050 = vrot.lane.b32.xlu0 %v3069, 32
      %v4051 = vpop.permute.xlu0 %4050
      %4052 = vrot.lane.b32.xlu0 %v3071, 32
      %v4053 = vpop.permute.xlu0 %4052
      %4054 = vrot.lane.b32.xlu0 %v3072, 32
      %v4055 = vpop.permute.xlu0 %4054
      %4056 = vrot.lane.b32.xlu0 %v3074, 32
      %v4057 = vpop.permute.xlu0 %4056
      %4058 = vrot.lane.b32.xlu0 %v3076, 32
      %v4059 = vpop.permute.xlu0 %4058
      %4060 = vrot.lane.b32.xlu0 %v3077, 32
      %v4061 = vpop.permute.xlu0 %4060
      %4062 = vrot.lane.b32.xlu0 %v3079, 32
      %v4063 = vpop.permute.xlu0 %4062
      %4064 = vrot.lane.b32.xlu0 %v3081, 32
      %v4065 = vpop.permute.xlu0 %4064
      %4066 = vrot.lane.b32.xlu0 %v3082, 32
      %v4067 = vpop.permute.xlu0 %4066
      %4068 = vrot.lane.b32.xlu0 %v3084, 32
      %v4069 = vpop.permute.xlu0 %4068
      %4070 = vrot.lane.b32.xlu0 %v3086, 32
      %v4071 = vpop.permute.xlu0 %4070
      %4072 = vrot.lane.b32.xlu0 %v3087, 32
      %v4073 = vpop.permute.xlu0 %4072
      %4074 = vrot.lane.b32.xlu0 %v3089, 32
      %v4075 = vpop.permute.xlu0 %4074
      %4076 = vrot.lane.b32.xlu0 %v3091, 32
      %v4077 = vpop.permute.xlu0 %4076
      %4078 = vrot.lane.b32.xlu0 %v3092, 32
      %v4079 = vpop.permute.xlu0 %4078
      %4080 = vrot.lane.b32.xlu0 %v3094, 32
      %v4081 = vpop.permute.xlu0 %4080
      %4082 = vrot.lane.b32.xlu0 %v3096, 32
      %v4083 = vpop.permute.xlu0 %4082
      %4084 = vrot.lane.b32.xlu0 %v3551, 32
      %v4085 = vpop.permute.xlu0 %4084
      %4086 = vrot.lane.b32.xlu0 %v3553, 32
      %v4087 = vpop.permute.xlu0 %4086
      %4088 = vrot.lane.b32.xlu0 %v3555, 32
      %v4089 = vpop.permute.xlu0 %4088
      %4090 = vrot.lane.b32.xlu0 %v3995, 32
      %v4091 = vpop.permute.xlu0 %4090
      %4092 = vrot.lane.b32.xlu0 %v3997, 32
      %v4093 = vpop.permute.xlu0 %4092
      %4094 = vrot.lane.b32.xlu0 %v3999, 32
      %v4095 = vpop.permute.xlu0 %4094
      %v4144 = vsel %vm257, %v2705, %v2858
      %v4145 = vsel %vm257, %v2706, %v2860
      %v4146 = vsel %vm257, %v2707, %v2862
      %v4147 = vsel %vm257, %v2709, %v2864
      %v4148 = vsel %vm257, %v2710, %v2866
      %v4149 = vsel %vm257, %v2711, %v2868
      %v4150 = vsel %vm257, %v2713, %v2870
      %v4151 = vsel %vm257, %v2714, %v2872
      %v4152 = vsel %vm257, %v2715, %v2874
      %v4153 = vsel %vm257, %v2717, %v2876
      %v4154 = vsel %vm257, %v2718, %v2878
      %v4155 = vsel %vm257, %v2719, %v2880
      %v4156 = vsel %vm257, %v2721, %v2882
      %v4157 = vsel %vm257, %v2722, %v2884
      %v4158 = vsel %vm257, %v2723, %v2886
      %v4159 = vsel %vm257, %v2725, %v2888
      %v4160 = vsel %vm257, %v2726, %v2890
      %v4161 = vsel %vm257, %v2727, %v2892
      %v4162 = vsel %vm257, %v2729, %v2894
      %v4163 = vsel %vm257, %v2730, %v2896
      %v4164 = vsel %vm257, %v2731, %v2898
      %v4165 = vsel %vm257, %v2733, %v2900
      %v4166 = vsel %vm257, %v2734, %v2902
      %v4167 = vsel %vm257, %v2735, %v2904
      %v4168 = vsel %vm257, %v2737, %v2906
      %v4169 = vsel %vm257, %v2738, %v2908
      %v4170 = vsel %vm257, %v2739, %v2910
      %v4171 = vsel %vm257, %v2741, %v2912
      %v4172 = vsel %vm257, %v2742, %v2914
      %v4173 = vsel %vm257, %v2743, %v2916
      %v4174 = vsel %vm257, %v2745, %v2918
      %v4175 = vsel %vm257, %v2746, %v2920
      %v4176 = vsel %vm257, %v2747, %v2922
      %v4177 = vsel %vm257, %v2749, %v2924
      %v4178 = vsel %vm257, %v2750, %v2926
      %v4179 = vsel %vm257, %v2751, %v2928
      %v4180 = vsel %vm257, %v2753, %v2930
      %v4181 = vsel %vm257, %v2754, %v2932
      %v4182 = vsel %vm257, %v2755, %v2934
      %v4183 = vsel %vm257, %v2757, %v2936
      %v4184 = vsel %vm257, %v2758, %v2938
      %v4185 = vsel %vm257, %v2759, %v2940
      %v4186 = vsel %vm257, %v2761, %v2942
      %v4187 = vsel %vm257, %v2762, %v2944
      %v4188 = vsel %vm257, %v2763, %v2946
      %v4189 = vsel %vm257, %v2765, %v2948
      %v4190 = vsel %vm257, %v2766, %v2950
      %v4191 = vsel %vm257, %v2767, %v2952
      %v4192 = vsel %vm1821, %v4144, %v3098
      %v4193 = vsel %vm1821, %v4145, %v3100
      %v4194 = vsel %vm1821, %v4146, %v3102
      %v4195 = vsel %vm1821, %v4147, %v3104
      %v4196 = vsel %vm1821, %v4148, %v3106
      %v4197 = vsel %vm1821, %v4149, %v3108
      %v4198 = vsel %vm1821, %v4150, %v3110
      %v4199 = vsel %vm1821, %v4151, %v3112
      %v4200 = vsel %vm1821, %v4152, %v3114
      %v4201 = vsel %vm1821, %v4153, %v3116
      %v4202 = vsel %vm1821, %v4154, %v3118
      %v4203 = vsel %vm1821, %v4155, %v3120
      %v4204 = vsel %vm1821, %v4156, %v3122
      %v4205 = vsel %vm1821, %v4157, %v3124
      %v4206 = vsel %vm1821, %v4158, %v3126
      %v4207 = vsel %vm1821, %v4159, %v3128
      %v4208 = vsel %vm1821, %v4160, %v3130
      %v4209 = vsel %vm1821, %v4161, %v3132
      %v4210 = vsel %vm1821, %v4162, %v3134
      %v4211 = vsel %vm1821, %v4163, %v3136
      %v4212 = vsel %vm1821, %v4164, %v3138
      %v4213 = vsel %vm1821, %v4165, %v3140
      %v4214 = vsel %vm1821, %v4166, %v3142
      %v4215 = vsel %vm1821, %v4167, %v3144
      %v4216 = vsel %vm1821, %v4168, %v3146
      %v4217 = vsel %vm1821, %v4169, %v3148
      %v4218 = vsel %vm1821, %v4170, %v3150
      %v4219 = vsel %vm1821, %v4171, %v3152
      %v4220 = vsel %vm1821, %v4172, %v3154
      %v4221 = vsel %vm1821, %v4173, %v3156
      %v4222 = vsel %vm1821, %v4174, %v3158
      %v4223 = vsel %vm1821, %v4175, %v3160
      %v4224 = vsel %vm1821, %v4176, %v3162
      %v4225 = vsel %vm1821, %v4177, %v3164
      %v4226 = vsel %vm1821, %v4178, %v3166
      %v4227 = vsel %vm1821, %v4179, %v3168
      %v4228 = vsel %vm1821, %v4180, %v3170
      %v4229 = vsel %vm1821, %v4181, %v3172
      %v4230 = vsel %vm1821, %v4182, %v3174
      %v4231 = vsel %vm1821, %v4183, %v3176
      %v4232 = vsel %vm1821, %v4184, %v3178
      %v4233 = vsel %vm1821, %v4185, %v3180
      %v4234 = vsel %vm1821, %v4186, %v3182
      %v4235 = vsel %vm1821, %v4187, %v3184
      %v4236 = vsel %vm1821, %v4188, %v3186
      %v4237 = vsel %vm1821, %v4189, %v3188
      %v4238 = vsel %vm1821, %v4190, %v3190
      %v4239 = vsel %vm1821, %v4191, %v3192
      %v4240 = vsel %vm1870, %v4192, %v3260
      %v4241 = vsel %vm1870, %v4193, %v3262
      %v4242 = vsel %vm1870, %v4194, %v3264
      %v4243 = vsel %vm1870, %v4195, %v3266
      %v4244 = vsel %vm1870, %v4196, %v3268
      %v4245 = vsel %vm1870, %v4197, %v3270
      %v4246 = vsel %vm1870, %v4198, %v3272
      %v4247 = vsel %vm1870, %v4199, %v3274
      %v4248 = vsel %vm1870, %v4200, %v3276
      %v4249 = vsel %vm1870, %v4201, %v3278
      %v4250 = vsel %vm1870, %v4202, %v3280
      %v4251 = vsel %vm1870, %v4203, %v3282
      %v4252 = vsel %vm1870, %v4204, %v3284
      %v4253 = vsel %vm1870, %v4205, %v3286
      %v4254 = vsel %vm1870, %v4206, %v3288
      %v4255 = vsel %vm1870, %v4207, %v3290
      %v4256 = vsel %vm1870, %v4208, %v3292
      %v4257 = vsel %vm1870, %v4209, %v3294
      %v4258 = vsel %vm1870, %v4210, %v3296
      %v4259 = vsel %vm1870, %v4211, %v3298
      %v4260 = vsel %vm1870, %v4212, %v3300
      %v4261 = vsel %vm1870, %v4213, %v3302
      %v4262 = vsel %vm1870, %v4214, %v3304
      %v4263 = vsel %vm1870, %v4215, %v3306
      %v4264 = vsel %vm1870, %v4216, %v3308
      %v4265 = vsel %vm1870, %v4217, %v3310
      %v4266 = vsel %vm1870, %v4218, %v3312
      %v4267 = vsel %vm1870, %v4219, %v3314
      %v4268 = vsel %vm1870, %v4220, %v3316
      %v4269 = vsel %vm1870, %v4221, %v3318
      %v4270 = vsel %vm1870, %v4222, %v3320
      %v4271 = vsel %vm1870, %v4223, %v3322
      %v4272 = vsel %vm1870, %v4224, %v3324
      %v4273 = vsel %vm1870, %v4225, %v3326
      %v4274 = vsel %vm1870, %v4226, %v3328
      %v4275 = vsel %vm1870, %v4227, %v3330
      %v4276 = vsel %vm1870, %v4228, %v3332
      %v4277 = vsel %vm1870, %v4229, %v3334
      %v4278 = vsel %vm1870, %v4230, %v3336
      %v4279 = vsel %vm1870, %v4231, %v3338
      %v4280 = vsel %vm1870, %v4232, %v3340
      %v4281 = vsel %vm1870, %v4233, %v3342
      %v4282 = vsel %vm1870, %v4234, %v3344
      %v4283 = vsel %vm1870, %v4235, %v3346
      %v4284 = vsel %vm1870, %v4236, %v3348
      %v4285 = vsel %vm1870, %v4237, %v3350
      %v4286 = vsel %vm1870, %v4238, %v3352
      %v4287 = vsel %vm1870, %v4239, %v3354
      %v4288 = vsel %vm1919, %v4240, %v3407
      %v4289 = vsel %vm1919, %v4241, %v3409
      %v4290 = vsel %vm1919, %v4242, %v3411
      %v4291 = vsel %vm1919, %v4243, %v3413
      %v4292 = vsel %vm1919, %v4244, %v3415
      %v4293 = vsel %vm1919, %v4245, %v3417
      %v4294 = vsel %vm1919, %v4246, %v3419
      %v4295 = vsel %vm1919, %v4247, %v3421
      %v4296 = vsel %vm1919, %v4248, %v3423
      %v4297 = vsel %vm1919, %v4249, %v3425
      %v4298 = vsel %vm1919, %v4250, %v3427
      %v4299 = vsel %vm1919, %v4251, %v3429
      %v4300 = vsel %vm1919, %v4252, %v3431
      %v4301 = vsel %vm1919, %v4253, %v3433
      %v4302 = vsel %vm1919, %v4254, %v3435
      %v4303 = vsel %vm1919, %v4255, %v3437
      %v4304 = vsel %vm1919, %v4256, %v3439
      %v4305 = vsel %vm1919, %v4257, %v3441
      %v4306 = vsel %vm1919, %v4258, %v3443
      %v4307 = vsel %vm1919, %v4259, %v3445
      %v4308 = vsel %vm1919, %v4260, %v3447
      %v4309 = vsel %vm1919, %v4261, %v3449
      %v4310 = vsel %vm1919, %v4262, %v3451
      %v4311 = vsel %vm1919, %v4263, %v3453
      %v4312 = vsel %vm1919, %v4264, %v3455
      %v4313 = vsel %vm1919, %v4265, %v3457
      %v4314 = vsel %vm1919, %v4266, %v3459
      %v4315 = vsel %vm1919, %v4267, %v3461
      %v4316 = vsel %vm1919, %v4268, %v3463
      %v4317 = vsel %vm1919, %v4269, %v3465
      %v4318 = vsel %vm1919, %v4270, %v3467
      %v4319 = vsel %vm1919, %v4271, %v3469
      %v4320 = vsel %vm1919, %v4272, %v3471
      %v4321 = vsel %vm1919, %v4273, %v3473
      %v4322 = vsel %vm1919, %v4274, %v3475
      %v4323 = vsel %vm1919, %v4275, %v3477
      %v4324 = vsel %vm1919, %v4276, %v3479
      %v4325 = vsel %vm1919, %v4277, %v3481
      %v4326 = vsel %vm1919, %v4278, %v3483
      %v4327 = vsel %vm1919, %v4279, %v3485
      %v4328 = vsel %vm1919, %v4280, %v3487
      %v4329 = vsel %vm1919, %v4281, %v3489
      %v4330 = vsel %vm1919, %v4282, %v3491
      %v4331 = vsel %vm1919, %v4283, %v3493
      %v4332 = vsel %vm1919, %v4284, %v3495
      %v4333 = vsel %vm1919, %v4285, %v3497
      %v4334 = vsel %vm1919, %v4286, %v3499
      %v4335 = vsel %vm1919, %v4287, %v3501
      %v4336 = vsel %vm1968, %v4288, %v3557
      %v4337 = vsel %vm1968, %v4289, %v3559
      %v4338 = vsel %vm1968, %v4290, %v3561
      %v4339 = vsel %vm1968, %v4291, %v3563
      %v4340 = vsel %vm1968, %v4292, %v3565
      %v4341 = vsel %vm1968, %v4293, %v3567
      %v4342 = vsel %vm1968, %v4294, %v3569
      %v4343 = vsel %vm1968, %v4295, %v3571
      %v4344 = vsel %vm1968, %v4296, %v3573
      %v4345 = vsel %vm1968, %v4297, %v3575
      %v4346 = vsel %vm1968, %v4298, %v3577
      %v4347 = vsel %vm1968, %v4299, %v3579
      %v4348 = vsel %vm1968, %v4300, %v3581
      %v4349 = vsel %vm1968, %v4301, %v3583
      %v4350 = vsel %vm1968, %v4302, %v3585
      %v4351 = vsel %vm1968, %v4303, %v3587
      %v4352 = vsel %vm1968, %v4304, %v3589
      %v4353 = vsel %vm1968, %v4305, %v3591
      %v4354 = vsel %vm1968, %v4306, %v3593
      %v4355 = vsel %vm1968, %v4307, %v3595
      %v4356 = vsel %vm1968, %v4308, %v3597
      %v4357 = vsel %vm1968, %v4309, %v3599
      %v4358 = vsel %vm1968, %v4310, %v3601
      %v4359 = vsel %vm1968, %v4311, %v3603
      %v4360 = vsel %vm1968, %v4312, %v3605
      %v4361 = vsel %vm1968, %v4313, %v3607
      %v4362 = vsel %vm1968, %v4314, %v3609
      %v4363 = vsel %vm1968, %v4315, %v3611
      %v4364 = vsel %vm1968, %v4316, %v3613
      %v4365 = vsel %vm1968, %v4317, %v3615
      %v4366 = vsel %vm1968, %v4318, %v3617
      %v4367 = vsel %vm1968, %v4319, %v3619
      %v4368 = vsel %vm1968, %v4320, %v3621
      %v4369 = vsel %vm1968, %v4321, %v3623
      %v4370 = vsel %vm1968, %v4322, %v3625
      %v4371 = vsel %vm1968, %v4323, %v3627
      %v4372 = vsel %vm1968, %v4324, %v3629
      %v4373 = vsel %vm1968, %v4325, %v3631
      %v4374 = vsel %vm1968, %v4326, %v3633
      %v4375 = vsel %vm1968, %v4327, %v3635
      %v4376 = vsel %vm1968, %v4328, %v3637
      %v4377 = vsel %vm1968, %v4329, %v3639
      %v4378 = vsel %vm1968, %v4330, %v3641
      %v4379 = vsel %vm1968, %v4331, %v3643
      %v4380 = vsel %vm1968, %v4332, %v3645
      %v4381 = vsel %vm1968, %v4333, %v3647
      %v4382 = vsel %vm1968, %v4334, %v3649
      %v4383 = vsel %vm1968, %v4335, %v3651
      %v4384 = vsel %vm2017, %v4336, %v3704
      %v4385 = vsel %vm2017, %v4337, %v3706
      %v4386 = vsel %vm2017, %v4338, %v3708
      %v4387 = vsel %vm2017, %v4339, %v3710
      %v4388 = vsel %vm2017, %v4340, %v3712
      %v4389 = vsel %vm2017, %v4341, %v3714
      %v4390 = vsel %vm2017, %v4342, %v3716
      %v4391 = vsel %vm2017, %v4343, %v3718
      %v4392 = vsel %vm2017, %v4344, %v3720
      %v4393 = vsel %vm2017, %v4345, %v3722
      %v4394 = vsel %vm2017, %v4346, %v3724
      %v4395 = vsel %vm2017, %v4347, %v3726
      %v4396 = vsel %vm2017, %v4348, %v3728
      %v4397 = vsel %vm2017, %v4349, %v3730
      %v4398 = vsel %vm2017, %v4350, %v3732
      %v4399 = vsel %vm2017, %v4351, %v3734
      %v4400 = vsel %vm2017, %v4352, %v3736
      %v4401 = vsel %vm2017, %v4353, %v3738
      %v4402 = vsel %vm2017, %v4354, %v3740
      %v4403 = vsel %vm2017, %v4355, %v3742
      %v4404 = vsel %vm2017, %v4356, %v3744
      %v4405 = vsel %vm2017, %v4357, %v3746
      %v4406 = vsel %vm2017, %v4358, %v3748
      %v4407 = vsel %vm2017, %v4359, %v3750
      %v4408 = vsel %vm2017, %v4360, %v3752
      %v4409 = vsel %vm2017, %v4361, %v3754
      %v4410 = vsel %vm2017, %v4362, %v3756
      %v4411 = vsel %vm2017, %v4363, %v3758
      %v4412 = vsel %vm2017, %v4364, %v3760
      %v4413 = vsel %vm2017, %v4365, %v3762
      %v4414 = vsel %vm2017, %v4366, %v3764
      %v4415 = vsel %vm2017, %v4367, %v3766
      %v4416 = vsel %vm2017, %v4368, %v3768
      %v4417 = vsel %vm2017, %v4369, %v3770
      %v4418 = vsel %vm2017, %v4370, %v3772
      %v4419 = vsel %vm2017, %v4371, %v3774
      %v4420 = vsel %vm2017, %v4372, %v3776
      %v4421 = vsel %vm2017, %v4373, %v3778
      %v4422 = vsel %vm2017, %v4374, %v3780
      %v4423 = vsel %vm2017, %v4375, %v3782
      %v4424 = vsel %vm2017, %v4376, %v3784
      %v4425 = vsel %vm2017, %v4377, %v3786
      %v4426 = vsel %vm2017, %v4378, %v3788
      %v4427 = vsel %vm2017, %v4379, %v3790
      %v4428 = vsel %vm2017, %v4380, %v3792
      %v4429 = vsel %vm2017, %v4381, %v3794
      %v4430 = vsel %vm2017, %v4382, %v3796
      %v4431 = vsel %vm2017, %v4383, %v3798
      %v4432 = vsel %vm2066, %v4384, %v3851
      %v4433 = vsel %vm2066, %v4385, %v3853
      %v4434 = vsel %vm2066, %v4386, %v3855
      %v4435 = vsel %vm2066, %v4387, %v3857
      %v4436 = vsel %vm2066, %v4388, %v3859
      %v4437 = vsel %vm2066, %v4389, %v3861
      %v4438 = vsel %vm2066, %v4390, %v3863
      %v4439 = vsel %vm2066, %v4391, %v3865
      %v4440 = vsel %vm2066, %v4392, %v3867
      %v4441 = vsel %vm2066, %v4393, %v3869
      %v4442 = vsel %vm2066, %v4394, %v3871
      %v4443 = vsel %vm2066, %v4395, %v3873
      %v4444 = vsel %vm2066, %v4396, %v3875
      %v4445 = vsel %vm2066, %v4397, %v3877
      %v4446 = vsel %vm2066, %v4398, %v3879
      %v4447 = vsel %vm2066, %v4399, %v3881
      %v4448 = vsel %vm2066, %v4400, %v3883
      %v4449 = vsel %vm2066, %v4401, %v3885
      %v4450 = vsel %vm2066, %v4402, %v3887
      %v4451 = vsel %vm2066, %v4403, %v3889
      %v4452 = vsel %vm2066, %v4404, %v3891
      %v4453 = vsel %vm2066, %v4405, %v3893
      %v4454 = vsel %vm2066, %v4406, %v3895
      %v4455 = vsel %vm2066, %v4407, %v3897
      %v4456 = vsel %vm2066, %v4408, %v3899
      %v4457 = vsel %vm2066, %v4409, %v3901
      %v4458 = vsel %vm2066, %v4410, %v3903
      %v4459 = vsel %vm2066, %v4411, %v3905
      %v4460 = vsel %vm2066, %v4412, %v3907
      %v4461 = vsel %vm2066, %v4413, %v3909
      %v4462 = vsel %vm2066, %v4414, %v3911
      %v4463 = vsel %vm2066, %v4415, %v3913
      %v4464 = vsel %vm2066, %v4416, %v3915
      %v4465 = vsel %vm2066, %v4417, %v3917
      %v4466 = vsel %vm2066, %v4418, %v3919
      %v4467 = vsel %vm2066, %v4419, %v3921
      %v4468 = vsel %vm2066, %v4420, %v3923
      %v4469 = vsel %vm2066, %v4421, %v3925
      %v4470 = vsel %vm2066, %v4422, %v3927
      %v4471 = vsel %vm2066, %v4423, %v3929
      %v4472 = vsel %vm2066, %v4424, %v3931
      %v4473 = vsel %vm2066, %v4425, %v3933
      %v4474 = vsel %vm2066, %v4426, %v3935
      %v4475 = vsel %vm2066, %v4427, %v3937
      %v4476 = vsel %vm2066, %v4428, %v3939
      %v4477 = vsel %vm2066, %v4429, %v3941
      %v4478 = vsel %vm2066, %v4430, %v3943
      %v4479 = vsel %vm2066, %v4431, %v3945
      %v4480 = vsel %vm2115, %v4432, %v4001
      %v4481 = vsel %vm2115, %v4433, %v4003
      %v4482 = vsel %vm2115, %v4434, %v4005
      %v4483 = vsel %vm2115, %v4435, %v4007
      %v4484 = vsel %vm2115, %v4436, %v4009
      %v4485 = vsel %vm2115, %v4437, %v4011
      %v4486 = vsel %vm2115, %v4438, %v4013
      %v4487 = vsel %vm2115, %v4439, %v4015
      %v4488 = vsel %vm2115, %v4440, %v4017
      %v4489 = vsel %vm2115, %v4441, %v4019
      %v4490 = vsel %vm2115, %v4442, %v4021
      %v4491 = vsel %vm2115, %v4443, %v4023
      %v4492 = vsel %vm2115, %v4444, %v4025
      %v4493 = vsel %vm2115, %v4445, %v4027
      %v4494 = vsel %vm2115, %v4446, %v4029
      %v4495 = vsel %vm2115, %v4447, %v4031
      %v4496 = vsel %vm2115, %v4448, %v4033
      %v4497 = vsel %vm2115, %v4449, %v4035
      %v4498 = vsel %vm2115, %v4450, %v4037
      %v4499 = vsel %vm2115, %v4451, %v4039
      %v4500 = vsel %vm2115, %v4452, %v4041
      %v4501 = vsel %vm2115, %v4453, %v4043
      %v4502 = vsel %vm2115, %v4454, %v4045
      %v4503 = vsel %vm2115, %v4455, %v4047
      %v4504 = vsel %vm2115, %v4456, %v4049
      %v4505 = vsel %vm2115, %v4457, %v4051
      %v4506 = vsel %vm2115, %v4458, %v4053
      %v4507 = vsel %vm2115, %v4459, %v4055
      %v4508 = vsel %vm2115, %v4460, %v4057
      %v4509 = vsel %vm2115, %v4461, %v4059
      %v4510 = vsel %vm2115, %v4462, %v4061
      %v4511 = vsel %vm2115, %v4463, %v4063
      %v4512 = vsel %vm2115, %v4464, %v4065
      %v4513 = vsel %vm2115, %v4465, %v4067
      %v4514 = vsel %vm2115, %v4466, %v4069
      %v4515 = vsel %vm2115, %v4467, %v4071
      %v4516 = vsel %vm2115, %v4468, %v4073
      %v4517 = vsel %vm2115, %v4469, %v4075
      %v4518 = vsel %vm2115, %v4470, %v4077
      %v4519 = vsel %vm2115, %v4471, %v4079
      %v4520 = vsel %vm2115, %v4472, %v4081
      %v4521 = vsel %vm2115, %v4473, %v4083
      %v4522 = vsel %vm2115, %v4474, %v4085
      %v4523 = vsel %vm2115, %v4475, %v4087
      %v4524 = vsel %vm2115, %v4476, %v4089
      %v4525 = vsel %vm2115, %v4477, %v4091
      %v4526 = vsel %vm2115, %v4478, %v4093
      %v4527 = vsel %vm2115, %v4479, %v4095
      %v4528 = vld [vmem:[%s3] sm:$0xff]
      %v4529 = vld [vmem:[%s3 + $0x8] sm:$0xff]
      %v4530 = vld [vmem:[%s3 + $0x10] sm:$0xff]
      %v4531 = vld [vmem:[%s3 + $0x18] sm:$0xff]
      %v4532 = vld [vmem:[%s3 + $0x20] sm:$0xf]
      %v4533 = vld [vmem:[%s4] sm:$0x1]
      %v4535 = vlaneseq
      %v4536 = vshrl.u32 %v4535, 7
      %v4537 = vsub.s32 0, %v4536
      %v4538 = vrot.slane %v4533, %v4537
      %v4588 = vrot.slane %v4480, 7
      %v4589 = vrot.slane %v4481, 7
      %v4590 = vsel %vm2224, %v4588, %v4589
      %v4591 = vrot.slane %v4482, 7
      %v4592 = vsel %vm2224, %v4589, %v4591
      %v4593 = vrot.slane %v4483, 7
      %v4594 = vrot.slane %v4484, 7
      %v4595 = vsel %vm2224, %v4593, %v4594
      %v4596 = vrot.slane %v4485, 7
      %v4597 = vsel %vm2224, %v4594, %v4596
      %v4598 = vrot.slane %v4486, 7
      %v4599 = vrot.slane %v4487, 7
      %v4600 = vsel %vm2224, %v4598, %v4599
      %v4601 = vrot.slane %v4488, 7
      %v4602 = vsel %vm2224, %v4599, %v4601
      %v4603 = vrot.slane %v4489, 7
      %v4604 = vrot.slane %v4490, 7
      %v4605 = vsel %vm2224, %v4603, %v4604
      %v4606 = vrot.slane %v4491, 7
      %v4607 = vsel %vm2224, %v4604, %v4606
      %v4608 = vrot.slane %v4492, 7
      %v4609 = vrot.slane %v4493, 7
      %v4610 = vsel %vm2224, %v4608, %v4609
      %v4611 = vrot.slane %v4494, 7
      %v4612 = vsel %vm2224, %v4609, %v4611
      %v4613 = vrot.slane %v4495, 7
      %v4614 = vrot.slane %v4496, 7
      %v4615 = vsel %vm2224, %v4613, %v4614
      %v4616 = vrot.slane %v4497, 7
      %v4617 = vsel %vm2224, %v4614, %v4616
      %v4618 = vrot.slane %v4498, 7
      %v4619 = vrot.slane %v4499, 7
      %v4620 = vsel %vm2224, %v4618, %v4619
      %v4621 = vrot.slane %v4500, 7
      %v4622 = vsel %vm2224, %v4619, %v4621
      %v4623 = vrot.slane %v4501, 7
      %v4624 = vrot.slane %v4502, 7
      %v4625 = vsel %vm2224, %v4623, %v4624
      %v4626 = vrot.slane %v4503, 7
      %v4627 = vsel %vm2224, %v4624, %v4626
      %v4628 = vrot.slane %v4504, 7
      %v4629 = vrot.slane %v4505, 7
      %v4630 = vsel %vm2224, %v4628, %v4629
      %v4631 = vrot.slane %v4506, 7
      %v4632 = vsel %vm2224, %v4629, %v4631
      %v4633 = vrot.slane %v4507, 7
      %v4634 = vrot.slane %v4508, 7
      %v4635 = vsel %vm2224, %v4633, %v4634
      %v4636 = vrot.slane %v4509, 7
      %v4637 = vsel %vm2224, %v4634, %v4636
      %v4638 = vrot.slane %v4510, 7
      %v4639 = vrot.slane %v4511, 7
      %v4640 = vsel %vm2224, %v4638, %v4639
      %v4641 = vrot.slane %v4512, 7
      %v4642 = vsel %vm2224, %v4639, %v4641
      %v4643 = vrot.slane %v4513, 7
      %v4644 = vrot.slane %v4514, 7
      %v4645 = vsel %vm2224, %v4643, %v4644
      %v4646 = vrot.slane %v4515, 7
      %v4647 = vsel %vm2224, %v4644, %v4646
      %v4648 = vrot.slane %v4516, 7
      %v4649 = vrot.slane %v4517, 7
      %v4650 = vsel %vm2224, %v4648, %v4649
      %v4651 = vrot.slane %v4518, 7
      %v4652 = vsel %vm2224, %v4649, %v4651
      %v4653 = vrot.slane %v4519, 7
      %v4654 = vrot.slane %v4520, 7
      %v4655 = vsel %vm2224, %v4653, %v4654
      %v4656 = vrot.slane %v4521, 7
      %v4657 = vsel %vm2224, %v4654, %v4656
      %v4658 = vrot.slane %v4522, 7
      %v4659 = vrot.slane %v4523, 7
      %v4660 = vsel %vm2224, %v4658, %v4659
      %v4661 = vrot.slane %v4524, 7
      %v4662 = vsel %vm2224, %v4659, %v4661
      %v4663 = vrot.slane %v4525, 7
      %v4664 = vrot.slane %v4526, 7
      %v4665 = vsel %vm2224, %v4663, %v4664
      %v4666 = vrot.slane %v4527, 7
      %v4667 = vsel %vm2224, %v4664, %v4666
      %v4668 = vsel %vm2305, %v4590, 0
      %v4670 = vsel %vm2305, %v4592, 0
      %v4672 = vsel %vm2305, %v4595, 0
      %v4674 = vsel %vm2305, %v4597, 0
      %v4676 = vsel %vm2305, %v4600, 0
      %v4678 = vsel %vm2305, %v4602, 0
      %v4680 = vsel %vm2305, %v4605, 0
      %v4682 = vsel %vm2305, %v4607, 0
      %v4684 = vsel %vm2305, %v4610, 0
      %v4686 = vsel %vm2305, %v4612, 0
      %v4688 = vsel %vm2305, %v4615, 0
      %v4690 = vsel %vm2305, %v4617, 0
      %v4692 = vsel %vm2305, %v4620, 0
      %v4694 = vsel %vm2305, %v4622, 0
      %v4696 = vsel %vm2305, %v4625, 0
      %v4698 = vsel %vm2305, %v4627, 0
      %v4700 = vsel %vm2305, %v4630, 0
      %v4702 = vsel %vm2305, %v4632, 0
      %v4704 = vsel %vm2305, %v4635, 0
      %v4706 = vsel %vm2305, %v4637, 0
      %v4708 = vsel %vm2305, %v4640, 0
      %v4710 = vsel %vm2305, %v4642, 0
      %v4712 = vsel %vm2305, %v4645, 0
      %v4714 = vsel %vm2305, %v4647, 0
      %v4716 = vsel %vm2305, %v4650, 0
      %v4718 = vsel %vm2305, %v4652, 0
      %v4720 = vsel %vm2305, %v4655, 0
      %v4722 = vsel %vm2305, %v4657, 0
      %v4724 = vsel %vm2305, %v4660, 0
      %v4726 = vsel %vm2305, %v4662, 0
      %v4728 = vsel %vm2305, %v4665, 0
      %v4730 = vsel %vm2305, %v4667, 0
      %v4733 = vsel %vm2370, %v4532, 0
      %4735 = vmatprep.subr.mxu0 0.0
      %4736 = vmatpush1.msra.mxu0 0.0
      %4737 = vmatprep.subr.mxu0 0.0
      %4738 = vmatpush1.msra.mxu0 0.0
      %4739 = vmatprep.subr.mxu0 0.0
      %4740 = vmatpush1.msra.mxu0 0.0
      %4741 = vmatprep.subr.mxu0 0.0
      %4742 = vmatpush1.msra.mxu0 0.0
      %4743 = vmatprep.subr.mxu0 0.0
      %4744 = vmatpush1.msra.mxu0 0.0
      %4745 = vmatprep.subr.mxu0 0.0
      %4746 = vmatpush1.msra.mxu0 0.0
      %4747 = vmatprep.subr.mxu0 0.0
      %4748 = vmatpush1.msra.mxu0 0.0
      %4749 = vmatprep.subr.mxu0 0.0
      %4750 = vmatpush1.msra.mxu0 0.0
      %4751 = vmatprep.subr.mxu0 0.0
      %4752 = vmatpush1.msra.mxu0 0.0
      %4753 = vmatprep.subr.mxu0 0.0
      %4754 = vmatpush1.msra.mxu0 0.0
      %4755 = vmatprep.subr.mxu0 0.0
      %4756 = vmatpush1.msra.mxu0 0.0
      %4757 = vmatprep.subr.mxu0 0.0
      %4758 = vmatpush1.msra.mxu0 %v4733
      %4759 = vmatprep.subr.mxu0 0.0
      %4760 = vmatpush1.msra.mxu0 %v4531
      %4761 = vmatprep.subr.mxu0 0.0
      %4762 = vmatpush1.msra.mxu0 %v4530
      %4763 = vmatprep.subr.mxu0 0.0
      %4764 = vmatpush1.msra.mxu0 %v4529
      %4765 = vmatprep.subr.mxu0 0.0
      %4766 = vmatpush1.msra.mxu0 %v4528
      %4767 = vmatprep.subr.mxu0 0.0
      %4768 = vmatpush2.msra.mxu0 0.0
      %4769 = vmatprep.subr.mxu0 0.0
      %4770 = vmatpush2.msra.mxu0 0.0
      %4771 = vmatprep.subr.mxu0 0.0
      %4772 = vmatpush2.msra.mxu0 0.0
      %4773 = vmatprep.subr.mxu0 0.0
      %4774 = vmatpush2.msra.mxu0 0.0
      %4775 = vmatprep.subr.mxu0 0.0
      %4776 = vmatpush2.msra.mxu0 0.0
      %4777 = vmatprep.subr.mxu0 0.0
      %4778 = vmatpush2.msra.mxu0 0.0
      %4779 = vmatprep.subr.mxu0 0.0
      %4780 = vmatpush2.msra.mxu0 0.0
      %4781 = vmatprep.subr.mxu0 0.0
      %4782 = vmatpush2.msra.mxu0 0.0
      %4783 = vmatprep.subr.mxu0 0.0
      %4784 = vmatpush2.msra.mxu0 0.0
      %4785 = vmatprep.subr.mxu0 0.0
      %4786 = vmatpush2.msra.mxu0 0.0
      %4787 = vmatprep.subr.mxu0 0.0
      %4788 = vmatpush2.msra.mxu0 0.0
      %4789 = vmatprep.subr.mxu0 0.0
      %4790 = vmatpush2.msra.mxu0 0.0
      %4791 = vmatprep.subr.mxu0 0.0
      %4792 = vmatpush2.msra.mxu0 0.0
      %4793 = vmatprep.subr.mxu0 0.0
      %4794 = vmatpush2.msra.mxu0 0.0
      %4795 = vmatprep.subr.mxu0 0.0
      %4796 = vmatpush2.msra.mxu0 0.0
      %4797 = vmatprep.subr.mxu0 0.0
      %4798 = vmatpush2.msra.mxu0 0.0
      %4799 = vmatprep.mubr.f32.mxu0 0.0
      %4800 = vmatmul.mubr.f32.gmra.mxu0 %v4668
      %v4801 = vpop.f32.mrf.mxu0
      %v4802 = vadd.f32 %v4538, %v4801
      %v4803 = vpop.f32.mrf.mxu0
      %4804 = vmatprep.mubr.f32.mxu0 0.0
      %4805 = vmatmul.mubr.f32.gmra.mxu0 %v4670
      %v4806 = vpop.f32.mrf.mxu0
      %v4807 = vadd.f32 %v4538, %v4806
      %v4808 = vpop.f32.mrf.mxu0
      %4809 = vmatprep.mubr.f32.mxu0 0.0
      %4810 = vmatmul.mubr.f32.gmra.mxu0 %v4672
      %v4811 = vpop.f32.mrf.mxu0
      %v4812 = vadd.f32 %v4538, %v4811
      %v4813 = vpop.f32.mrf.mxu0
      %4814 = vmatprep.mubr.f32.mxu0 0.0
      %4815 = vmatmul.mubr.f32.gmra.mxu0 %v4674
      %v4816 = vpop.f32.mrf.mxu0
      %v4817 = vadd.f32 %v4538, %v4816
      %v4818 = vpop.f32.mrf.mxu0
      %4819 = vmatprep.mubr.f32.mxu0 0.0
      %4820 = vmatmul.mubr.f32.gmra.mxu0 %v4676
      %v4821 = vpop.f32.mrf.mxu0
      %v4822 = vadd.f32 %v4538, %v4821
      %v4823 = vpop.f32.mrf.mxu0
      %4824 = vmatprep.mubr.f32.mxu0 0.0
      %4825 = vmatmul.mubr.f32.gmra.mxu0 %v4678
      %v4826 = vpop.f32.mrf.mxu0
      %v4827 = vadd.f32 %v4538, %v4826
      %v4828 = vpop.f32.mrf.mxu0
      %4829 = vmatprep.mubr.f32.mxu0 0.0
      %4830 = vmatmul.mubr.f32.gmra.mxu0 %v4680
      %v4831 = vpop.f32.mrf.mxu0
      %v4832 = vadd.f32 %v4538, %v4831
      %v4833 = vpop.f32.mrf.mxu0
      %4834 = vmatprep.mubr.f32.mxu0 0.0
      %4835 = vmatmul.mubr.f32.gmra.mxu0 %v4682
      %v4836 = vpop.f32.mrf.mxu0
      %v4837 = vadd.f32 %v4538, %v4836
      %v4838 = vpop.f32.mrf.mxu0
      %4839 = vmatprep.mubr.f32.mxu0 0.0
      %4840 = vmatmul.mubr.f32.gmra.mxu0 %v4684
      %v4841 = vpop.f32.mrf.mxu0
      %v4842 = vadd.f32 %v4538, %v4841
      %v4843 = vpop.f32.mrf.mxu0
      %4844 = vmatprep.mubr.f32.mxu0 0.0
      %4845 = vmatmul.mubr.f32.gmra.mxu0 %v4686
      %v4846 = vpop.f32.mrf.mxu0
      %v4847 = vadd.f32 %v4538, %v4846
      %v4848 = vpop.f32.mrf.mxu0
      %4849 = vmatprep.mubr.f32.mxu0 0.0
      %4850 = vmatmul.mubr.f32.gmra.mxu0 %v4688
      %v4851 = vpop.f32.mrf.mxu0
      %v4852 = vadd.f32 %v4538, %v4851
      %v4853 = vpop.f32.mrf.mxu0
      %4854 = vmatprep.mubr.f32.mxu0 0.0
      %4855 = vmatmul.mubr.f32.gmra.mxu0 %v4690
      %v4856 = vpop.f32.mrf.mxu0
      %v4857 = vadd.f32 %v4538, %v4856
      %v4858 = vpop.f32.mrf.mxu0
      %4859 = vmatprep.mubr.f32.mxu0 0.0
      %4860 = vmatmul.mubr.f32.gmra.mxu0 %v4692
      %v4861 = vpop.f32.mrf.mxu0
      %v4862 = vadd.f32 %v4538, %v4861
      %v4863 = vpop.f32.mrf.mxu0
      %4864 = vmatprep.mubr.f32.mxu0 0.0
      %4865 = vmatmul.mubr.f32.gmra.mxu0 %v4694
      %v4866 = vpop.f32.mrf.mxu0
      %v4867 = vadd.f32 %v4538, %v4866
      %v4868 = vpop.f32.mrf.mxu0
      %4869 = vmatprep.mubr.f32.mxu0 0.0
      %4870 = vmatmul.mubr.f32.gmra.mxu0 %v4696
      %v4871 = vpop.f32.mrf.mxu0
      %v4872 = vadd.f32 %v4538, %v4871
      %v4873 = vpop.f32.mrf.mxu0
      %4874 = vmatprep.mubr.f32.mxu0 0.0
      %4875 = vmatmul.mubr.f32.gmra.mxu0 %v4698
      %v4876 = vpop.f32.mrf.mxu0
      %v4877 = vadd.f32 %v4538, %v4876
      %v4878 = vpop.f32.mrf.mxu0
      %4879 = vmatprep.mubr.f32.mxu0 0.0
      %4880 = vmatmul.mubr.f32.gmra.mxu0 %v4700
      %v4881 = vpop.f32.mrf.mxu0
      %v4882 = vadd.f32 %v4538, %v4881
      %v4883 = vpop.f32.mrf.mxu0
      %4884 = vmatprep.mubr.f32.mxu0 0.0
      %4885 = vmatmul.mubr.f32.gmra.mxu0 %v4702
      %v4886 = vpop.f32.mrf.mxu0
      %v4887 = vadd.f32 %v4538, %v4886
      %v4888 = vpop.f32.mrf.mxu0
      %4889 = vmatprep.mubr.f32.mxu0 0.0
      %4890 = vmatmul.mubr.f32.gmra.mxu0 %v4704
      %v4891 = vpop.f32.mrf.mxu0
      %v4892 = vadd.f32 %v4538, %v4891
      %v4893 = vpop.f32.mrf.mxu0
      %4894 = vmatprep.mubr.f32.mxu0 0.0
      %4895 = vmatmul.mubr.f32.gmra.mxu0 %v4706
      %v4896 = vpop.f32.mrf.mxu0
      %v4897 = vadd.f32 %v4538, %v4896
      %v4898 = vpop.f32.mrf.mxu0
      %4899 = vmatprep.mubr.f32.mxu0 0.0
      %4900 = vmatmul.mubr.f32.gmra.mxu0 %v4708
      %v4901 = vpop.f32.mrf.mxu0
      %v4902 = vadd.f32 %v4538, %v4901
      %v4903 = vpop.f32.mrf.mxu0
      %4904 = vmatprep.mubr.f32.mxu0 0.0
      %4905 = vmatmul.mubr.f32.gmra.mxu0 %v4710
      %v4906 = vpop.f32.mrf.mxu0
      %v4907 = vadd.f32 %v4538, %v4906
      %v4908 = vpop.f32.mrf.mxu0
      %4909 = vmatprep.mubr.f32.mxu0 0.0
      %4910 = vmatmul.mubr.f32.gmra.mxu0 %v4712
      %v4911 = vpop.f32.mrf.mxu0
      %v4912 = vadd.f32 %v4538, %v4911
      %v4913 = vpop.f32.mrf.mxu0
      %4914 = vmatprep.mubr.f32.mxu0 0.0
      %4915 = vmatmul.mubr.f32.gmra.mxu0 %v4714
      %v4916 = vpop.f32.mrf.mxu0
      %v4917 = vadd.f32 %v4538, %v4916
      %v4918 = vpop.f32.mrf.mxu0
      %4919 = vmatprep.mubr.f32.mxu0 0.0
      %4920 = vmatmul.mubr.f32.gmra.mxu0 %v4716
      %v4921 = vpop.f32.mrf.mxu0
      %v4922 = vadd.f32 %v4538, %v4921
      %v4923 = vpop.f32.mrf.mxu0
      %4924 = vmatprep.mubr.f32.mxu0 0.0
      %4925 = vmatmul.mubr.f32.gmra.mxu0 %v4718
      %v4926 = vpop.f32.mrf.mxu0
      %v4927 = vadd.f32 %v4538, %v4926
      %v4928 = vpop.f32.mrf.mxu0
      %4929 = vmatprep.mubr.f32.mxu0 0.0
      %4930 = vmatmul.mubr.f32.gmra.mxu0 %v4720
      %v4931 = vpop.f32.mrf.mxu0
      %v4932 = vadd.f32 %v4538, %v4931
      %v4933 = vpop.f32.mrf.mxu0
      %4934 = vmatprep.mubr.f32.mxu0 0.0
      %4935 = vmatmul.mubr.f32.gmra.mxu0 %v4722
      %v4936 = vpop.f32.mrf.mxu0
      %v4937 = vadd.f32 %v4538, %v4936
      %v4938 = vpop.f32.mrf.mxu0
      %4939 = vmatprep.mubr.f32.mxu0 0.0
      %4940 = vmatmul.mubr.f32.gmra.mxu0 %v4724
      %v4941 = vpop.f32.mrf.mxu0
      %v4942 = vadd.f32 %v4538, %v4941
      %v4943 = vpop.f32.mrf.mxu0
      %4944 = vmatprep.mubr.f32.mxu0 0.0
      %4945 = vmatmul.mubr.f32.gmra.mxu0 %v4726
      %v4946 = vpop.f32.mrf.mxu0
      %v4947 = vadd.f32 %v4538, %v4946
      %v4948 = vpop.f32.mrf.mxu0
      %4949 = vmatprep.mubr.f32.mxu0 0.0
      %4950 = vmatmul.mubr.f32.gmra.mxu0 %v4728
      %v4951 = vpop.f32.mrf.mxu0
      %v4952 = vadd.f32 %v4538, %v4951
      %v4953 = vpop.f32.mrf.mxu0
      %4954 = vmatprep.mubr.f32.mxu0 0.0
      %4955 = vmatmul.mubr.f32.gmra.mxu0 %v4730
      %v4956 = vpop.f32.mrf.mxu0
      %v4957 = vadd.f32 %v4538, %v4956
      %v4958 = vpop.f32.mrf.mxu0
      %4959 = vdwg.mxu0
      %v4960 = vadd.f32 %v4802, %v225
      %v4961 = vadd.f32 %v4807, %v226
      %v4962 = vadd.f32 %v4812, %v227
      %v4963 = vadd.f32 %v4817, %v228
      %v4964 = vadd.f32 %v4822, %v229
      %v4965 = vadd.f32 %v4827, %v230
      %v4966 = vadd.f32 %v4832, %v231
      %v4967 = vadd.f32 %v4837, %v232
      %v4968 = vadd.f32 %v4842, %v233
      %v4969 = vadd.f32 %v4847, %v234
      %v4970 = vadd.f32 %v4852, %v235
      %v4971 = vadd.f32 %v4857, %v236
      %v4972 = vadd.f32 %v4862, %v237
      %v4973 = vadd.f32 %v4867, %v238
      %v4974 = vadd.f32 %v4872, %v239
      %v4975 = vadd.f32 %v4877, %v240
      %v4976 = vadd.f32 %v4882, %v241
      %v4977 = vadd.f32 %v4887, %v242
      %v4978 = vadd.f32 %v4892, %v243
      %v4979 = vadd.f32 %v4897, %v244
      %v4980 = vadd.f32 %v4902, %v245
      %v4981 = vadd.f32 %v4907, %v246
      %v4982 = vadd.f32 %v4912, %v247
      %v4983 = vadd.f32 %v4917, %v248
      %v4984 = vadd.f32 %v4922, %v249
      %v4985 = vadd.f32 %v4927, %v250
      %v4986 = vadd.f32 %v4932, %v251
      %v4987 = vadd.f32 %v4937, %v252
      %v4988 = vadd.f32 %v4942, %v253
      %v4989 = vadd.f32 %v4947, %v254
      %v4990 = vadd.f32 %v4952, %v255
      %v4991 = vadd.f32 %v4957, %v256
      %v4992 = vmax.f32 %v4960, 0.0
      %v4993 = vmax.f32 %v4961, 0.0
      %v4994 = vmax.f32 %v4962, 0.0
      %v4995 = vmax.f32 %v4963, 0.0
      %v4996 = vmax.f32 %v4964, 0.0
      %v4997 = vmax.f32 %v4965, 0.0
      %v4998 = vmax.f32 %v4966, 0.0
      %v4999 = vmax.f32 %v4967, 0.0
      %v5000 = vmax.f32 %v4968, 0.0
      %v5001 = vmax.f32 %v4969, 0.0
      %v5002 = vmax.f32 %v4970, 0.0
      %v5003 = vmax.f32 %v4971, 0.0
      %v5004 = vmax.f32 %v4972, 0.0
      %v5005 = vmax.f32 %v4973, 0.0
      %v5006 = vmax.f32 %v4974, 0.0
      %v5007 = vmax.f32 %v4975, 0.0
      %v5008 = vmax.f32 %v4976, 0.0
      %v5009 = vmax.f32 %v4977, 0.0
      %v5010 = vmax.f32 %v4978, 0.0
      %v5011 = vmax.f32 %v4979, 0.0
      %v5012 = vmax.f32 %v4980, 0.0
      %v5013 = vmax.f32 %v4981, 0.0
      %v5014 = vmax.f32 %v4982, 0.0
      %v5015 = vmax.f32 %v4983, 0.0
      %v5016 = vmax.f32 %v4984, 0.0
      %v5017 = vmax.f32 %v4985, 0.0
      %v5018 = vmax.f32 %v4986, 0.0
      %v5019 = vmax.f32 %v4987, 0.0
      %v5020 = vmax.f32 %v4988, 0.0
      %v5021 = vmax.f32 %v4989, 0.0
      %v5022 = vmax.f32 %v4990, 0.0
      %v5023 = vmax.f32 %v4991, 0.0
      %5024 = vst.msk [vmem:[%s224] sm:$0xff] %vm257, %v4992
      %5025 = vst.msk [vmem:[%s224 + $0x8] sm:$0xff] %vm257, %v4993
      %5026 = vst.msk [vmem:[%s224 + $0x10] sm:$0xff] %vm257, %v4994
      %5027 = vst.msk [vmem:[%s224 + $0x18] sm:$0xff] %vm257, %v4995
      %5028 = vst.msk [vmem:[%s224 + $0x20] sm:$0xff] %vm257, %v4996
      %5029 = vst.msk [vmem:[%s224 + $0x28] sm:$0xff] %vm257, %v4997
      %5030 = vst.msk [vmem:[%s224 + $0x30] sm:$0xff] %vm257, %v4998
      %5031 = vst.msk [vmem:[%s224 + $0x38] sm:$0xff] %vm257, %v4999
      %5032 = vst.msk [vmem:[%s224 + $0x40] sm:$0xff] %vm257, %v5000
      %5033 = vst.msk [vmem:[%s224 + $0x48] sm:$0xff] %vm257, %v5001
      %5034 = vst.msk [vmem:[%s224 + $0x50] sm:$0xff] %vm257, %v5002
      %5035 = vst.msk [vmem:[%s224 + $0x58] sm:$0xff] %vm257, %v5003
      %5036 = vst.msk [vmem:[%s224 + $0x60] sm:$0xff] %vm257, %v5004
      %5037 = vst.msk [vmem:[%s224 + $0x68] sm:$0xff] %vm257, %v5005
      %5038 = vst.msk [vmem:[%s224 + $0x70] sm:$0xff] %vm257, %v5006
      %5039 = vst.msk [vmem:[%s224 + $0x78] sm:$0xff] %vm257, %v5007
      %5040 = vst.msk [vmem:[%s224 + $0x80] sm:$0xff] %vm257, %v5008
      %5041 = vst.msk [vmem:[%s224 + $0x88] sm:$0xff] %vm257, %v5009
      %5042 = vst.msk [vmem:[%s224 + $0x90] sm:$0xff] %vm257, %v5010
      %5043 = vst.msk [vmem:[%s224 + $0x98] sm:$0xff] %vm257, %v5011
      %5044 = vst.msk [vmem:[%s224 + $0xa0] sm:$0xff] %vm257, %v5012
      %5045 = vst.msk [vmem:[%s224 + $0xa8] sm:$0xff] %vm257, %v5013
      %5046 = vst.msk [vmem:[%s224 + $0xb0] sm:$0xff] %vm257, %v5014
      %5047 = vst.msk [vmem:[%s224 + $0xb8] sm:$0xff] %vm257, %v5015
      %5048 = vst.msk [vmem:[%s224 + $0xc0] sm:$0xff] %vm257, %v5016
      %5049 = vst.msk [vmem:[%s224 + $0xc8] sm:$0xff] %vm257, %v5017
      %5050 = vst.msk [vmem:[%s224 + $0xd0] sm:$0xff] %vm257, %v5018
      %5051 = vst.msk [vmem:[%s224 + $0xd8] sm:$0xff] %vm257, %v5019
      %5052 = vst.msk [vmem:[%s224 + $0xe0] sm:$0xff] %vm257, %v5020
      %5053 = vst.msk [vmem:[%s224 + $0xe8] sm:$0xff] %vm257, %v5021
      %5054 = vst.msk [vmem:[%s224 + $0xf0] sm:$0xff] %vm257, %v5022
      %5055 = vst.msk [vmem:[%s224 + $0xf8] sm:$0xff] %vm257, %v5023
      %p5056 = scmp.lt.s32.totalorder %s16, 1
      %s5057 = scalar_select %p5056, %s16, 1
      %s5058 = smul.addr %s5057, 32
      %s5059 = smul.addr %s5058, 8
      %s5060 = scalar_lea.vmem %s5, %s5059
      // Predicated region
      $region41: #{resblock_forward.1} parent=39 // pred_check
        %p5061 = pneg %p144
      $region42: #{resblock_forward.1} parent=39 // pred_check_branch
        %5063 = sbr.rel (%p5061) target = $region44
      $region43: #{resblock_forward.1} parent=39 // pred_region
        _
      $region44: #{resblock_forward.1} parent=39 // pred_fallthru
        _
    $region40: #{resblock_forward.1} parent=5 // pred_fallthru
      _
    %p5064 = scmp.le.s32.totalorder 2, %s11
    // Predicated region
    $region45: #{resblock_forward.1} parent=5 // pred_check
      %p5065 = pneg %p5064
    $region46: #{resblock_forward.1} parent=5 // pred_check_branch
      %5067 = sbr.rel (%p5065) target = $region48
    $region47: #{resblock_forward.1} parent=5 // pred_region
      %s5068 = ssub.s32 %s11, 2
      // Predicated region
      $region49: #{resblock_forward.1} parent=47 // pred_check
        %p5069 = pneg %p150
      $region50: #{resblock_forward.1} parent=47 // pred_check_branch
        %5071 = sbr.rel (%p5069) target = $region52
      $region51: #{resblock_forward.1} parent=47 // pred_region
        %p5072 = scmp.lt.s32.totalorder %s17, 1
        %s5073 = scalar_select %p5072, %s17, 1
        %s5074 = smul.addr %s5073, 32
        %s5075 = smul.addr %s5074, 8
        %s5076 = scalar_lea.vmem %s5, %s5075
      $region52: #{resblock_forward.1} parent=47 // pred_fallthru
        _
    $region48: #{resblock_forward.1} parent=5 // pred_fallthru
      _
  $region6: #{resblock_forward.1} parent=0 // loop_footer
    %s15 = sadd.s32 1, %s11
  $region7: #{resblock_forward.1} parent=0 // loop_footer_branch
    %10 = sbr.rel target = $region3
  $region8: #{resblock_forward.1} parent=0 // loop_exit
    _

</llo_original>
